<compile_context>
chip_gen: v7x
topology: tpu7x:2x2x1
jax: 0.10.0
libtpu: 0.0.40
codegen_flags: <defaults>
</compile_context>

<pallas_src>
import jax
import jax.numpy as jnp
from jax import lax
from jax.experimental import pallas as pl
from jax.experimental.pallas import tpu as pltpu

K = 7          # kernel_size
P = 3          # padding (kernel_size == 7 -> padding == 3)


def _build_tap_matrices(weight, H, W):
    """weight: (1, 2, K, K, K) -> G: (2*K*HW, HW) float32 stacked tap matrices.

    Row index = (c*K + kd)*HW + (h_in*W + w_in), column index = h_out*W + w_out,
    value = weight[0, c, kd, h_in - h_out + P, w_in - w_out + P] (0 outside the
    7x7 band), so that

        out[d, :] = im2col[d, :] @ G,
        im2col[d, (c*K+kd)*HW + hw] = map_c[d + kd - P, hw]   (0 outside depth)

    reproduces the zero-padded 7x7x7 cross-correlation over the flattened
    (H*W) spatial axis.
    """
    HW = H * W
    w = weight.reshape(2 * K, K, K).astype(jnp.float32)          # [c*K+kd, kh, kw]
    dh = jnp.arange(H)[:, None] - jnp.arange(H)[None, :] + P     # (H_in, H_out)
    dw = jnp.arange(W)[:, None] - jnp.arange(W)[None, :] + P     # (W_in, W_out)
    valid_h = (dh >= 0) & (dh < K)
    valid_w = (dw >= 0) & (dw < K)
    dh_c = jnp.clip(dh, 0, K - 1)
    dw_c = jnp.clip(dw, 0, K - 1)
    # g[i, h_in, h_out, w_in, w_out] = w[i, dh, dw] (masked outside the band)
    g = w[:, dh_c[:, :, None, None], dw_c[None, None, :, :]]
    g = g * (valid_h[:, :, None, None] & valid_w[None, None, :, :]).astype(jnp.float32)
    # rows = (h_in, w_in), cols = (h_out, w_out)
    g = g.transpose(0, 1, 3, 2, 4).reshape(2 * K, HW, HW)
    return g.reshape(2 * K * HW, HW)


def _spatial_attn_kernel(g_ref, x_ref, o_ref, col_ref):
    # g_ref  : VMEM (2*K*HW, HW)   stacked tap matrices (resident across grid)
    # x_ref  : VMEM (1, C, D, HW)  one batch element, (H,W) flattened -> lanes
    # o_ref  : VMEM (1, D, HW)     output block
    # col_ref: VMEM (D, 2*K*HW)    f32 depth-im2col scratch (LHS of the matmul)
    _, C, D, HW = x_ref.shape

    # ---- fused single-pass channel mean & max (lane-dense) -------------------
    x0 = x_ref[0, 0].astype(jnp.float32)              # (D, HW)
    s = x0
    m = x0
    for c in range(1, C):                             # static unroll, one pass
        xc = x_ref[0, c].astype(jnp.float32)
        s = s + xc
        m = jnp.maximum(m, xc)
    avg = s * (1.0 / C)
    maps = (avg, m)                                   # conv input channels 0, 1

    # ---- build depth-im2col LHS in VMEM ---------------------------------------
    # col[d, (c*K+kd)*HW + hw] = maps[c][d + kd - P, hw], zero outside [0, D).
    # Only the small depth-halo sub-blocks are zeroed each step (re-zeroing every
    # step keeps this correct when the batch axis is sharded across TensorCores).
    for c in range(2):
        src = maps[c]
        for kd in range(K):                           # static unroll (K = 7)
            col0 = (c * K + kd) * HW                  # static lane offset
            lo = max(0, P - kd)                       # first valid output depth row
            hi = min(D, D + P - kd)                   # one past last valid row
            if lo > 0:
                col_ref[pl.ds(0, lo), pl.ds(col0, HW)] = jnp.zeros((lo, HW), jnp.float32)
            if hi < D:
                col_ref[pl.ds(hi, D - hi), pl.ds(col0, HW)] = jnp.zeros(
                    (D - hi, HW), jnp.float32)
            col_ref[pl.ds(lo, hi - lo), pl.ds(col0, HW)] = src[lo + kd - P: hi + kd - P, :]

    # ---- 7x7x7 conv as ONE MXU matmul -----------------------------------------
    # (D, 2*K*HW) x (2*K*HW, HW) -> (D, HW), accumulated in f32 inside the MXU.
    acc = jnp.dot(col_ref[...], g_ref[...], preferred_element_type=jnp.float32)

    o_ref[0] = jax.nn.sigmoid(acc).astype(o_ref.dtype)


def spatial_attention_3d(x, weight):
    """x: (N, C, D, H, W); weight: (1, 2, K, K, K). Returns (N, 1, D, H, W)."""
    N, C, D, H, W = x.shape
    HW = H * W

    g = _build_tap_matrices(weight, H, W)             # (2*K*HW, HW), built once
    x_flat = x.reshape(N, C, D, HW)                   # lane-dense view (free)

    # Explicit VMEM budget (double-buffered blocks + resident taps + scratch).
    itemsize = x.dtype.itemsize
    vmem_bytes = (2 * C * D * HW * itemsize           # input block (x2 buffers)
                  + (2 * K) * HW * HW * 4             # stacked tap matrices
                  + 2 * D * HW * itemsize             # output block (x2 buffers)
                  + D * (2 * K) * HW * 4)             # im2col scratch
    vmem_limit = min(max(2 * vmem_bytes + (2 << 20), 16 << 20), 64 << 20)

    grid_spec = pltpu.PrefetchScalarGridSpec(
        num_scalar_prefetch=0,
        grid=(N,),
        in_specs=[
            pl.BlockSpec((2 * K * HW, HW), lambda b: (0, 0)),     # resident taps
            pl.BlockSpec((1, C, D, HW), lambda b: (b, 0, 0, 0)),
        ],
        out_specs=pl.BlockSpec((1, D, HW), lambda b: (b, 0, 0)),
        scratch_shapes=[pltpu.VMEM((D, 2 * K * HW), jnp.float32)],
    )

    out_flat = pl.pallas_call(
        _spatial_attn_kernel,
        out_shape=jax.ShapeDtypeStruct((N, D, HW), x.dtype),
        grid_spec=grid_spec,
        compiler_params=pltpu.CompilerParams(
            dimension_semantics=("parallel",),        # batch is independent (v7x 2 TCs)
            vmem_limit_bytes=int(vmem_limit),
        ),
    )(g, x_flat)

    return out_flat.reshape(N, 1, D, H, W)


if __name__ == "__main__":
    key = jax.random.PRNGKey(0)
    k_x, k_w = jax.random.split(key)

    # Small shapes consistent with the module: batch=2, channels=4, spatial=16^3.
    N, C, D, H, W = 2, 4, 16, 16, 16
    x = jax.random.normal(k_x, (N, C, D, H, W), dtype=jnp.float32)

    # Deterministic Conv3d(2, 1, 7, padding=3, bias=False) weight init
    # (kaiming-uniform-style bound = 1/sqrt(fan_in), fan_in = 2*7*7*7).
    fan_in = 2 * K * K * K
    bound = 1.0 / (fan_in ** 0.5)
    weight = jax.random.uniform(
        k_w, (1, 2, K, K, K), minval=-bound, maxval=bound, dtype=jnp.float32
    )

    out = spatial_attention_3d(x, weight)
    out = jax.block_until_ready(out)

    # Pure-JAX reference (same semantics as the PyTorch forward).
    avg_ref = jnp.mean(x, axis=1, keepdims=True)
    max_ref = jnp.max(x, axis=1, keepdims=True)
    cat_ref = jnp.concatenate([avg_ref, max_ref], axis=1)
    conv_ref = lax.conv_general_dilated(
        cat_ref, weight,
        window_strides=(1, 1, 1),
        padding=((P, P), (P, P), (P, P)),
        dimension_numbers=("NCDHW", "OIDHW", "NCDHW"),
        precision=lax.Precision.HIGHEST,
    )
    ref = jax.nn.sigmoid(conv_ref)

    assert out.shape == (N, 1, D, H, W), out.shape
    max_err = float(jnp.max(jnp.abs(out - ref)))
    # Tolerance allows for MXU f32 matmul rounding; a real indexing/padding bug
    # would produce O(0.1) errors.
    assert jnp.allclose(out, ref, atol=2e-4, rtol=2e-4), f"max_err={max_err}"
    print("KERNEL_OK")
</pallas_src>

<mosaic_0001>
module attributes {stable_mosaic.version = 11 : i64} {
  func.func @_spatial_attn_kernel(%arg0: i32, %arg1: memref<3584x256xf32, #tpu.memory_space<vmem>>, %arg2: memref<1x4x16x256xf32, #tpu.memory_space<vmem>>, %arg3: memref<1x16x256xf32, #tpu.memory_space<vmem>>, %arg4: memref<16x3584xf32, #tpu.memory_space<vmem>>) attributes {dimension_semantics = [#tpu.dimension_semantics<parallel>], iteration_bounds = array<i64: 2>, scalar_prefetch = 0 : i64, scratch_operands = 1 : i64, tpu.core_type = #tpu.core_type<tc>, window_params = [{pipeline_mode = #tpu.pipeline_mode<synchronous>, transform_indices = @transform_0, window_bounds = array<i64: 3584, 256>}, {transform_indices = @transform_1, window_bounds = array<i64: 1, 4, 16, 256>}, {transform_indices = @transform_2, window_bounds = array<i64: 1, 16, 256>}]} {
    %c0 = arith.constant 0 : index
    %c0_0 = arith.constant 0 : index
    %c0_1 = arith.constant 0 : index
    %c0_2 = arith.constant 0 : index
    %0 = vector.load %arg2[%c0, %c0_0, %c0_1, %c0_2] : memref<1x4x16x256xf32, #tpu.memory_space<vmem>>, vector<1x1x16x256xf32>
    %1 = vector.shape_cast %0 : vector<1x1x16x256xf32> to vector<16x256xf32>
    %c0_3 = arith.constant 0 : index
    %c1 = arith.constant 1 : index
    %c0_4 = arith.constant 0 : index
    %c0_5 = arith.constant 0 : index
    %2 = vector.load %arg2[%c0_3, %c1, %c0_4, %c0_5] : memref<1x4x16x256xf32, #tpu.memory_space<vmem>>, vector<1x1x16x256xf32>
    %3 = vector.shape_cast %2 : vector<1x1x16x256xf32> to vector<16x256xf32>
    %4 = arith.addf %1, %3 : vector<16x256xf32>
    %5 = arith.maximumf %1, %3 : vector<16x256xf32>
    %c0_6 = arith.constant 0 : index
    %c2 = arith.constant 2 : index
    %c0_7 = arith.constant 0 : index
    %c0_8 = arith.constant 0 : index
    %6 = vector.load %arg2[%c0_6, %c2, %c0_7, %c0_8] : memref<1x4x16x256xf32, #tpu.memory_space<vmem>>, vector<1x1x16x256xf32>
    %7 = vector.shape_cast %6 : vector<1x1x16x256xf32> to vector<16x256xf32>
    %8 = arith.addf %4, %7 : vector<16x256xf32>
    %9 = arith.maximumf %5, %7 : vector<16x256xf32>
    %c0_9 = arith.constant 0 : index
    %c3 = arith.constant 3 : index
    %c0_10 = arith.constant 0 : index
    %c0_11 = arith.constant 0 : index
    %10 = vector.load %arg2[%c0_9, %c3, %c0_10, %c0_11] : memref<1x4x16x256xf32, #tpu.memory_space<vmem>>, vector<1x1x16x256xf32>
    %11 = vector.shape_cast %10 : vector<1x1x16x256xf32> to vector<16x256xf32>
    %12 = arith.addf %8, %11 : vector<16x256xf32>
    %13 = arith.maximumf %9, %11 : vector<16x256xf32>
    %cst = arith.constant 2.500000e-01 : f32
    %14 = vector.broadcast %cst : f32 to vector<16x256xf32>
    %15 = arith.mulf %12, %14 : vector<16x256xf32>
    %cst_12 = arith.constant 0.000000e+00 : f32
    %16 = vector.broadcast %cst_12 : f32 to vector<3x256xf32>
    %c0_13 = arith.constant 0 : index
    %c0_14 = arith.constant 0 : index
    %17 = vector.load %arg4[%c0_13, %c0_14] : memref<16x3584xf32, #tpu.memory_space<vmem>>, vector<3x256xf32>
    tpu.vector_store %arg4[%c0_13, %c0_14], %16 {strides = array<i32>} : memref<16x3584xf32, #tpu.memory_space<vmem>>, vector<3x256xf32>,
    %18 = vector.extract_strided_slice %15 {offsets = [0, 0], sizes = [13, 256], strides = [1, 1]} : vector<16x256xf32> to vector<13x256xf32>
    %c3_15 = arith.constant 3 : index
    %c0_16 = arith.constant 0 : index
    %19 = vector.load %arg4[%c3_15, %c0_16] : memref<16x3584xf32, #tpu.memory_space<vmem>>, vector<13x256xf32>
    tpu.vector_store %arg4[%c3_15, %c0_16], %18 {strides = array<i32>} : memref<16x3584xf32, #tpu.memory_space<vmem>>, vector<13x256xf32>,
    %cst_17 = arith.constant 0.000000e+00 : f32
    %20 = vector.broadcast %cst_17 : f32 to vector<2x256xf32>
    %c0_18 = arith.constant 0 : index
    %c256 = arith.constant 256 : index
    %21 = vector.load %arg4[%c0_18, %c256] : memref<16x3584xf32, #tpu.memory_space<vmem>>, vector<2x256xf32>
    tpu.vector_store %arg4[%c0_18, %c256], %20 {strides = array<i32>} : memref<16x3584xf32, #tpu.memory_space<vmem>>, vector<2x256xf32>,
    %22 = vector.extract_strided_slice %15 {offsets = [0, 0], sizes = [14, 256], strides = [1, 1]} : vector<16x256xf32> to vector<14x256xf32>
    %c2_19 = arith.constant 2 : index
    %c256_20 = arith.constant 256 : index
    %23 = vector.load %arg4[%c2_19, %c256_20] : memref<16x3584xf32, #tpu.memory_space<vmem>>, vector<14x256xf32>
    tpu.vector_store %arg4[%c2_19, %c256_20], %22 {strides = array<i32>} : memref<16x3584xf32, #tpu.memory_space<vmem>>, vector<14x256xf32>,
    %cst_21 = arith.constant 0.000000e+00 : f32
    %24 = vector.broadcast %cst_21 : f32 to vector<1x256xf32>
    %c0_22 = arith.constant 0 : index
    %c512 = arith.constant 512 : index
    %25 = vector.load %arg4[%c0_22, %c512] : memref<16x3584xf32, #tpu.memory_space<vmem>>, vector<1x256xf32>
    tpu.vector_store %arg4[%c0_22, %c512], %24 {strides = array<i32>} : memref<16x3584xf32, #tpu.memory_space<vmem>>, vector<1x256xf32>,
    %26 = vector.extract_strided_slice %15 {offsets = [0, 0], sizes = [15, 256], strides = [1, 1]} : vector<16x256xf32> to vector<15x256xf32>
    %c1_23 = arith.constant 1 : index
    %c512_24 = arith.constant 512 : index
    %27 = vector.load %arg4[%c1_23, %c512_24] : memref<16x3584xf32, #tpu.memory_space<vmem>>, vector<15x256xf32>
    tpu.vector_store %arg4[%c1_23, %c512_24], %26 {strides = array<i32>} : memref<16x3584xf32, #tpu.memory_space<vmem>>, vector<15x256xf32>,
    %c0_25 = arith.constant 0 : index
    %c768 = arith.constant 768 : index
    %28 = vector.load %arg4[%c0_25, %c768] : memref<16x3584xf32, #tpu.memory_space<vmem>>, vector<16x256xf32>
    tpu.vector_store %arg4[%c0_25, %c768], %15 {strides = array<i32>} : memref<16x3584xf32, #tpu.memory_space<vmem>>, vector<16x256xf32>,
    %cst_26 = arith.constant 0.000000e+00 : f32
    %29 = vector.broadcast %cst_26 : f32 to vector<1x256xf32>
    %c15 = arith.constant 15 : index
    %c1024 = arith.constant 1024 : index
    %30 = vector.load %arg4[%c15, %c1024] : memref<16x3584xf32, #tpu.memory_space<vmem>>, vector<1x256xf32>
    tpu.vector_store %arg4[%c15, %c1024], %29 {strides = array<i32>} : memref<16x3584xf32, #tpu.memory_space<vmem>>, vector<1x256xf32>,
    %31 = vector.extract_strided_slice %15 {offsets = [1, 0], sizes = [15, 256], strides = [1, 1]} : vector<16x256xf32> to vector<15x256xf32>
    %c0_27 = arith.constant 0 : index
    %c1024_28 = arith.constant 1024 : index
    %32 = vector.load %arg4[%c0_27, %c1024_28] : memref<16x3584xf32, #tpu.memory_space<vmem>>, vector<15x256xf32>
    tpu.vector_store %arg4[%c0_27, %c1024_28], %31 {strides = array<i32>} : memref<16x3584xf32, #tpu.memory_space<vmem>>, vector<15x256xf32>,
    %cst_29 = arith.constant 0.000000e+00 : f32
    %33 = vector.broadcast %cst_29 : f32 to vector<2x256xf32>
    %c14 = arith.constant 14 : index
    %c1280 = arith.constant 1280 : index
    %34 = vector.load %arg4[%c14, %c1280] : memref<16x3584xf32, #tpu.memory_space<vmem>>, vector<2x256xf32>
    tpu.vector_store %arg4[%c14, %c1280], %33 {strides = array<i32>} : memref<16x3584xf32, #tpu.memory_space<vmem>>, vector<2x256xf32>,
    %35 = vector.extract_strided_slice %15 {offsets = [2, 0], sizes = [14, 256], strides = [1, 1]} : vector<16x256xf32> to vector<14x256xf32>
    %c0_30 = arith.constant 0 : index
    %c1280_31 = arith.constant 1280 : index
    %36 = vector.load %arg4[%c0_30, %c1280_31] : memref<16x3584xf32, #tpu.memory_space<vmem>>, vector<14x256xf32>
    tpu.vector_store %arg4[%c0_30, %c1280_31], %35 {strides = array<i32>} : memref<16x3584xf32, #tpu.memory_space<vmem>>, vector<14x256xf32>,
    %cst_32 = arith.constant 0.000000e+00 : f32
    %37 = vector.broadcast %cst_32 : f32 to vector<3x256xf32>
    %c13 = arith.constant 13 : index
    %c1536 = arith.constant 1536 : index
    %38 = vector.load %arg4[%c13, %c1536] : memref<16x3584xf32, #tpu.memory_space<vmem>>, vector<3x256xf32>
    tpu.vector_store %arg4[%c13, %c1536], %37 {strides = array<i32>} : memref<16x3584xf32, #tpu.memory_space<vmem>>, vector<3x256xf32>,
    %39 = vector.extract_strided_slice %15 {offsets = [3, 0], sizes = [13, 256], strides = [1, 1]} : vector<16x256xf32> to vector<13x256xf32>
    %c0_33 = arith.constant 0 : index
    %c1536_34 = arith.constant 1536 : index
    %40 = vector.load %arg4[%c0_33, %c1536_34] : memref<16x3584xf32, #tpu.memory_space<vmem>>, vector<13x256xf32>
    tpu.vector_store %arg4[%c0_33, %c1536_34], %39 {strides = array<i32>} : memref<16x3584xf32, #tpu.memory_space<vmem>>, vector<13x256xf32>,
    %cst_35 = arith.constant 0.000000e+00 : f32
    %41 = vector.broadcast %cst_35 : f32 to vector<3x256xf32>
    %c0_36 = arith.constant 0 : index
    %c1792 = arith.constant 1792 : index
    %42 = vector.load %arg4[%c0_36, %c1792] : memref<16x3584xf32, #tpu.memory_space<vmem>>, vector<3x256xf32>
    tpu.vector_store %arg4[%c0_36, %c1792], %41 {strides = array<i32>} : memref<16x3584xf32, #tpu.memory_space<vmem>>, vector<3x256xf32>,
    %43 = vector.extract_strided_slice %13 {offsets = [0, 0], sizes = [13, 256], strides = [1, 1]} : vector<16x256xf32> to vector<13x256xf32>
    %c3_37 = arith.constant 3 : index
    %c1792_38 = arith.constant 1792 : index
    %44 = vector.load %arg4[%c3_37, %c1792_38] : memref<16x3584xf32, #tpu.memory_space<vmem>>, vector<13x256xf32>
    tpu.vector_store %arg4[%c3_37, %c1792_38], %43 {strides = array<i32>} : memref<16x3584xf32, #tpu.memory_space<vmem>>, vector<13x256xf32>,
    %cst_39 = arith.constant 0.000000e+00 : f32
    %45 = vector.broadcast %cst_39 : f32 to vector<2x256xf32>
    %c0_40 = arith.constant 0 : index
    %c2048 = arith.constant 2048 : index
    %46 = vector.load %arg4[%c0_40, %c2048] : memref<16x3584xf32, #tpu.memory_space<vmem>>, vector<2x256xf32>
    tpu.vector_store %arg4[%c0_40, %c2048], %45 {strides = array<i32>} : memref<16x3584xf32, #tpu.memory_space<vmem>>, vector<2x256xf32>,
    %47 = vector.extract_strided_slice %13 {offsets = [0, 0], sizes = [14, 256], strides = [1, 1]} : vector<16x256xf32> to vector<14x256xf32>
    %c2_41 = arith.constant 2 : index
    %c2048_42 = arith.constant 2048 : index
    %48 = vector.load %arg4[%c2_41, %c2048_42] : memref<16x3584xf32, #tpu.memory_space<vmem>>, vector<14x256xf32>
    tpu.vector_store %arg4[%c2_41, %c2048_42], %47 {strides = array<i32>} : memref<16x3584xf32, #tpu.memory_space<vmem>>, vector<14x256xf32>,
    %cst_43 = arith.constant 0.000000e+00 : f32
    %49 = vector.broadcast %cst_43 : f32 to vector<1x256xf32>
    %c0_44 = arith.constant 0 : index
    %c2304 = arith.constant 2304 : index
    %50 = vector.load %arg4[%c0_44, %c2304] : memref<16x3584xf32, #tpu.memory_space<vmem>>, vector<1x256xf32>
    tpu.vector_store %arg4[%c0_44, %c2304], %49 {strides = array<i32>} : memref<16x3584xf32, #tpu.memory_space<vmem>>, vector<1x256xf32>,
    %51 = vector.extract_strided_slice %13 {offsets = [0, 0], sizes = [15, 256], strides = [1, 1]} : vector<16x256xf32> to vector<15x256xf32>
    %c1_45 = arith.constant 1 : index
    %c2304_46 = arith.constant 2304 : index
    %52 = vector.load %arg4[%c1_45, %c2304_46] : memref<16x3584xf32, #tpu.memory_space<vmem>>, vector<15x256xf32>
    tpu.vector_store %arg4[%c1_45, %c2304_46], %51 {strides = array<i32>} : memref<16x3584xf32, #tpu.memory_space<vmem>>, vector<15x256xf32>,
    %c0_47 = arith.constant 0 : index
    %c2560 = arith.constant 2560 : index
    %53 = vector.load %arg4[%c0_47, %c2560] : memref<16x3584xf32, #tpu.memory_space<vmem>>, vector<16x256xf32>
    tpu.vector_store %arg4[%c0_47, %c2560], %13 {strides = array<i32>} : memref<16x3584xf32, #tpu.memory_space<vmem>>, vector<16x256xf32>,
    %cst_48 = arith.constant 0.000000e+00 : f32
    %54 = vector.broadcast %cst_48 : f32 to vector<1x256xf32>
    %c15_49 = arith.constant 15 : index
    %c2816 = arith.constant 2816 : index
    %55 = vector.load %arg4[%c15_49, %c2816] : memref<16x3584xf32, #tpu.memory_space<vmem>>, vector<1x256xf32>
    tpu.vector_store %arg4[%c15_49, %c2816], %54 {strides = array<i32>} : memref<16x3584xf32, #tpu.memory_space<vmem>>, vector<1x256xf32>,
    %56 = vector.extract_strided_slice %13 {offsets = [1, 0], sizes = [15, 256], strides = [1, 1]} : vector<16x256xf32> to vector<15x256xf32>
    %c0_50 = arith.constant 0 : index
    %c2816_51 = arith.constant 2816 : index
    %57 = vector.load %arg4[%c0_50, %c2816_51] : memref<16x3584xf32, #tpu.memory_space<vmem>>, vector<15x256xf32>
    tpu.vector_store %arg4[%c0_50, %c2816_51], %56 {strides = array<i32>} : memref<16x3584xf32, #tpu.memory_space<vmem>>, vector<15x256xf32>,
    %cst_52 = arith.constant 0.000000e+00 : f32
    %58 = vector.broadcast %cst_52 : f32 to vector<2x256xf32>
    %c14_53 = arith.constant 14 : index
    %c3072 = arith.constant 3072 : index
    %59 = vector.load %arg4[%c14_53, %c3072] : memref<16x3584xf32, #tpu.memory_space<vmem>>, vector<2x256xf32>
    tpu.vector_store %arg4[%c14_53, %c3072], %58 {strides = array<i32>} : memref<16x3584xf32, #tpu.memory_space<vmem>>, vector<2x256xf32>,
    %60 = vector.extract_strided_slice %13 {offsets = [2, 0], sizes = [14, 256], strides = [1, 1]} : vector<16x256xf32> to vector<14x256xf32>
    %c0_54 = arith.constant 0 : index
    %c3072_55 = arith.constant 3072 : index
    %61 = vector.load %arg4[%c0_54, %c3072_55] : memref<16x3584xf32, #tpu.memory_space<vmem>>, vector<14x256xf32>
    tpu.vector_store %arg4[%c0_54, %c3072_55], %60 {strides = array<i32>} : memref<16x3584xf32, #tpu.memory_space<vmem>>, vector<14x256xf32>,
    %cst_56 = arith.constant 0.000000e+00 : f32
    %62 = vector.broadcast %cst_56 : f32 to vector<3x256xf32>
    %c13_57 = arith.constant 13 : index
    %c3328 = arith.constant 3328 : index
    %63 = vector.load %arg4[%c13_57, %c3328] : memref<16x3584xf32, #tpu.memory_space<vmem>>, vector<3x256xf32>
    tpu.vector_store %arg4[%c13_57, %c3328], %62 {strides = array<i32>} : memref<16x3584xf32, #tpu.memory_space<vmem>>, vector<3x256xf32>,
    %64 = vector.extract_strided_slice %13 {offsets = [3, 0], sizes = [13, 256], strides = [1, 1]} : vector<16x256xf32> to vector<13x256xf32>
    %c0_58 = arith.constant 0 : index
    %c3328_59 = arith.constant 3328 : index
    %65 = vector.load %arg4[%c0_58, %c3328_59] : memref<16x3584xf32, #tpu.memory_space<vmem>>, vector<13x256xf32>
    tpu.vector_store %arg4[%c0_58, %c3328_59], %64 {strides = array<i32>} : memref<16x3584xf32, #tpu.memory_space<vmem>>, vector<13x256xf32>,
    %c0_60 = arith.constant 0 : index
    %c0_61 = arith.constant 0 : index
    %66 = vector.load %arg4[%c0_60, %c0_61] : memref<16x3584xf32, #tpu.memory_space<vmem>>, vector<16x3584xf32>
    %c0_62 = arith.constant 0 : index
    %c0_63 = arith.constant 0 : index
    %67 = vector.load %arg1[%c0_62, %c0_63] : memref<3584x256xf32, #tpu.memory_space<vmem>>, vector<3584x256xf32>
    %cst_64 = arith.constant dense<0.000000e+00> : vector<16x256xf32>
    %68 = tpu.matmul %66, %67, %cst_64 {dimension_numbers = #tpu.dot_dimension_numbers<[1], [0], [0], [1], [0, 0, 1, 1], [], []>} : vector<16x3584xf32>, vector<3584x256xf32>, vector<16x256xf32> -> vector<16x256xf32>
    %69 = arith.negf %68 : vector<16x256xf32>
    %70 = math.exp %69 : vector<16x256xf32>
    %cst_65 = arith.constant 1.000000e+00 : f32
    %71 = vector.broadcast %cst_65 : f32 to vector<16x256xf32>
    %72 = arith.addf %71, %70 : vector<16x256xf32>
    %73 = arith.divf %71, %72 : vector<16x256xf32>
    %c0_66 = arith.constant 0 : index
    %c0_67 = arith.constant 0 : index
    %c0_68 = arith.constant 0 : index
    %74 = vector.load %arg3[%c0_66, %c0_67, %c0_68] : memref<1x16x256xf32, #tpu.memory_space<vmem>>, vector<1x16x256xf32>
    %75 = vector.shape_cast %74 : vector<1x16x256xf32> to vector<16x256xf32>
    %76 = vector.shape_cast %73 : vector<16x256xf32> to vector<1x16x256xf32>
    tpu.vector_store %arg3[%c0_66, %c0_67, %c0_68], %76 {strides = array<i32>} : memref<1x16x256xf32, #tpu.memory_space<vmem>>, vector<1x16x256xf32>,
    return
  }
  func.func @transform_0(%arg0: i32) -> (i32, i32) {
    %c0_i32 = arith.constant 0 : i32
    %c0_i32_0 = arith.constant 0 : i32
    %c0_i32_1 = arith.constant 0 : i32
    return %c0_i32, %c0_i32_0 : i32, i32
  }
  func.func @transform_1(%arg0: i32) -> (i32, i32, i32, i32) {
    %c0_i32 = arith.constant 0 : i32
    %c0_i32_0 = arith.constant 0 : i32
    %c0_i32_1 = arith.constant 0 : i32
    %c0_i32_2 = arith.constant 0 : i32
    return %arg0, %c0_i32, %c0_i32_0, %c0_i32_1 : i32, i32, i32, i32
  }
  func.func @transform_2(%arg0: i32) -> (i32, i32, i32) {
    %c0_i32 = arith.constant 0 : i32
    %c0_i32_0 = arith.constant 0 : i32
    %c0_i32_1 = arith.constant 0 : i32
    return %arg0, %c0_i32, %c0_i32_0 : i32, i32, i32
  }
}

</mosaic_0001>

<llo_original>
// kernel: tpu_custom_call.1
$region0: #{tpu_custom_call.1}
  #allocation0 [shape = 'u32[]', space=smem, size = 0x4, offset = 0x4, fixed_abs, tag = 'smem constant byte address 0x4 - core index']
  #allocation1 [shape = 'u32[144,128]{1,0:T(1,128)}', space=vmem, size = 0x12000, scoped, tag = 'internal scratch']
  #allocation2 [shape = 'f32[16,3584]{1,0:T(8,128)}', space=vmem, size = 0x38000, scoped, tag = 'scratch operand']
  %s0 = inlined_call_operand.hbm [shape: f32[3584,256], index: 0, kind: input, shape index: {}]
  %s1 = inlined_call_operand.hbm [shape: f32[2,4,16,256], index: 1, kind: input, shape index: {}]
  %s2 = inlined_call_operand.hbm [shape: f32[2,16,256], index: 2, kind: output, shape index: {}]
  %s3 = sld [smem:[#allocation0]]
  $region49: #{tpu_custom_call.1} parent=0
    _
  %s5 = ssub.s32 1, %s3
  %s6 = scalar_select 0, %s5, %s3
  $region1: #{tpu_custom_call.1} parent=0
    #allocation3 [shape = 'u8[3670016]{0}', space=vmem, size = 0x380000, scoped, tag = 'input window, operand 0, single buffered']
    #allocation4 [shape = 's32[2]{0}', space=sflag, size = 0x8, scoped, tag = 'scoped memory for tpu_custom_call.1']
    #allocation5 [shape = 's32[2]{0}', space=sflag, size = 0x8, scoped, tag = 'scoped memory for tpu_custom_call.1']
    #allocation6 [shape = 'u8[131072]{0}', space=vmem, size = 0x20000, scoped, tag = 'input window, operand 1']
    #allocation7 [shape = 's32[2]{0}', space=sflag, size = 0x8, scoped, tag = 'scoped memory for tpu_custom_call.1']
    #allocation8 [shape = 'u8[32768]{0}', space=vmem, size = 0x8000, scoped, tag = 'output window, operand 0']
    %7 = vsyncpa [#allocation4], 0
    %8 = vsyncpa [#allocation7], 0
    %s9 = scalar_lea.sflag [#allocation7], 1
    %10 = vsyncpa %s9, 0
    %11 = vsyncpa [#allocation5], 0
    %s12 = scalar_lea.sflag [#allocation5], 1
    %13 = vsyncpa %s12, 0
    loop: start=0, step=1, limit=4
    $region2: #{tpu_custom_call.1} parent=1 // loop_pre_header
      _
    $region3: #{tpu_custom_call.1} parent=1 // loop_header
      %s15 = sphi 0, %s19
      %p16 = scmp.ge.s32.totalorder %s15, 4
      %s23 = sphi 0, %s23
      %s25 = sphi 0, %s23
      %s26 = sphi 0, %s25
      %s40 = sphi 0, %s26
      %s46 = sphi 0, %s48
      %s49 = sphi 0, %s46
      %s50 = sphi 0, %s49
      %s66 = sphi 0, %s50
      %s72 = sphi 0, %s74
      %s75 = sphi 0, %s72
      %s76 = sphi 0, %s75
      %s92 = sphi 0, %s76
    $region4: #{tpu_custom_call.1} parent=1 // loop_header_branch
      %18 = sbr.rel (%p16) target = $region8
    $region5: #{tpu_custom_call.1} parent=1 // loop_body
      %s20 = ssub.s32 %s15, 1
      %s21 = ssub.s32 %s15, 2
      %s22 = sadd.s32 %s15, 1
      %s24 = sadd.s32 %s23, 1
      %p27 = scmp.eq.s32.totalorder %s15, 1
      %p28 = scmp.ne.s32.totalorder %s23, %s25
      %p29 = scmp.eq.s32.totalorder %s15, 0
      %p30 = por %p28, %p29
      %p31 = scmp.ne.s32.totalorder %s23, %s25
      %p32 = scmp.eq.s32.totalorder %s20, 1
      %p33 = por %p31, %p32
      %p34 = scmp.ne.s32.totalorder %s25, %s26
      %p35 = scmp.eq.s32.totalorder %s20, 0
      %p36 = por %p34, %p35
      %p37 = scmp.ne.s32.totalorder %s25, %s26
      %p38 = scmp.eq.s32.totalorder %s21, 1
      %p39 = por %p37, %p38
      %p41 = scmp.ne.s32.totalorder %s26, %s40
      %p42 = scmp.eq.s32.totalorder %s21, 0
      %p43 = por %p41, %p42
      %s44 = ssub.s32 %s15, %s22
      %p45 = scmp.eq.s32.totalorder %s44, 0
      %s47 = sadd.s32 %s46, 1
      %s48 = scalar_select %p45, %s46, %s47
      %p51 = pneg %p45
      %p52 = scmp.eq.s32.totalorder %s15, 1
      %p53 = por %p51, %p52
      %p54 = scmp.ne.s32.totalorder %s46, %s49
      %p55 = scmp.eq.s32.totalorder %s15, 0
      %p56 = por %p54, %p55
      %p57 = scmp.ne.s32.totalorder %s46, %s49
      %p58 = scmp.eq.s32.totalorder %s20, 1
      %p59 = por %p57, %p58
      %p60 = scmp.ne.s32.totalorder %s49, %s50
      %p61 = scmp.eq.s32.totalorder %s20, 0
      %p62 = por %p60, %p61
      %p63 = scmp.ne.s32.totalorder %s49, %s50
      %p64 = scmp.eq.s32.totalorder %s21, 1
      %p65 = por %p63, %p64
      %p67 = scmp.ne.s32.totalorder %s50, %s66
      %p68 = scmp.eq.s32.totalorder %s21, 0
      %p69 = por %p67, %p68
      %s70 = ssub.s32 %s15, %s22
      %p71 = scmp.eq.s32.totalorder %s70, 0
      %s73 = sadd.s32 %s72, 1
      %s74 = scalar_select %p71, %s72, %s73
      %p77 = pneg %p71
      %p78 = scmp.eq.s32.totalorder %s15, 1
      %p79 = por %p77, %p78
      %p80 = scmp.ne.s32.totalorder %s72, %s75
      %p81 = scmp.eq.s32.totalorder %s15, 0
      %p82 = por %p80, %p81
      %p83 = scmp.ne.s32.totalorder %s72, %s75
      %p84 = scmp.eq.s32.totalorder %s20, 1
      %p85 = por %p83, %p84
      %p86 = scmp.ne.s32.totalorder %s75, %s76
      %p87 = scmp.eq.s32.totalorder %s20, 0
      %p88 = por %p86, %p87
      %p89 = scmp.ne.s32.totalorder %s75, %s76
      %p90 = scmp.eq.s32.totalorder %s21, 1
      %p91 = por %p89, %p90
      %p93 = scmp.ne.s32.totalorder %s76, %s92
      %p94 = scmp.eq.s32.totalorder %s21, 0
      %p95 = por %p93, %p94
      %p96 = scmp.le.s32.totalorder 1, %s15
      %p97 = scmp.lt.s32.totalorder %s15, 3
      %p98 = pnand %p96, %p97
      %p99 = pneg %p98
      // Predicated region
      $region9: #{tpu_custom_call.1} parent=5 // pred_check
        _
      $region10: #{tpu_custom_call.1} parent=5 // pred_check_branch
        %101 = sbr.rel (%p98) target = $region12
      $region11: #{tpu_custom_call.1} parent=5 // pred_region
        %s102 = ssub.s32 %s15, 1
        // Predicated region
        $region13: #{tpu_custom_call.1} parent=11 // pred_check
          %p103 = pneg %p36
        $region14: #{tpu_custom_call.1} parent=11 // pred_check_branch
          %105 = sbr.rel (%p103) target = $region16
        $region15: #{tpu_custom_call.1} parent=11 // pred_region
          %s107 = ssub.s32 114688, 114688
          %108 = vsyncadd [#allocation4], %s107
          %s109 = sshll.u32 [#allocation3], 4
          %s110 = int_to_ptr.vmem [resolvable:$true] %s109
          %115 = dma.hbm_to_vmem [thread:$0]  %s0, 114688, %s110, [#allocation4], 256, 256, 16
        $region16: #{tpu_custom_call.1} parent=11 // pred_fallthru
          _
      $region12: #{tpu_custom_call.1} parent=5 // pred_fallthru
        _
      %p116 = scmp.lt.s32.totalorder %s15, 2
      // Predicated region
      $region17: #{tpu_custom_call.1} parent=5 // pred_check
        %p117 = pneg %p116
      $region18: #{tpu_custom_call.1} parent=5 // pred_check_branch
        %119 = sbr.rel (%p117) target = $region20
      $region19: #{tpu_custom_call.1} parent=5 // pred_region
        // Predicated region
        $region21: #{tpu_custom_call.1} parent=19 // pred_check
          %p120 = pneg %p56
        $region22: #{tpu_custom_call.1} parent=19 // pred_check_branch
          %122 = sbr.rel (%p120) target = $region24
        $region23: #{tpu_custom_call.1} parent=19 // pred_region
          %s123 = sand.u32 %s46, 1
          %s124 = scalar_lea.sflag [#allocation7], %s123
          %s125 = sand.u32 %s46, 1
          %s126 = smul.addr %s125, 128
          %s127 = scalar_lea.vmem [#allocation6], %s126
          %s129 = ssub.s32 2048, 2048
          %130 = vsyncadd %s124, %s129
          %s131 = smul.addr %s15, 16
          %s132 = smul.addr %s131, 128
          %s133 = scalar_lea.hbm %s1, %s132
          %s134 = sshll.u32 %s127, 4
          %s135 = int_to_ptr.vmem [resolvable:$true] %s134
          %140 = dma.hbm_to_vmem [thread:$0]  %s133, 2048, %s135, %s124, 256, 256, 16
        $region24: #{tpu_custom_call.1} parent=19 // pred_fallthru
          _
      $region20: #{tpu_custom_call.1} parent=5 // pred_fallthru
        _
      %p141 = scmp.le.s32.totalorder 1, %s15
      %p142 = scmp.lt.s32.totalorder %s15, 3
      %p143 = pnand %p141, %p142
      %p144 = pneg %p143
      // Predicated region
      $region25: #{tpu_custom_call.1} parent=5 // pred_check
        _
      $region26: #{tpu_custom_call.1} parent=5 // pred_check_branch
        %146 = sbr.rel (%p143) target = $region28
      $region27: #{tpu_custom_call.1} parent=5 // pred_region
        %s147 = ssub.s32 %s15, 1
        // Predicated region
        $region29: #{tpu_custom_call.1} parent=27 // pred_check
          %p148 = pneg %p36
        $region30: #{tpu_custom_call.1} parent=27 // pred_check_branch
          %150 = sbr.rel (%p148) target = $region32
        $region31: #{tpu_custom_call.1} parent=27 // pred_region
          %151 = dma.done [#allocation4], 114688
        $region32: #{tpu_custom_call.1} parent=27 // pred_fallthru
          _
        %s152 = sand.u32 %s49, 1
        %s153 = scalar_lea.sflag [#allocation7], %s152
        %s154 = sand.u32 %s49, 1
        %s155 = smul.addr %s154, 128
        %s156 = scalar_lea.vmem [#allocation6], %s155
        // Predicated region
        $region33: #{tpu_custom_call.1} parent=27 // pred_check
          %p157 = pneg %p62
        $region34: #{tpu_custom_call.1} parent=27 // pred_check_branch
          %159 = sbr.rel (%p157) target = $region36
        $region35: #{tpu_custom_call.1} parent=27 // pred_region
          %160 = dma.done %s153, 2048
        $region36: #{tpu_custom_call.1} parent=27 // pred_fallthru
          _
        %p161 = pneg %p36
        %p162 = pneg %p33
        %s163 = sand.u32 %s49, 1
        %s164 = scalar_lea.sflag [#allocation7], %s163
        %s165 = sand.u32 %s49, 1
        %s166 = smul.addr %s165, 128
        %s167 = scalar_lea.vmem [#allocation6], %s166
        %p168 = pneg %p62
        %p169 = pneg %p59
        %p170 = pneg %p88
        %p171 = pneg %p85
        %s172 = sand.u32 %s75, 1
        %s173 = scalar_lea.sflag [#allocation5], %s172
        %s174 = sand.u32 %s75, 1
        %s175 = smul.addr %s174, 32
        %s176 = scalar_lea.vmem [#allocation8], %s175
        %v177 = vld [vmem:[%s156] sm:$0xff]
        %v178 = vld [vmem:[%s156 + $0x8] sm:$0xff]
        %v179 = vld [vmem:[%s156 + $0x10] sm:$0xff]
        %v180 = vld [vmem:[%s156 + $0x18] sm:$0xff]
        %s181 = scalar_lea.vmem %s156, 32 [#allocation6]
        %v182 = vld [vmem:[%s181] sm:$0xff]
        %v183 = vld [vmem:[%s181 + $0x8] sm:$0xff]
        %v184 = vld [vmem:[%s181 + $0x10] sm:$0xff]
        %v185 = vld [vmem:[%s181 + $0x18] sm:$0xff]
        %v186 = vadd.f32 %v177, %v182
        %v187 = vadd.f32 %v178, %v183
        %v188 = vadd.f32 %v179, %v184
        %v189 = vadd.f32 %v180, %v185
        %v190 = vmax.f32 %v177, %v182
        %v191 = vmax.f32 %v178, %v183
        %v192 = vmax.f32 %v179, %v184
        %v193 = vmax.f32 %v180, %v185
        %s194 = scalar_lea.vmem %s156, 64 [#allocation6]
        %v195 = vld [vmem:[%s194] sm:$0xff]
        %v196 = vld [vmem:[%s194 + $0x8] sm:$0xff]
        %v197 = vld [vmem:[%s194 + $0x10] sm:$0xff]
        %v198 = vld [vmem:[%s194 + $0x18] sm:$0xff]
        %v199 = vadd.f32 %v186, %v195
        %v200 = vadd.f32 %v187, %v196
        %v201 = vadd.f32 %v188, %v197
        %v202 = vadd.f32 %v189, %v198
        %v203 = vmax.f32 %v190, %v195
        %v204 = vmax.f32 %v191, %v196
        %v205 = vmax.f32 %v192, %v197
        %v206 = vmax.f32 %v193, %v198
        %s207 = scalar_lea.vmem %s156, 96 [#allocation6]
        %v208 = vld [vmem:[%s207] sm:$0xff]
        %v209 = vld [vmem:[%s207 + $0x8] sm:$0xff]
        %v210 = vld [vmem:[%s207 + $0x10] sm:$0xff]
        %v211 = vld [vmem:[%s207 + $0x18] sm:$0xff]
        %v212 = vadd.f32 %v199, %v208
        %v213 = vadd.f32 %v200, %v209
        %v214 = vadd.f32 %v201, %v210
        %v215 = vadd.f32 %v202, %v211
        %v216 = vmax.f32 %v203, %v208
        %v217 = vmax.f32 %v204, %v209
        %v218 = vmax.f32 %v205, %v210
        %v219 = vmax.f32 %v206, %v211
        %v220 = vmul.f32 %v212, 0.25
        %v221 = vmul.f32 %v213, 0.25
        %v222 = vmul.f32 %v214, 0.25
        %v223 = vmul.f32 %v215, 0.25
        %224 = vst [vmem:[#allocation2] sm:$0x7] 0.0
        %225 = vst [vmem:[#allocation2 + $0x8] sm:$0x7] 0.0
        %vm230 = vcmask 1042432
        %v231 = vrot.slane %v220, 5
        %v232 = vrot.slane %v221, 5
        %v233 = vrot.slane %v222, 5
        %v234 = vsel %vm230, %v231, %v233
        %v235 = vrot.slane %v223, 5
        %v236 = vsel %vm230, %v232, %v235
        %241 = vst [vmem:[#allocation2] sm:$0xf8] %v231
        %242 = vst [vmem:[#allocation2 + $0x8] sm:$0xf8] %v232
        %243 = vst [vmem:[#allocation2 + $0xe0] sm:$0xff] %v234
        %244 = vst [vmem:[#allocation2 + $0xe8] sm:$0xff] %v236
        %245 = vst [vmem:[#allocation2 + $0x10] sm:$0x3] 0.0
        %246 = vst [vmem:[#allocation2 + $0x18] sm:$0x3] 0.0
        %vm247 = vcmask 1041408
        %v248 = vrot.slane %v220, 6
        %v249 = vrot.slane %v221, 6
        %v250 = vrot.slane %v222, 6
        %v251 = vsel %vm247, %v248, %v250
        %v252 = vrot.slane %v223, 6
        %v253 = vsel %vm247, %v249, %v252
        %258 = vst [vmem:[#allocation2 + $0x10] sm:$0xfc] %v248
        %259 = vst [vmem:[#allocation2 + $0x18] sm:$0xfc] %v249
        %260 = vst [vmem:[#allocation2 + $0xf0] sm:$0xff] %v251
        %261 = vst [vmem:[#allocation2 + $0xf8] sm:$0xff] %v253
        %v262 = vlaneseq
        %vm263 = vcmp.ge.s32.totalorder %v262, 0
        %vm264 = vcmp.lt.s32.totalorder %v262, 256
        %vm265 = vmand %vm263, %vm264
        %s266 = scalar_lea.vmem [#allocation2], 32
        %267 = vst.msk [vmem:[%s266] ss:$8 sm:$0x3] %vm265, 0.0
        %268 = vst.msk [vmem:[%s266] ss:$8 sm:$0x0] %vm265, 0.0
        %vm269 = vcmask 1040384
        %v270 = vrot.slane %v220, 7
        %v271 = vrot.slane %v221, 7
        %v272 = vrot.slane %v222, 7
        %v273 = vsel %vm269, %v270, %v272
        %v274 = vrot.slane %v223, 7
        %v275 = vsel %vm269, %v271, %v274
        %280 = vst [vmem:[#allocation2 + $0x20] sm:$0xfe] %v270
        %281 = vst [vmem:[#allocation2 + $0x28] sm:$0xfe] %v271
        %282 = vst [vmem:[#allocation2 + $0x100] sm:$0xff] %v273
        %283 = vst [vmem:[#allocation2 + $0x108] sm:$0xff] %v275
        %284 = vst [vmem:[#allocation2 + $0x30] sm:$0xff] %v220
        %285 = vst [vmem:[#allocation2 + $0x38] sm:$0xff] %v221
        %286 = vst [vmem:[#allocation2 + $0x110] sm:$0xff] %v222
        %287 = vst [vmem:[#allocation2 + $0x118] sm:$0xff] %v223
        %s288 = scalar_lea.vmem [#allocation2], 295
        %289 = vst.msk [vmem:[%s288] ss:$8 sm:$0x3] %vm265, 0.0
        %290 = vst.msk [vmem:[%s288] ss:$8 sm:$0x0] %vm265, 0.0
        %vm291 = vcmask 1046528
        %v292 = vrot.slane %v220, 1
        %v293 = vrot.slane %v222, 1
        %v294 = vsel %vm291, %v292, %v293
        %v295 = vrot.slane %v221, 1
        %v296 = vrot.slane %v223, 1
        %v297 = vsel %vm291, %v295, %v296
        %302 = vst [vmem:[#allocation2 + $0x40] sm:$0xff] %v294
        %303 = vst [vmem:[#allocation2 + $0x48] sm:$0xff] %v297
        %304 = vst [vmem:[#allocation2 + $0x120] sm:$0x7f] %v293
        %305 = vst [vmem:[#allocation2 + $0x128] sm:$0x7f] %v296
        %306 = vst [vmem:[#allocation2 + $0x130] sm:$0xc0] 0.0
        %307 = vst [vmem:[#allocation2 + $0x138] sm:$0xc0] 0.0
        %vm308 = vcmask 1045504
        %v309 = vrot.slane %v220, 2
        %v310 = vrot.slane %v222, 2
        %v311 = vsel %vm308, %v309, %v310
        %v312 = vrot.slane %v221, 2
        %v313 = vrot.slane %v223, 2
        %v314 = vsel %vm308, %v312, %v313
        %319 = vst [vmem:[#allocation2 + $0x50] sm:$0xff] %v311
        %320 = vst [vmem:[#allocation2 + $0x58] sm:$0xff] %v314
        %321 = vst [vmem:[#allocation2 + $0x130] sm:$0x3f] %v310
        %322 = vst [vmem:[#allocation2 + $0x138] sm:$0x3f] %v313
        %323 = vst [vmem:[#allocation2 + $0x140] sm:$0xe0] 0.0
        %324 = vst [vmem:[#allocation2 + $0x148] sm:$0xe0] 0.0
        %vm325 = vcmask 1044480
        %v326 = vrot.slane %v220, 3
        %v327 = vrot.slane %v222, 3
        %v328 = vsel %vm325, %v326, %v327
        %v329 = vrot.slane %v221, 3
        %v330 = vrot.slane %v223, 3
        %v331 = vsel %vm325, %v329, %v330
        %336 = vst [vmem:[#allocation2 + $0x60] sm:$0xff] %v328
        %337 = vst [vmem:[#allocation2 + $0x68] sm:$0xff] %v331
        %338 = vst [vmem:[#allocation2 + $0x140] sm:$0x1f] %v327
        %339 = vst [vmem:[#allocation2 + $0x148] sm:$0x1f] %v330
        %340 = vst [vmem:[#allocation2 + $0x70] sm:$0x7] 0.0
        %341 = vst [vmem:[#allocation2 + $0x78] sm:$0x7] 0.0
        %v346 = vrot.slane %v216, 5
        %v347 = vrot.slane %v217, 5
        %v348 = vrot.slane %v218, 5
        %v349 = vsel %vm230, %v346, %v348
        %v350 = vrot.slane %v219, 5
        %v351 = vsel %vm230, %v347, %v350
        %356 = vst [vmem:[#allocation2 + $0x70] sm:$0xf8] %v346
        %357 = vst [vmem:[#allocation2 + $0x78] sm:$0xf8] %v347
        %358 = vst [vmem:[#allocation2 + $0x150] sm:$0xff] %v349
        %359 = vst [vmem:[#allocation2 + $0x158] sm:$0xff] %v351
        %360 = vst [vmem:[#allocation2 + $0x80] sm:$0x3] 0.0
        %361 = vst [vmem:[#allocation2 + $0x88] sm:$0x3] 0.0
        %v362 = vrot.slane %v216, 6
        %v363 = vrot.slane %v217, 6
        %v364 = vrot.slane %v218, 6
        %v365 = vsel %vm247, %v362, %v364
        %v366 = vrot.slane %v219, 6
        %v367 = vsel %vm247, %v363, %v366
        %372 = vst [vmem:[#allocation2 + $0x80] sm:$0xfc] %v362
        %373 = vst [vmem:[#allocation2 + $0x88] sm:$0xfc] %v363
        %374 = vst [vmem:[#allocation2 + $0x160] sm:$0xff] %v365
        %375 = vst [vmem:[#allocation2 + $0x168] sm:$0xff] %v367
        %s376 = scalar_lea.vmem [#allocation2], 144
        %377 = vst.msk [vmem:[%s376] ss:$8 sm:$0x3] %vm265, 0.0
        %378 = vst.msk [vmem:[%s376] ss:$8 sm:$0x0] %vm265, 0.0
        %v379 = vrot.slane %v216, 7
        %v380 = vrot.slane %v217, 7
        %v381 = vrot.slane %v218, 7
        %v382 = vsel %vm269, %v379, %v381
        %v383 = vrot.slane %v219, 7
        %v384 = vsel %vm269, %v380, %v383
        %389 = vst [vmem:[#allocation2 + $0x90] sm:$0xfe] %v379
        %390 = vst [vmem:[#allocation2 + $0x98] sm:$0xfe] %v380
        %391 = vst [vmem:[#allocation2 + $0x170] sm:$0xff] %v382
        %392 = vst [vmem:[#allocation2 + $0x178] sm:$0xff] %v384
        %393 = vst [vmem:[#allocation2 + $0xa0] sm:$0xff] %v216
        %394 = vst [vmem:[#allocation2 + $0xa8] sm:$0xff] %v217
        %395 = vst [vmem:[#allocation2 + $0x180] sm:$0xff] %v218
        %396 = vst [vmem:[#allocation2 + $0x188] sm:$0xff] %v219
        %s397 = scalar_lea.vmem [#allocation2], 407
        %398 = vst.msk [vmem:[%s397] ss:$8 sm:$0x3] %vm265, 0.0
        %399 = vst.msk [vmem:[%s397] ss:$8 sm:$0x0] %vm265, 0.0
        %v400 = vrot.slane %v216, 1
        %v401 = vrot.slane %v218, 1
        %v402 = vsel %vm291, %v400, %v401
        %v403 = vrot.slane %v217, 1
        %v404 = vrot.slane %v219, 1
        %v405 = vsel %vm291, %v403, %v404
        %410 = vst [vmem:[#allocation2 + $0xb0] sm:$0xff] %v402
        %411 = vst [vmem:[#allocation2 + $0xb8] sm:$0xff] %v405
        %412 = vst [vmem:[#allocation2 + $0x190] sm:$0x7f] %v401
        %413 = vst [vmem:[#allocation2 + $0x198] sm:$0x7f] %v404
        %414 = vst [vmem:[#allocation2 + $0x1a0] sm:$0xc0] 0.0
        %415 = vst [vmem:[#allocation2 + $0x1a8] sm:$0xc0] 0.0
        %v416 = vrot.slane %v216, 2
        %v417 = vrot.slane %v218, 2
        %v418 = vsel %vm308, %v416, %v417
        %v419 = vrot.slane %v217, 2
        %v420 = vrot.slane %v219, 2
        %v421 = vsel %vm308, %v419, %v420
        %426 = vst [vmem:[#allocation2 + $0xc0] sm:$0xff] %v418
        %427 = vst [vmem:[#allocation2 + $0xc8] sm:$0xff] %v421
        %428 = vst [vmem:[#allocation2 + $0x1a0] sm:$0x3f] %v417
        %429 = vst [vmem:[#allocation2 + $0x1a8] sm:$0x3f] %v420
        %430 = vst [vmem:[#allocation2 + $0x1b0] sm:$0xe0] 0.0
        %431 = vst [vmem:[#allocation2 + $0x1b8] sm:$0xe0] 0.0
        %v432 = vrot.slane %v216, 3
        %v433 = vrot.slane %v218, 3
        %v434 = vsel %vm325, %v432, %v433
        %v435 = vrot.slane %v217, 3
        %v436 = vrot.slane %v219, 3
        %v437 = vsel %vm325, %v435, %v436
        %442 = vst [vmem:[#allocation2 + $0xd0] sm:$0xff] %v434
        %443 = vst [vmem:[#allocation2 + $0xd8] sm:$0xff] %v437
        %444 = vst [vmem:[#allocation2 + $0x1b0] sm:$0x1f] %v433
        %445 = vst [vmem:[#allocation2 + $0x1b8] sm:$0x1f] %v436
        %v446 = vld [vmem:[#allocation2] sm:$0xff]
        %v447 = vld [vmem:[#allocation2 + $0x8] sm:$0xff]
        %v448 = vld [vmem:[#allocation2 + $0x10] sm:$0xff]
        %v449 = vld [vmem:[#allocation2 + $0x18] sm:$0xff]
        %v450 = vld [vmem:[#allocation2 + $0x20] sm:$0xff]
        %v451 = vld [vmem:[#allocation2 + $0x28] sm:$0xff]
        %v452 = vld [vmem:[#allocation2 + $0x30] sm:$0xff]
        %v453 = vld [vmem:[#allocation2 + $0x38] sm:$0xff]
        %v454 = vld [vmem:[#allocation2 + $0x40] sm:$0xff]
        %v455 = vld [vmem:[#allocation2 + $0x48] sm:$0xff]
        %v456 = vld [vmem:[#allocation2 + $0x50] sm:$0xff]
        %v457 = vld [vmem:[#allocation2 + $0x58] sm:$0xff]
        %v458 = vld [vmem:[#allocation2 + $0x60] sm:$0xff]
        %v459 = vld [vmem:[#allocation2 + $0x68] sm:$0xff]
        %v460 = vld [vmem:[#allocation2 + $0x70] sm:$0xff]
        %v461 = vld [vmem:[#allocation2 + $0x78] sm:$0xff]
        %v462 = vld [vmem:[#allocation2 + $0x80] sm:$0xff]
        %v463 = vld [vmem:[#allocation2 + $0x88] sm:$0xff]
        %v464 = vld [vmem:[#allocation2 + $0x90] sm:$0xff]
        %v465 = vld [vmem:[#allocation2 + $0x98] sm:$0xff]
        %v466 = vld [vmem:[#allocation2 + $0xa0] sm:$0xff]
        %v467 = vld [vmem:[#allocation2 + $0xa8] sm:$0xff]
        %v468 = vld [vmem:[#allocation2 + $0xb0] sm:$0xff]
        %v469 = vld [vmem:[#allocation2 + $0xb8] sm:$0xff]
        %v470 = vld [vmem:[#allocation2 + $0xc0] sm:$0xff]
        %v471 = vld [vmem:[#allocation2 + $0xc8] sm:$0xff]
        %v472 = vld [vmem:[#allocation2 + $0xd0] sm:$0xff]
        %v473 = vld [vmem:[#allocation2 + $0xd8] sm:$0xff]
        %v474 = vld [vmem:[#allocation2 + $0xe0] sm:$0xff]
        %v475 = vld [vmem:[#allocation2 + $0xe8] sm:$0xff]
        %v476 = vld [vmem:[#allocation2 + $0xf0] sm:$0xff]
        %v477 = vld [vmem:[#allocation2 + $0xf8] sm:$0xff]
        %v478 = vld [vmem:[#allocation2 + $0x100] sm:$0xff]
        %v479 = vld [vmem:[#allocation2 + $0x108] sm:$0xff]
        %v480 = vld [vmem:[#allocation2 + $0x110] sm:$0xff]
        %v481 = vld [vmem:[#allocation2 + $0x118] sm:$0xff]
        %v482 = vld [vmem:[#allocation2 + $0x120] sm:$0xff]
        %v483 = vld [vmem:[#allocation2 + $0x128] sm:$0xff]
        %v484 = vld [vmem:[#allocation2 + $0x130] sm:$0xff]
        %v485 = vld [vmem:[#allocation2 + $0x138] sm:$0xff]
        %v486 = vld [vmem:[#allocation2 + $0x140] sm:$0xff]
        %v487 = vld [vmem:[#allocation2 + $0x148] sm:$0xff]
        %v488 = vld [vmem:[#allocation2 + $0x150] sm:$0xff]
        %v489 = vld [vmem:[#allocation2 + $0x158] sm:$0xff]
        %v490 = vld [vmem:[#allocation2 + $0x160] sm:$0xff]
        %v491 = vld [vmem:[#allocation2 + $0x168] sm:$0xff]
        %v492 = vld [vmem:[#allocation2 + $0x170] sm:$0xff]
        %v493 = vld [vmem:[#allocation2 + $0x178] sm:$0xff]
        %v494 = vld [vmem:[#allocation2 + $0x180] sm:$0xff]
        %v495 = vld [vmem:[#allocation2 + $0x188] sm:$0xff]
        %v496 = vld [vmem:[#allocation2 + $0x190] sm:$0xff]
        %v497 = vld [vmem:[#allocation2 + $0x198] sm:$0xff]
        %v498 = vld [vmem:[#allocation2 + $0x1a0] sm:$0xff]
        %v499 = vld [vmem:[#allocation2 + $0x1a8] sm:$0xff]
        %v500 = vld [vmem:[#allocation2 + $0x1b0] sm:$0xff]
        %v501 = vld [vmem:[#allocation2 + $0x1b8] sm:$0xff]
        %v502 = vld [vmem:[#allocation3] sm:$0xff]
        %v503 = vld [vmem:[#allocation3 + $0x8] sm:$0xff]
        %v504 = vld [vmem:[#allocation3 + $0x10] sm:$0xff]
        %v505 = vld [vmem:[#allocation3 + $0x18] sm:$0xff]
        %v506 = vld [vmem:[#allocation3 + $0x20] sm:$0xff]
        %v507 = vld [vmem:[#allocation3 + $0x28] sm:$0xff]
        %v508 = vld [vmem:[#allocation3 + $0x30] sm:$0xff]
        %v509 = vld [vmem:[#allocation3 + $0x38] sm:$0xff]
        %v510 = vld [vmem:[#allocation3 + $0x40] sm:$0xff]
        %v511 = vld [vmem:[#allocation3 + $0x48] sm:$0xff]
        %v512 = vld [vmem:[#allocation3 + $0x50] sm:$0xff]
        %v513 = vld [vmem:[#allocation3 + $0x58] sm:$0xff]
        %v514 = vld [vmem:[#allocation3 + $0x60] sm:$0xff]
        %v515 = vld [vmem:[#allocation3 + $0x68] sm:$0xff]
        %v516 = vld [vmem:[#allocation3 + $0x70] sm:$0xff]
        %v517 = vld [vmem:[#allocation3 + $0x78] sm:$0xff]
        %v518 = vld [vmem:[#allocation3 + $0x80] sm:$0xff]
        %v519 = vld [vmem:[#allocation3 + $0x88] sm:$0xff]
        %v520 = vld [vmem:[#allocation3 + $0x90] sm:$0xff]
        %v521 = vld [vmem:[#allocation3 + $0x98] sm:$0xff]
        %v522 = vld [vmem:[#allocation3 + $0xa0] sm:$0xff]
        %v523 = vld [vmem:[#allocation3 + $0xa8] sm:$0xff]
        %v524 = vld [vmem:[#allocation3 + $0xb0] sm:$0xff]
        %v525 = vld [vmem:[#allocation3 + $0xb8] sm:$0xff]
        %v526 = vld [vmem:[#allocation3 + $0xc0] sm:$0xff]
        %v527 = vld [vmem:[#allocation3 + $0xc8] sm:$0xff]
        %v528 = vld [vmem:[#allocation3 + $0xd0] sm:$0xff]
        %v529 = vld [vmem:[#allocation3 + $0xd8] sm:$0xff]
        %v530 = vld [vmem:[#allocation3 + $0xe0] sm:$0xff]
        %v531 = vld [vmem:[#allocation3 + $0xe8] sm:$0xff]
        %v532 = vld [vmem:[#allocation3 + $0xf0] sm:$0xff]
        %v533 = vld [vmem:[#allocation3 + $0xf8] sm:$0xff]
        %v534 = vld [vmem:[#allocation3 + $0x100] sm:$0xff]
        %v535 = vld [vmem:[#allocation3 + $0x108] sm:$0xff]
        %v536 = vld [vmem:[#allocation3 + $0x110] sm:$0xff]
        %v537 = vld [vmem:[#allocation3 + $0x118] sm:$0xff]
        %v538 = vld [vmem:[#allocation3 + $0x120] sm:$0xff]
        %v539 = vld [vmem:[#allocation3 + $0x128] sm:$0xff]
        %v540 = vld [vmem:[#allocation3 + $0x130] sm:$0xff]
        %v541 = vld [vmem:[#allocation3 + $0x138] sm:$0xff]
        %v542 = vld [vmem:[#allocation3 + $0x140] sm:$0xff]
        %v543 = vld [vmem:[#allocation3 + $0x148] sm:$0xff]
        %v544 = vld [vmem:[#allocation3 + $0x150] sm:$0xff]
        %v545 = vld [vmem:[#allocation3 + $0x158] sm:$0xff]
        %v546 = vld [vmem:[#allocation3 + $0x160] sm:$0xff]
        %v547 = vld [vmem:[#allocation3 + $0x168] sm:$0xff]
        %v548 = vld [vmem:[#allocation3 + $0x170] sm:$0xff]
        %v549 = vld [vmem:[#allocation3 + $0x178] sm:$0xff]
        %v550 = vld [vmem:[#allocation3 + $0x180] sm:$0xff]
        %v551 = vld [vmem:[#allocation3 + $0x188] sm:$0xff]
        %v552 = vld [vmem:[#allocation3 + $0x190] sm:$0xff]
        %v553 = vld [vmem:[#allocation3 + $0x198] sm:$0xff]
        %v554 = vld [vmem:[#allocation3 + $0x1a0] sm:$0xff]
        %v555 = vld [vmem:[#allocation3 + $0x1a8] sm:$0xff]
        %v556 = vld [vmem:[#allocation3 + $0x1b0] sm:$0xff]
        %v557 = vld [vmem:[#allocation3 + $0x1b8] sm:$0xff]
        %v558 = vld [vmem:[#allocation3 + $0x1c0] sm:$0xff]
        %v559 = vld [vmem:[#allocation3 + $0x1c8] sm:$0xff]
        %v560 = vld [vmem:[#allocation3 + $0x1d0] sm:$0xff]
        %v561 = vld [vmem:[#allocation3 + $0x1d8] sm:$0xff]
        %v562 = vld [vmem:[#allocation3 + $0x1e0] sm:$0xff]
        %v563 = vld [vmem:[#allocation3 + $0x1e8] sm:$0xff]
        %v564 = vld [vmem:[#allocation3 + $0x1f0] sm:$0xff]
        %v565 = vld [vmem:[#allocation3 + $0x1f8] sm:$0xff]
        %v566 = vld [vmem:[#allocation3 + $0x200] sm:$0xff]
        %v567 = vld [vmem:[#allocation3 + $0x208] sm:$0xff]
        %v568 = vld [vmem:[#allocation3 + $0x210] sm:$0xff]
        %v569 = vld [vmem:[#allocation3 + $0x218] sm:$0xff]
        %v570 = vld [vmem:[#allocation3 + $0x220] sm:$0xff]
        %v571 = vld [vmem:[#allocation3 + $0x228] sm:$0xff]
        %v572 = vld [vmem:[#allocation3 + $0x230] sm:$0xff]
        %v573 = vld [vmem:[#allocation3 + $0x238] sm:$0xff]
        %v574 = vld [vmem:[#allocation3 + $0x240] sm:$0xff]
        %v575 = vld [vmem:[#allocation3 + $0x248] sm:$0xff]
        %v576 = vld [vmem:[#allocation3 + $0x250] sm:$0xff]
        %v577 = vld [vmem:[#allocation3 + $0x258] sm:$0xff]
        %v578 = vld [vmem:[#allocation3 + $0x260] sm:$0xff]
        %v579 = vld [vmem:[#allocation3 + $0x268] sm:$0xff]
        %v580 = vld [vmem:[#allocation3 + $0x270] sm:$0xff]
        %v581 = vld [vmem:[#allocation3 + $0x278] sm:$0xff]
        %v582 = vld [vmem:[#allocation3 + $0x280] sm:$0xff]
        %v583 = vld [vmem:[#allocation3 + $0x288] sm:$0xff]
        %v584 = vld [vmem:[#allocation3 + $0x290] sm:$0xff]
        %v585 = vld [vmem:[#allocation3 + $0x298] sm:$0xff]
        %v586 = vld [vmem:[#allocation3 + $0x2a0] sm:$0xff]
        %v587 = vld [vmem:[#allocation3 + $0x2a8] sm:$0xff]
        %v588 = vld [vmem:[#allocation3 + $0x2b0] sm:$0xff]
        %v589 = vld [vmem:[#allocation3 + $0x2b8] sm:$0xff]
        %v590 = vld [vmem:[#allocation3 + $0x2c0] sm:$0xff]
        %v591 = vld [vmem:[#allocation3 + $0x2c8] sm:$0xff]
        %v592 = vld [vmem:[#allocation3 + $0x2d0] sm:$0xff]
        %v593 = vld [vmem:[#allocation3 + $0x2d8] sm:$0xff]
        %v594 = vld [vmem:[#allocation3 + $0x2e0] sm:$0xff]
        %v595 = vld [vmem:[#allocation3 + $0x2e8] sm:$0xff]
        %v596 = vld [vmem:[#allocation3 + $0x2f0] sm:$0xff]
        %v597 = vld [vmem:[#allocation3 + $0x2f8] sm:$0xff]
        %v598 = vld [vmem:[#allocation3 + $0x300] sm:$0xff]
        %v599 = vld [vmem:[#allocation3 + $0x308] sm:$0xff]
        %v600 = vld [vmem:[#allocation3 + $0x310] sm:$0xff]
        %v601 = vld [vmem:[#allocation3 + $0x318] sm:$0xff]
        %v602 = vld [vmem:[#allocation3 + $0x320] sm:$0xff]
        %v603 = vld [vmem:[#allocation3 + $0x328] sm:$0xff]
        %v604 = vld [vmem:[#allocation3 + $0x330] sm:$0xff]
        %v605 = vld [vmem:[#allocation3 + $0x338] sm:$0xff]
        %v606 = vld [vmem:[#allocation3 + $0x340] sm:$0xff]
        %v607 = vld [vmem:[#allocation3 + $0x348] sm:$0xff]
        %v608 = vld [vmem:[#allocation3 + $0x350] sm:$0xff]
        %v609 = vld [vmem:[#allocation3 + $0x358] sm:$0xff]
        %v610 = vld [vmem:[#allocation3 + $0x360] sm:$0xff]
        %v611 = vld [vmem:[#allocation3 + $0x368] sm:$0xff]
        %v612 = vld [vmem:[#allocation3 + $0x370] sm:$0xff]
        %v613 = vld [vmem:[#allocation3 + $0x378] sm:$0xff]
        %v614 = vld [vmem:[#allocation3 + $0x380] sm:$0xff]
        %v615 = vld [vmem:[#allocation3 + $0x388] sm:$0xff]
        %v616 = vld [vmem:[#allocation3 + $0x390] sm:$0xff]
        %v617 = vld [vmem:[#allocation3 + $0x398] sm:$0xff]
        %v618 = vld [vmem:[#allocation3 + $0x3a0] sm:$0xff]
        %v619 = vld [vmem:[#allocation3 + $0x3a8] sm:$0xff]
        %v620 = vld [vmem:[#allocation3 + $0x3b0] sm:$0xff]
        %v621 = vld [vmem:[#allocation3 + $0x3b8] sm:$0xff]
        %v622 = vld [vmem:[#allocation3 + $0x3c0] sm:$0xff]
        %v623 = vld [vmem:[#allocation3 + $0x3c8] sm:$0xff]
        %v624 = vld [vmem:[#allocation3 + $0x3d0] sm:$0xff]
        %v625 = vld [vmem:[#allocation3 + $0x3d8] sm:$0xff]
        %v626 = vld [vmem:[#allocation3 + $0x3e0] sm:$0xff]
        %v627 = vld [vmem:[#allocation3 + $0x3e8] sm:$0xff]
        %v628 = vld [vmem:[#allocation3 + $0x3f0] sm:$0xff]
        %v629 = vld [vmem:[#allocation3 + $0x3f8] sm:$0xff]
        %v630 = vld [vmem:[#allocation3 + $0x400] sm:$0xff]
        %v631 = vld [vmem:[#allocation3 + $0x408] sm:$0xff]
        %v632 = vld [vmem:[#allocation3 + $0x410] sm:$0xff]
        %v633 = vld [vmem:[#allocation3 + $0x418] sm:$0xff]
        %v634 = vld [vmem:[#allocation3 + $0x420] sm:$0xff]
        %v635 = vld [vmem:[#allocation3 + $0x428] sm:$0xff]
        %v636 = vld [vmem:[#allocation3 + $0x430] sm:$0xff]
        %v637 = vld [vmem:[#allocation3 + $0x438] sm:$0xff]
        %v638 = vld [vmem:[#allocation3 + $0x440] sm:$0xff]
        %v639 = vld [vmem:[#allocation3 + $0x448] sm:$0xff]
        %v640 = vld [vmem:[#allocation3 + $0x450] sm:$0xff]
        %v641 = vld [vmem:[#allocation3 + $0x458] sm:$0xff]
        %v642 = vld [vmem:[#allocation3 + $0x460] sm:$0xff]
        %v643 = vld [vmem:[#allocation3 + $0x468] sm:$0xff]
        %v644 = vld [vmem:[#allocation3 + $0x470] sm:$0xff]
        %v645 = vld [vmem:[#allocation3 + $0x478] sm:$0xff]
        %v646 = vld [vmem:[#allocation3 + $0x480] sm:$0xff]
        %v647 = vld [vmem:[#allocation3 + $0x488] sm:$0xff]
        %v648 = vld [vmem:[#allocation3 + $0x490] sm:$0xff]
        %v649 = vld [vmem:[#allocation3 + $0x498] sm:$0xff]
        %v650 = vld [vmem:[#allocation3 + $0x4a0] sm:$0xff]
        %v651 = vld [vmem:[#allocation3 + $0x4a8] sm:$0xff]
        %v652 = vld [vmem:[#allocation3 + $0x4b0] sm:$0xff]
        %v653 = vld [vmem:[#allocation3 + $0x4b8] sm:$0xff]
        %v654 = vld [vmem:[#allocation3 + $0x4c0] sm:$0xff]
        %v655 = vld [vmem:[#allocation3 + $0x4c8] sm:$0xff]
        %v656 = vld [vmem:[#allocation3 + $0x4d0] sm:$0xff]
        %v657 = vld [vmem:[#allocation3 + $0x4d8] sm:$0xff]
        %v658 = vld [vmem:[#allocation3 + $0x4e0] sm:$0xff]
        %v659 = vld [vmem:[#allocation3 + $0x4e8] sm:$0xff]
        %v660 = vld [vmem:[#allocation3 + $0x4f0] sm:$0xff]
        %v661 = vld [vmem:[#allocation3 + $0x4f8] sm:$0xff]
        %v662 = vld [vmem:[#allocation3 + $0x500] sm:$0xff]
        %v663 = vld [vmem:[#allocation3 + $0x508] sm:$0xff]
        %v664 = vld [vmem:[#allocation3 + $0x510] sm:$0xff]
        %v665 = vld [vmem:[#allocation3 + $0x518] sm:$0xff]
        %v666 = vld [vmem:[#allocation3 + $0x520] sm:$0xff]
        %v667 = vld [vmem:[#allocation3 + $0x528] sm:$0xff]
        %v668 = vld [vmem:[#allocation3 + $0x530] sm:$0xff]
        %v669 = vld [vmem:[#allocation3 + $0x538] sm:$0xff]
        %v670 = vld [vmem:[#allocation3 + $0x540] sm:$0xff]
        %v671 = vld [vmem:[#allocation3 + $0x548] sm:$0xff]
        %v672 = vld [vmem:[#allocation3 + $0x550] sm:$0xff]
        %v673 = vld [vmem:[#allocation3 + $0x558] sm:$0xff]
        %v674 = vld [vmem:[#allocation3 + $0x560] sm:$0xff]
        %v675 = vld [vmem:[#allocation3 + $0x568] sm:$0xff]
        %v676 = vld [vmem:[#allocation3 + $0x570] sm:$0xff]
        %v677 = vld [vmem:[#allocation3 + $0x578] sm:$0xff]
        %v678 = vld [vmem:[#allocation3 + $0x580] sm:$0xff]
        %v679 = vld [vmem:[#allocation3 + $0x588] sm:$0xff]
        %v680 = vld [vmem:[#allocation3 + $0x590] sm:$0xff]
        %v681 = vld [vmem:[#allocation3 + $0x598] sm:$0xff]
        %v682 = vld [vmem:[#allocation3 + $0x5a0] sm:$0xff]
        %v683 = vld [vmem:[#allocation3 + $0x5a8] sm:$0xff]
        %v684 = vld [vmem:[#allocation3 + $0x5b0] sm:$0xff]
        %v685 = vld [vmem:[#allocation3 + $0x5b8] sm:$0xff]
        %v686 = vld [vmem:[#allocation3 + $0x5c0] sm:$0xff]
        %v687 = vld [vmem:[#allocation3 + $0x5c8] sm:$0xff]
        %v688 = vld [vmem:[#allocation3 + $0x5d0] sm:$0xff]
        %v689 = vld [vmem:[#allocation3 + $0x5d8] sm:$0xff]
        %v690 = vld [vmem:[#allocation3 + $0x5e0] sm:$0xff]
        %v691 = vld [vmem:[#allocation3 + $0x5e8] sm:$0xff]
        %v692 = vld [vmem:[#allocation3 + $0x5f0] sm:$0xff]
        %v693 = vld [vmem:[#allocation3 + $0x5f8] sm:$0xff]
        %v694 = vld [vmem:[#allocation3 + $0x600] sm:$0xff]
        %v695 = vld [vmem:[#allocation3 + $0x608] sm:$0xff]
        %v696 = vld [vmem:[#allocation3 + $0x610] sm:$0xff]
        %v697 = vld [vmem:[#allocation3 + $0x618] sm:$0xff]
        %v698 = vld [vmem:[#allocation3 + $0x620] sm:$0xff]
        %v699 = vld [vmem:[#allocation3 + $0x628] sm:$0xff]
        %v700 = vld [vmem:[#allocation3 + $0x630] sm:$0xff]
        %v701 = vld [vmem:[#allocation3 + $0x638] sm:$0xff]
        %v702 = vld [vmem:[#allocation3 + $0x640] sm:$0xff]
        %v703 = vld [vmem:[#allocation3 + $0x648] sm:$0xff]
        %v704 = vld [vmem:[#allocation3 + $0x650] sm:$0xff]
        %v705 = vld [vmem:[#allocation3 + $0x658] sm:$0xff]
        %v706 = vld [vmem:[#allocation3 + $0x660] sm:$0xff]
        %v707 = vld [vmem:[#allocation3 + $0x668] sm:$0xff]
        %v708 = vld [vmem:[#allocation3 + $0x670] sm:$0xff]
        %v709 = vld [vmem:[#allocation3 + $0x678] sm:$0xff]
        %v710 = vld [vmem:[#allocation3 + $0x680] sm:$0xff]
        %v711 = vld [vmem:[#allocation3 + $0x688] sm:$0xff]
        %v712 = vld [vmem:[#allocation3 + $0x690] sm:$0xff]
        %v713 = vld [vmem:[#allocation3 + $0x698] sm:$0xff]
        %v714 = vld [vmem:[#allocation3 + $0x6a0] sm:$0xff]
        %v715 = vld [vmem:[#allocation3 + $0x6a8] sm:$0xff]
        %v716 = vld [vmem:[#allocation3 + $0x6b0] sm:$0xff]
        %v717 = vld [vmem:[#allocation3 + $0x6b8] sm:$0xff]
        %v718 = vld [vmem:[#allocation3 + $0x6c0] sm:$0xff]
        %v719 = vld [vmem:[#allocation3 + $0x6c8] sm:$0xff]
        %v720 = vld [vmem:[#allocation3 + $0x6d0] sm:$0xff]
        %v721 = vld [vmem:[#allocation3 + $0x6d8] sm:$0xff]
        %v722 = vld [vmem:[#allocation3 + $0x6e0] sm:$0xff]
        %v723 = vld [vmem:[#allocation3 + $0x6e8] sm:$0xff]
        %v724 = vld [vmem:[#allocation3 + $0x6f0] sm:$0xff]
        %v725 = vld [vmem:[#allocation3 + $0x6f8] sm:$0xff]
        %v726 = vld [vmem:[#allocation3 + $0x700] sm:$0xff]
        %v727 = vld [vmem:[#allocation3 + $0x708] sm:$0xff]
        %v728 = vld [vmem:[#allocation3 + $0x710] sm:$0xff]
        %v729 = vld [vmem:[#allocation3 + $0x718] sm:$0xff]
        %v730 = vld [vmem:[#allocation3 + $0x720] sm:$0xff]
        %v731 = vld [vmem:[#allocation3 + $0x728] sm:$0xff]
        %v732 = vld [vmem:[#allocation3 + $0x730] sm:$0xff]
        %v733 = vld [vmem:[#allocation3 + $0x738] sm:$0xff]
        %v734 = vld [vmem:[#allocation3 + $0x740] sm:$0xff]
        %v735 = vld [vmem:[#allocation3 + $0x748] sm:$0xff]
        %v736 = vld [vmem:[#allocation3 + $0x750] sm:$0xff]
        %v737 = vld [vmem:[#allocation3 + $0x758] sm:$0xff]
        %v738 = vld [vmem:[#allocation3 + $0x760] sm:$0xff]
        %v739 = vld [vmem:[#allocation3 + $0x768] sm:$0xff]
        %v740 = vld [vmem:[#allocation3 + $0x770] sm:$0xff]
        %v741 = vld [vmem:[#allocation3 + $0x778] sm:$0xff]
        %v742 = vld [vmem:[#allocation3 + $0x780] sm:$0xff]
        %v743 = vld [vmem:[#allocation3 + $0x788] sm:$0xff]
        %v744 = vld [vmem:[#allocation3 + $0x790] sm:$0xff]
        %v745 = vld [vmem:[#allocation3 + $0x798] sm:$0xff]
        %v746 = vld [vmem:[#allocation3 + $0x7a0] sm:$0xff]
        %v747 = vld [vmem:[#allocation3 + $0x7a8] sm:$0xff]
        %v748 = vld [vmem:[#allocation3 + $0x7b0] sm:$0xff]
        %v749 = vld [vmem:[#allocation3 + $0x7b8] sm:$0xff]
        %v750 = vld [vmem:[#allocation3 + $0x7c0] sm:$0xff]
        %v751 = vld [vmem:[#allocation3 + $0x7c8] sm:$0xff]
        %v752 = vld [vmem:[#allocation3 + $0x7d0] sm:$0xff]
        %v753 = vld [vmem:[#allocation3 + $0x7d8] sm:$0xff]
        %v754 = vld [vmem:[#allocation3 + $0x7e0] sm:$0xff]
        %v755 = vld [vmem:[#allocation3 + $0x7e8] sm:$0xff]
        %v756 = vld [vmem:[#allocation3 + $0x7f0] sm:$0xff]
        %v757 = vld [vmem:[#allocation3 + $0x7f8] sm:$0xff]
        %v758 = vld [vmem:[#allocation3 + $0x800] sm:$0xff]
        %v759 = vld [vmem:[#allocation3 + $0x808] sm:$0xff]
        %v760 = vld [vmem:[#allocation3 + $0x810] sm:$0xff]
        %v761 = vld [vmem:[#allocation3 + $0x818] sm:$0xff]
        %v762 = vld [vmem:[#allocation3 + $0x820] sm:$0xff]
        %v763 = vld [vmem:[#allocation3 + $0x828] sm:$0xff]
        %v764 = vld [vmem:[#allocation3 + $0x830] sm:$0xff]
        %v765 = vld [vmem:[#allocation3 + $0x838] sm:$0xff]
        %v766 = vld [vmem:[#allocation3 + $0x840] sm:$0xff]
        %v767 = vld [vmem:[#allocation3 + $0x848] sm:$0xff]
        %v768 = vld [vmem:[#allocation3 + $0x850] sm:$0xff]
        %v769 = vld [vmem:[#allocation3 + $0x858] sm:$0xff]
        %v770 = vld [vmem:[#allocation3 + $0x860] sm:$0xff]
        %v771 = vld [vmem:[#allocation3 + $0x868] sm:$0xff]
        %v772 = vld [vmem:[#allocation3 + $0x870] sm:$0xff]
        %v773 = vld [vmem:[#allocation3 + $0x878] sm:$0xff]
        %v774 = vld [vmem:[#allocation3 + $0x880] sm:$0xff]
        %v775 = vld [vmem:[#allocation3 + $0x888] sm:$0xff]
        %v776 = vld [vmem:[#allocation3 + $0x890] sm:$0xff]
        %v777 = vld [vmem:[#allocation3 + $0x898] sm:$0xff]
        %v778 = vld [vmem:[#allocation3 + $0x8a0] sm:$0xff]
        %v779 = vld [vmem:[#allocation3 + $0x8a8] sm:$0xff]
        %v780 = vld [vmem:[#allocation3 + $0x8b0] sm:$0xff]
        %v781 = vld [vmem:[#allocation3 + $0x8b8] sm:$0xff]
        %v782 = vld [vmem:[#allocation3 + $0x8c0] sm:$0xff]
        %v783 = vld [vmem:[#allocation3 + $0x8c8] sm:$0xff]
        %v784 = vld [vmem:[#allocation3 + $0x8d0] sm:$0xff]
        %v785 = vld [vmem:[#allocation3 + $0x8d8] sm:$0xff]
        %v786 = vld [vmem:[#allocation3 + $0x8e0] sm:$0xff]
        %v787 = vld [vmem:[#allocation3 + $0x8e8] sm:$0xff]
        %v788 = vld [vmem:[#allocation3 + $0x8f0] sm:$0xff]
        %v789 = vld [vmem:[#allocation3 + $0x8f8] sm:$0xff]
        %v790 = vld [vmem:[#allocation3 + $0x900] sm:$0xff]
        %v791 = vld [vmem:[#allocation3 + $0x908] sm:$0xff]
        %v792 = vld [vmem:[#allocation3 + $0x910] sm:$0xff]
        %v793 = vld [vmem:[#allocation3 + $0x918] sm:$0xff]
        %v794 = vld [vmem:[#allocation3 + $0x920] sm:$0xff]
        %v795 = vld [vmem:[#allocation3 + $0x928] sm:$0xff]
        %v796 = vld [vmem:[#allocation3 + $0x930] sm:$0xff]
        %v797 = vld [vmem:[#allocation3 + $0x938] sm:$0xff]
        %v798 = vld [vmem:[#allocation3 + $0x940] sm:$0xff]
        %v799 = vld [vmem:[#allocation3 + $0x948] sm:$0xff]
        %v800 = vld [vmem:[#allocation3 + $0x950] sm:$0xff]
        %v801 = vld [vmem:[#allocation3 + $0x958] sm:$0xff]
        %v802 = vld [vmem:[#allocation3 + $0x960] sm:$0xff]
        %v803 = vld [vmem:[#allocation3 + $0x968] sm:$0xff]
        %v804 = vld [vmem:[#allocation3 + $0x970] sm:$0xff]
        %v805 = vld [vmem:[#allocation3 + $0x978] sm:$0xff]
        %v806 = vld [vmem:[#allocation3 + $0x980] sm:$0xff]
        %v807 = vld [vmem:[#allocation3 + $0x988] sm:$0xff]
        %v808 = vld [vmem:[#allocation3 + $0x990] sm:$0xff]
        %v809 = vld [vmem:[#allocation3 + $0x998] sm:$0xff]
        %v810 = vld [vmem:[#allocation3 + $0x9a0] sm:$0xff]
        %v811 = vld [vmem:[#allocation3 + $0x9a8] sm:$0xff]
        %v812 = vld [vmem:[#allocation3 + $0x9b0] sm:$0xff]
        %v813 = vld [vmem:[#allocation3 + $0x9b8] sm:$0xff]
        %v814 = vld [vmem:[#allocation3 + $0x9c0] sm:$0xff]
        %v815 = vld [vmem:[#allocation3 + $0x9c8] sm:$0xff]
        %v816 = vld [vmem:[#allocation3 + $0x9d0] sm:$0xff]
        %v817 = vld [vmem:[#allocation3 + $0x9d8] sm:$0xff]
        %v818 = vld [vmem:[#allocation3 + $0x9e0] sm:$0xff]
        %v819 = vld [vmem:[#allocation3 + $0x9e8] sm:$0xff]
        %v820 = vld [vmem:[#allocation3 + $0x9f0] sm:$0xff]
        %v821 = vld [vmem:[#allocation3 + $0x9f8] sm:$0xff]
        %v822 = vld [vmem:[#allocation3 + $0xa00] sm:$0xff]
        %v823 = vld [vmem:[#allocation3 + $0xa08] sm:$0xff]
        %v824 = vld [vmem:[#allocation3 + $0xa10] sm:$0xff]
        %v825 = vld [vmem:[#allocation3 + $0xa18] sm:$0xff]
        %v826 = vld [vmem:[#allocation3 + $0xa20] sm:$0xff]
        %v827 = vld [vmem:[#allocation3 + $0xa28] sm:$0xff]
        %v828 = vld [vmem:[#allocation3 + $0xa30] sm:$0xff]
        %v829 = vld [vmem:[#allocation3 + $0xa38] sm:$0xff]
        %v830 = vld [vmem:[#allocation3 + $0xa40] sm:$0xff]
        %v831 = vld [vmem:[#allocation3 + $0xa48] sm:$0xff]
        %v832 = vld [vmem:[#allocation3 + $0xa50] sm:$0xff]
        %v833 = vld [vmem:[#allocation3 + $0xa58] sm:$0xff]
        %v834 = vld [vmem:[#allocation3 + $0xa60] sm:$0xff]
        %v835 = vld [vmem:[#allocation3 + $0xa68] sm:$0xff]
        %v836 = vld [vmem:[#allocation3 + $0xa70] sm:$0xff]
        %v837 = vld [vmem:[#allocation3 + $0xa78] sm:$0xff]
        %v838 = vld [vmem:[#allocation3 + $0xa80] sm:$0xff]
        %v839 = vld [vmem:[#allocation3 + $0xa88] sm:$0xff]
        %v840 = vld [vmem:[#allocation3 + $0xa90] sm:$0xff]
        %v841 = vld [vmem:[#allocation3 + $0xa98] sm:$0xff]
        %v842 = vld [vmem:[#allocation3 + $0xaa0] sm:$0xff]
        %v843 = vld [vmem:[#allocation3 + $0xaa8] sm:$0xff]
        %v844 = vld [vmem:[#allocation3 + $0xab0] sm:$0xff]
        %v845 = vld [vmem:[#allocation3 + $0xab8] sm:$0xff]
        %v846 = vld [vmem:[#allocation3 + $0xac0] sm:$0xff]
        %v847 = vld [vmem:[#allocation3 + $0xac8] sm:$0xff]
        %v848 = vld [vmem:[#allocation3 + $0xad0] sm:$0xff]
        %v849 = vld [vmem:[#allocation3 + $0xad8] sm:$0xff]
        %v850 = vld [vmem:[#allocation3 + $0xae0] sm:$0xff]
        %v851 = vld [vmem:[#allocation3 + $0xae8] sm:$0xff]
        %v852 = vld [vmem:[#allocation3 + $0xaf0] sm:$0xff]
        %v853 = vld [vmem:[#allocation3 + $0xaf8] sm:$0xff]
        %v854 = vld [vmem:[#allocation3 + $0xb00] sm:$0xff]
        %v855 = vld [vmem:[#allocation3 + $0xb08] sm:$0xff]
        %v856 = vld [vmem:[#allocation3 + $0xb10] sm:$0xff]
        %v857 = vld [vmem:[#allocation3 + $0xb18] sm:$0xff]
        %v858 = vld [vmem:[#allocation3 + $0xb20] sm:$0xff]
        %v859 = vld [vmem:[#allocation3 + $0xb28] sm:$0xff]
        %v860 = vld [vmem:[#allocation3 + $0xb30] sm:$0xff]
        %v861 = vld [vmem:[#allocation3 + $0xb38] sm:$0xff]
        %v862 = vld [vmem:[#allocation3 + $0xb40] sm:$0xff]
        %v863 = vld [vmem:[#allocation3 + $0xb48] sm:$0xff]
        %v864 = vld [vmem:[#allocation3 + $0xb50] sm:$0xff]
        %v865 = vld [vmem:[#allocation3 + $0xb58] sm:$0xff]
        %v866 = vld [vmem:[#allocation3 + $0xb60] sm:$0xff]
        %v867 = vld [vmem:[#allocation3 + $0xb68] sm:$0xff]
        %v868 = vld [vmem:[#allocation3 + $0xb70] sm:$0xff]
        %v869 = vld [vmem:[#allocation3 + $0xb78] sm:$0xff]
        %v870 = vld [vmem:[#allocation3 + $0xb80] sm:$0xff]
        %v871 = vld [vmem:[#allocation3 + $0xb88] sm:$0xff]
        %v872 = vld [vmem:[#allocation3 + $0xb90] sm:$0xff]
        %v873 = vld [vmem:[#allocation3 + $0xb98] sm:$0xff]
        %v874 = vld [vmem:[#allocation3 + $0xba0] sm:$0xff]
        %v875 = vld [vmem:[#allocation3 + $0xba8] sm:$0xff]
        %v876 = vld [vmem:[#allocation3 + $0xbb0] sm:$0xff]
        %v877 = vld [vmem:[#allocation3 + $0xbb8] sm:$0xff]
        %v878 = vld [vmem:[#allocation3 + $0xbc0] sm:$0xff]
        %v879 = vld [vmem:[#allocation3 + $0xbc8] sm:$0xff]
        %v880 = vld [vmem:[#allocation3 + $0xbd0] sm:$0xff]
        %v881 = vld [vmem:[#allocation3 + $0xbd8] sm:$0xff]
        %v882 = vld [vmem:[#allocation3 + $0xbe0] sm:$0xff]
        %v883 = vld [vmem:[#allocation3 + $0xbe8] sm:$0xff]
        %v884 = vld [vmem:[#allocation3 + $0xbf0] sm:$0xff]
        %v885 = vld [vmem:[#allocation3 + $0xbf8] sm:$0xff]
        %v886 = vld [vmem:[#allocation3 + $0xc00] sm:$0xff]
        %v887 = vld [vmem:[#allocation3 + $0xc08] sm:$0xff]
        %v888 = vld [vmem:[#allocation3 + $0xc10] sm:$0xff]
        %v889 = vld [vmem:[#allocation3 + $0xc18] sm:$0xff]
        %v890 = vld [vmem:[#allocation3 + $0xc20] sm:$0xff]
        %v891 = vld [vmem:[#allocation3 + $0xc28] sm:$0xff]
        %v892 = vld [vmem:[#allocation3 + $0xc30] sm:$0xff]
        %v893 = vld [vmem:[#allocation3 + $0xc38] sm:$0xff]
        %v894 = vld [vmem:[#allocation3 + $0xc40] sm:$0xff]
        %v895 = vld [vmem:[#allocation3 + $0xc48] sm:$0xff]
        %v896 = vld [vmem:[#allocation3 + $0xc50] sm:$0xff]
        %v897 = vld [vmem:[#allocation3 + $0xc58] sm:$0xff]
        %v898 = vld [vmem:[#allocation3 + $0xc60] sm:$0xff]
        %v899 = vld [vmem:[#allocation3 + $0xc68] sm:$0xff]
        %v900 = vld [vmem:[#allocation3 + $0xc70] sm:$0xff]
        %v901 = vld [vmem:[#allocation3 + $0xc78] sm:$0xff]
        %v902 = vld [vmem:[#allocation3 + $0xc80] sm:$0xff]
        %v903 = vld [vmem:[#allocation3 + $0xc88] sm:$0xff]
        %v904 = vld [vmem:[#allocation3 + $0xc90] sm:$0xff]
        %v905 = vld [vmem:[#allocation3 + $0xc98] sm:$0xff]
        %v906 = vld [vmem:[#allocation3 + $0xca0] sm:$0xff]
        %v907 = vld [vmem:[#allocation3 + $0xca8] sm:$0xff]
        %v908 = vld [vmem:[#allocation3 + $0xcb0] sm:$0xff]
        %v909 = vld [vmem:[#allocation3 + $0xcb8] sm:$0xff]
        %v910 = vld [vmem:[#allocation3 + $0xcc0] sm:$0xff]
        %v911 = vld [vmem:[#allocation3 + $0xcc8] sm:$0xff]
        %v912 = vld [vmem:[#allocation3 + $0xcd0] sm:$0xff]
        %v913 = vld [vmem:[#allocation3 + $0xcd8] sm:$0xff]
        %v914 = vld [vmem:[#allocation3 + $0xce0] sm:$0xff]
        %v915 = vld [vmem:[#allocation3 + $0xce8] sm:$0xff]
        %v916 = vld [vmem:[#allocation3 + $0xcf0] sm:$0xff]
        %v917 = vld [vmem:[#allocation3 + $0xcf8] sm:$0xff]
        %v918 = vld [vmem:[#allocation3 + $0xd00] sm:$0xff]
        %v919 = vld [vmem:[#allocation3 + $0xd08] sm:$0xff]
        %v920 = vld [vmem:[#allocation3 + $0xd10] sm:$0xff]
        %v921 = vld [vmem:[#allocation3 + $0xd18] sm:$0xff]
        %v922 = vld [vmem:[#allocation3 + $0xd20] sm:$0xff]
        %v923 = vld [vmem:[#allocation3 + $0xd28] sm:$0xff]
        %v924 = vld [vmem:[#allocation3 + $0xd30] sm:$0xff]
        %v925 = vld [vmem:[#allocation3 + $0xd38] sm:$0xff]
        %v926 = vld [vmem:[#allocation3 + $0xd40] sm:$0xff]
        %v927 = vld [vmem:[#allocation3 + $0xd48] sm:$0xff]
        %v928 = vld [vmem:[#allocation3 + $0xd50] sm:$0xff]
        %v929 = vld [vmem:[#allocation3 + $0xd58] sm:$0xff]
        %v930 = vld [vmem:[#allocation3 + $0xd60] sm:$0xff]
        %v931 = vld [vmem:[#allocation3 + $0xd68] sm:$0xff]
        %v932 = vld [vmem:[#allocation3 + $0xd70] sm:$0xff]
        %v933 = vld [vmem:[#allocation3 + $0xd78] sm:$0xff]
        %v934 = vld [vmem:[#allocation3 + $0xd80] sm:$0xff]
        %v935 = vld [vmem:[#allocation3 + $0xd88] sm:$0xff]
        %v936 = vld [vmem:[#allocation3 + $0xd90] sm:$0xff]
        %v937 = vld [vmem:[#allocation3 + $0xd98] sm:$0xff]
        %v938 = vld [vmem:[#allocation3 + $0xda0] sm:$0xff]
        %v939 = vld [vmem:[#allocation3 + $0xda8] sm:$0xff]
        %v940 = vld [vmem:[#allocation3 + $0xdb0] sm:$0xff]
        %v941 = vld [vmem:[#allocation3 + $0xdb8] sm:$0xff]
        %v942 = vld [vmem:[#allocation3 + $0xdc0] sm:$0xff]
        %v943 = vld [vmem:[#allocation3 + $0xdc8] sm:$0xff]
        %v944 = vld [vmem:[#allocation3 + $0xdd0] sm:$0xff]
        %v945 = vld [vmem:[#allocation3 + $0xdd8] sm:$0xff]
        %v946 = vld [vmem:[#allocation3 + $0xde0] sm:$0xff]
        %v947 = vld [vmem:[#allocation3 + $0xde8] sm:$0xff]
        %v948 = vld [vmem:[#allocation3 + $0xdf0] sm:$0xff]
        %v949 = vld [vmem:[#allocation3 + $0xdf8] sm:$0xff]
        %v950 = vld [vmem:[#allocation3 + $0xe00] sm:$0xff]
        %v951 = vld [vmem:[#allocation3 + $0xe08] sm:$0xff]
        %v952 = vld [vmem:[#allocation3 + $0xe10] sm:$0xff]
        %v953 = vld [vmem:[#allocation3 + $0xe18] sm:$0xff]
        %v954 = vld [vmem:[#allocation3 + $0xe20] sm:$0xff]
        %v955 = vld [vmem:[#allocation3 + $0xe28] sm:$0xff]
        %v956 = vld [vmem:[#allocation3 + $0xe30] sm:$0xff]
        %v957 = vld [vmem:[#allocation3 + $0xe38] sm:$0xff]
        %v958 = vld [vmem:[#allocation3 + $0xe40] sm:$0xff]
        %v959 = vld [vmem:[#allocation3 + $0xe48] sm:$0xff]
        %v960 = vld [vmem:[#allocation3 + $0xe50] sm:$0xff]
        %v961 = vld [vmem:[#allocation3 + $0xe58] sm:$0xff]
        %v962 = vld [vmem:[#allocation3 + $0xe60] sm:$0xff]
        %v963 = vld [vmem:[#allocation3 + $0xe68] sm:$0xff]
        %v964 = vld [vmem:[#allocation3 + $0xe70] sm:$0xff]
        %v965 = vld [vmem:[#allocation3 + $0xe78] sm:$0xff]
        %v966 = vld [vmem:[#allocation3 + $0xe80] sm:$0xff]
        %v967 = vld [vmem:[#allocation3 + $0xe88] sm:$0xff]
        %v968 = vld [vmem:[#allocation3 + $0xe90] sm:$0xff]
        %v969 = vld [vmem:[#allocation3 + $0xe98] sm:$0xff]
        %v970 = vld [vmem:[#allocation3 + $0xea0] sm:$0xff]
        %v971 = vld [vmem:[#allocation3 + $0xea8] sm:$0xff]
        %v972 = vld [vmem:[#allocation3 + $0xeb0] sm:$0xff]
        %v973 = vld [vmem:[#allocation3 + $0xeb8] sm:$0xff]
        %v974 = vld [vmem:[#allocation3 + $0xec0] sm:$0xff]
        %v975 = vld [vmem:[#allocation3 + $0xec8] sm:$0xff]
        %v976 = vld [vmem:[#allocation3 + $0xed0] sm:$0xff]
        %v977 = vld [vmem:[#allocation3 + $0xed8] sm:$0xff]
        %v978 = vld [vmem:[#allocation3 + $0xee0] sm:$0xff]
        %v979 = vld [vmem:[#allocation3 + $0xee8] sm:$0xff]
        %v980 = vld [vmem:[#allocation3 + $0xef0] sm:$0xff]
        %v981 = vld [vmem:[#allocation3 + $0xef8] sm:$0xff]
        %v982 = vld [vmem:[#allocation3 + $0xf00] sm:$0xff]
        %v983 = vld [vmem:[#allocation3 + $0xf08] sm:$0xff]
        %v984 = vld [vmem:[#allocation3 + $0xf10] sm:$0xff]
        %v985 = vld [vmem:[#allocation3 + $0xf18] sm:$0xff]
        %v986 = vld [vmem:[#allocation3 + $0xf20] sm:$0xff]
        %v987 = vld [vmem:[#allocation3 + $0xf28] sm:$0xff]
        %v988 = vld [vmem:[#allocation3 + $0xf30] sm:$0xff]
        %v989 = vld [vmem:[#allocation3 + $0xf38] sm:$0xff]
        %v990 = vld [vmem:[#allocation3 + $0xf40] sm:$0xff]
        %v991 = vld [vmem:[#allocation3 + $0xf48] sm:$0xff]
        %v992 = vld [vmem:[#allocation3 + $0xf50] sm:$0xff]
        %v993 = vld [vmem:[#allocation3 + $0xf58] sm:$0xff]
        %v994 = vld [vmem:[#allocation3 + $0xf60] sm:$0xff]
        %v995 = vld [vmem:[#allocation3 + $0xf68] sm:$0xff]
        %v996 = vld [vmem:[#allocation3 + $0xf70] sm:$0xff]
        %v997 = vld [vmem:[#allocation3 + $0xf78] sm:$0xff]
        %v998 = vld [vmem:[#allocation3 + $0xf80] sm:$0xff]
        %v999 = vld [vmem:[#allocation3 + $0xf88] sm:$0xff]
        %v1000 = vld [vmem:[#allocation3 + $0xf90] sm:$0xff]
        %v1001 = vld [vmem:[#allocation3 + $0xf98] sm:$0xff]
        %v1002 = vld [vmem:[#allocation3 + $0xfa0] sm:$0xff]
        %v1003 = vld [vmem:[#allocation3 + $0xfa8] sm:$0xff]
        %v1004 = vld [vmem:[#allocation3 + $0xfb0] sm:$0xff]
        %v1005 = vld [vmem:[#allocation3 + $0xfb8] sm:$0xff]
        %v1006 = vld [vmem:[#allocation3 + $0xfc0] sm:$0xff]
        %v1007 = vld [vmem:[#allocation3 + $0xfc8] sm:$0xff]
        %v1008 = vld [vmem:[#allocation3 + $0xfd0] sm:$0xff]
        %v1009 = vld [vmem:[#allocation3 + $0xfd8] sm:$0xff]
        %v1010 = vld [vmem:[#allocation3 + $0xfe0] sm:$0xff]
        %v1011 = vld [vmem:[#allocation3 + $0xfe8] sm:$0xff]
        %v1012 = vld [vmem:[#allocation3 + $0xff0] sm:$0xff]
        %v1013 = vld [vmem:[#allocation3 + $0xff8] sm:$0xff]
        %v1014 = vld [vmem:[#allocation3 + $0x1000] sm:$0xff]
        %v1015 = vld [vmem:[#allocation3 + $0x1008] sm:$0xff]
        %v1016 = vld [vmem:[#allocation3 + $0x1010] sm:$0xff]
        %v1017 = vld [vmem:[#allocation3 + $0x1018] sm:$0xff]
        %v1018 = vld [vmem:[#allocation3 + $0x1020] sm:$0xff]
        %v1019 = vld [vmem:[#allocation3 + $0x1028] sm:$0xff]
        %v1020 = vld [vmem:[#allocation3 + $0x1030] sm:$0xff]
        %v1021 = vld [vmem:[#allocation3 + $0x1038] sm:$0xff]
        %v1022 = vld [vmem:[#allocation3 + $0x1040] sm:$0xff]
        %v1023 = vld [vmem:[#allocation3 + $0x1048] sm:$0xff]
        %v1024 = vld [vmem:[#allocation3 + $0x1050] sm:$0xff]
        %v1025 = vld [vmem:[#allocation3 + $0x1058] sm:$0xff]
        %v1026 = vld [vmem:[#allocation3 + $0x1060] sm:$0xff]
        %v1027 = vld [vmem:[#allocation3 + $0x1068] sm:$0xff]
        %v1028 = vld [vmem:[#allocation3 + $0x1070] sm:$0xff]
        %v1029 = vld [vmem:[#allocation3 + $0x1078] sm:$0xff]
        %v1030 = vld [vmem:[#allocation3 + $0x1080] sm:$0xff]
        %v1031 = vld [vmem:[#allocation3 + $0x1088] sm:$0xff]
        %v1032 = vld [vmem:[#allocation3 + $0x1090] sm:$0xff]
        %v1033 = vld [vmem:[#allocation3 + $0x1098] sm:$0xff]
        %v1034 = vld [vmem:[#allocation3 + $0x10a0] sm:$0xff]
        %v1035 = vld [vmem:[#allocation3 + $0x10a8] sm:$0xff]
        %v1036 = vld [vmem:[#allocation3 + $0x10b0] sm:$0xff]
        %v1037 = vld [vmem:[#allocation3 + $0x10b8] sm:$0xff]
        %v1038 = vld [vmem:[#allocation3 + $0x10c0] sm:$0xff]
        %v1039 = vld [vmem:[#allocation3 + $0x10c8] sm:$0xff]
        %v1040 = vld [vmem:[#allocation3 + $0x10d0] sm:$0xff]
        %v1041 = vld [vmem:[#allocation3 + $0x10d8] sm:$0xff]
        %v1042 = vld [vmem:[#allocation3 + $0x10e0] sm:$0xff]
        %v1043 = vld [vmem:[#allocation3 + $0x10e8] sm:$0xff]
        %v1044 = vld [vmem:[#allocation3 + $0x10f0] sm:$0xff]
        %v1045 = vld [vmem:[#allocation3 + $0x10f8] sm:$0xff]
        %v1046 = vld [vmem:[#allocation3 + $0x1100] sm:$0xff]
        %v1047 = vld [vmem:[#allocation3 + $0x1108] sm:$0xff]
        %v1048 = vld [vmem:[#allocation3 + $0x1110] sm:$0xff]
        %v1049 = vld [vmem:[#allocation3 + $0x1118] sm:$0xff]
        %v1050 = vld [vmem:[#allocation3 + $0x1120] sm:$0xff]
        %v1051 = vld [vmem:[#allocation3 + $0x1128] sm:$0xff]
        %v1052 = vld [vmem:[#allocation3 + $0x1130] sm:$0xff]
        %v1053 = vld [vmem:[#allocation3 + $0x1138] sm:$0xff]
        %v1054 = vld [vmem:[#allocation3 + $0x1140] sm:$0xff]
        %v1055 = vld [vmem:[#allocation3 + $0x1148] sm:$0xff]
        %v1056 = vld [vmem:[#allocation3 + $0x1150] sm:$0xff]
        %v1057 = vld [vmem:[#allocation3 + $0x1158] sm:$0xff]
        %v1058 = vld [vmem:[#allocation3 + $0x1160] sm:$0xff]
        %v1059 = vld [vmem:[#allocation3 + $0x1168] sm:$0xff]
        %v1060 = vld [vmem:[#allocation3 + $0x1170] sm:$0xff]
        %v1061 = vld [vmem:[#allocation3 + $0x1178] sm:$0xff]
        %v1062 = vld [vmem:[#allocation3 + $0x1180] sm:$0xff]
        %v1063 = vld [vmem:[#allocation3 + $0x1188] sm:$0xff]
        %v1064 = vld [vmem:[#allocation3 + $0x1190] sm:$0xff]
        %v1065 = vld [vmem:[#allocation3 + $0x1198] sm:$0xff]
        %v1066 = vld [vmem:[#allocation3 + $0x11a0] sm:$0xff]
        %v1067 = vld [vmem:[#allocation3 + $0x11a8] sm:$0xff]
        %v1068 = vld [vmem:[#allocation3 + $0x11b0] sm:$0xff]
        %v1069 = vld [vmem:[#allocation3 + $0x11b8] sm:$0xff]
        %v1070 = vld [vmem:[#allocation3 + $0x11c0] sm:$0xff]
        %v1071 = vld [vmem:[#allocation3 + $0x11c8] sm:$0xff]
        %v1072 = vld [vmem:[#allocation3 + $0x11d0] sm:$0xff]
        %v1073 = vld [vmem:[#allocation3 + $0x11d8] sm:$0xff]
        %v1074 = vld [vmem:[#allocation3 + $0x11e0] sm:$0xff]
        %v1075 = vld [vmem:[#allocation3 + $0x11e8] sm:$0xff]
        %v1076 = vld [vmem:[#allocation3 + $0x11f0] sm:$0xff]
        %v1077 = vld [vmem:[#allocation3 + $0x11f8] sm:$0xff]
        %v1078 = vld [vmem:[#allocation3 + $0x1200] sm:$0xff]
        %v1079 = vld [vmem:[#allocation3 + $0x1208] sm:$0xff]
        %v1080 = vld [vmem:[#allocation3 + $0x1210] sm:$0xff]
        %v1081 = vld [vmem:[#allocation3 + $0x1218] sm:$0xff]
        %v1082 = vld [vmem:[#allocation3 + $0x1220] sm:$0xff]
        %v1083 = vld [vmem:[#allocation3 + $0x1228] sm:$0xff]
        %v1084 = vld [vmem:[#allocation3 + $0x1230] sm:$0xff]
        %v1085 = vld [vmem:[#allocation3 + $0x1238] sm:$0xff]
        %v1086 = vld [vmem:[#allocation3 + $0x1240] sm:$0xff]
        %v1087 = vld [vmem:[#allocation3 + $0x1248] sm:$0xff]
        %v1088 = vld [vmem:[#allocation3 + $0x1250] sm:$0xff]
        %v1089 = vld [vmem:[#allocation3 + $0x1258] sm:$0xff]
        %v1090 = vld [vmem:[#allocation3 + $0x1260] sm:$0xff]
        %v1091 = vld [vmem:[#allocation3 + $0x1268] sm:$0xff]
        %v1092 = vld [vmem:[#allocation3 + $0x1270] sm:$0xff]
        %v1093 = vld [vmem:[#allocation3 + $0x1278] sm:$0xff]
        %v1094 = vld [vmem:[#allocation3 + $0x1280] sm:$0xff]
        %v1095 = vld [vmem:[#allocation3 + $0x1288] sm:$0xff]
        %v1096 = vld [vmem:[#allocation3 + $0x1290] sm:$0xff]
        %v1097 = vld [vmem:[#allocation3 + $0x1298] sm:$0xff]
        %v1098 = vld [vmem:[#allocation3 + $0x12a0] sm:$0xff]
        %v1099 = vld [vmem:[#allocation3 + $0x12a8] sm:$0xff]
        %v1100 = vld [vmem:[#allocation3 + $0x12b0] sm:$0xff]
        %v1101 = vld [vmem:[#allocation3 + $0x12b8] sm:$0xff]
        %v1102 = vld [vmem:[#allocation3 + $0x12c0] sm:$0xff]
        %v1103 = vld [vmem:[#allocation3 + $0x12c8] sm:$0xff]
        %v1104 = vld [vmem:[#allocation3 + $0x12d0] sm:$0xff]
        %v1105 = vld [vmem:[#allocation3 + $0x12d8] sm:$0xff]
        %v1106 = vld [vmem:[#allocation3 + $0x12e0] sm:$0xff]
        %v1107 = vld [vmem:[#allocation3 + $0x12e8] sm:$0xff]
        %v1108 = vld [vmem:[#allocation3 + $0x12f0] sm:$0xff]
        %v1109 = vld [vmem:[#allocation3 + $0x12f8] sm:$0xff]
        %v1110 = vld [vmem:[#allocation3 + $0x1300] sm:$0xff]
        %v1111 = vld [vmem:[#allocation3 + $0x1308] sm:$0xff]
        %v1112 = vld [vmem:[#allocation3 + $0x1310] sm:$0xff]
        %v1113 = vld [vmem:[#allocation3 + $0x1318] sm:$0xff]
        %v1114 = vld [vmem:[#allocation3 + $0x1320] sm:$0xff]
        %v1115 = vld [vmem:[#allocation3 + $0x1328] sm:$0xff]
        %v1116 = vld [vmem:[#allocation3 + $0x1330] sm:$0xff]
        %v1117 = vld [vmem:[#allocation3 + $0x1338] sm:$0xff]
        %v1118 = vld [vmem:[#allocation3 + $0x1340] sm:$0xff]
        %v1119 = vld [vmem:[#allocation3 + $0x1348] sm:$0xff]
        %v1120 = vld [vmem:[#allocation3 + $0x1350] sm:$0xff]
        %v1121 = vld [vmem:[#allocation3 + $0x1358] sm:$0xff]
        %v1122 = vld [vmem:[#allocation3 + $0x1360] sm:$0xff]
        %v1123 = vld [vmem:[#allocation3 + $0x1368] sm:$0xff]
        %v1124 = vld [vmem:[#allocation3 + $0x1370] sm:$0xff]
        %v1125 = vld [vmem:[#allocation3 + $0x1378] sm:$0xff]
        %v1126 = vld [vmem:[#allocation3 + $0x1380] sm:$0xff]
        %v1127 = vld [vmem:[#allocation3 + $0x1388] sm:$0xff]
        %v1128 = vld [vmem:[#allocation3 + $0x1390] sm:$0xff]
        %v1129 = vld [vmem:[#allocation3 + $0x1398] sm:$0xff]
        %v1130 = vld [vmem:[#allocation3 + $0x13a0] sm:$0xff]
        %v1131 = vld [vmem:[#allocation3 + $0x13a8] sm:$0xff]
        %v1132 = vld [vmem:[#allocation3 + $0x13b0] sm:$0xff]
        %v1133 = vld [vmem:[#allocation3 + $0x13b8] sm:$0xff]
        %v1134 = vld [vmem:[#allocation3 + $0x13c0] sm:$0xff]
        %v1135 = vld [vmem:[#allocation3 + $0x13c8] sm:$0xff]
        %v1136 = vld [vmem:[#allocation3 + $0x13d0] sm:$0xff]
        %v1137 = vld [vmem:[#allocation3 + $0x13d8] sm:$0xff]
        %v1138 = vld [vmem:[#allocation3 + $0x13e0] sm:$0xff]
        %v1139 = vld [vmem:[#allocation3 + $0x13e8] sm:$0xff]
        %v1140 = vld [vmem:[#allocation3 + $0x13f0] sm:$0xff]
        %v1141 = vld [vmem:[#allocation3 + $0x13f8] sm:$0xff]
        %v1142 = vld [vmem:[#allocation3 + $0x1400] sm:$0xff]
        %v1143 = vld [vmem:[#allocation3 + $0x1408] sm:$0xff]
        %v1144 = vld [vmem:[#allocation3 + $0x1410] sm:$0xff]
        %v1145 = vld [vmem:[#allocation3 + $0x1418] sm:$0xff]
        %v1146 = vld [vmem:[#allocation3 + $0x1420] sm:$0xff]
        %v1147 = vld [vmem:[#allocation3 + $0x1428] sm:$0xff]
        %v1148 = vld [vmem:[#allocation3 + $0x1430] sm:$0xff]
        %v1149 = vld [vmem:[#allocation3 + $0x1438] sm:$0xff]
        %v1150 = vld [vmem:[#allocation3 + $0x1440] sm:$0xff]
        %v1151 = vld [vmem:[#allocation3 + $0x1448] sm:$0xff]
        %v1152 = vld [vmem:[#allocation3 + $0x1450] sm:$0xff]
        %v1153 = vld [vmem:[#allocation3 + $0x1458] sm:$0xff]
        %v1154 = vld [vmem:[#allocation3 + $0x1460] sm:$0xff]
        %v1155 = vld [vmem:[#allocation3 + $0x1468] sm:$0xff]
        %v1156 = vld [vmem:[#allocation3 + $0x1470] sm:$0xff]
        %v1157 = vld [vmem:[#allocation3 + $0x1478] sm:$0xff]
        %v1158 = vld [vmem:[#allocation3 + $0x1480] sm:$0xff]
        %v1159 = vld [vmem:[#allocation3 + $0x1488] sm:$0xff]
        %v1160 = vld [vmem:[#allocation3 + $0x1490] sm:$0xff]
        %v1161 = vld [vmem:[#allocation3 + $0x1498] sm:$0xff]
        %v1162 = vld [vmem:[#allocation3 + $0x14a0] sm:$0xff]
        %v1163 = vld [vmem:[#allocation3 + $0x14a8] sm:$0xff]
        %v1164 = vld [vmem:[#allocation3 + $0x14b0] sm:$0xff]
        %v1165 = vld [vmem:[#allocation3 + $0x14b8] sm:$0xff]
        %v1166 = vld [vmem:[#allocation3 + $0x14c0] sm:$0xff]
        %v1167 = vld [vmem:[#allocation3 + $0x14c8] sm:$0xff]
        %v1168 = vld [vmem:[#allocation3 + $0x14d0] sm:$0xff]
        %v1169 = vld [vmem:[#allocation3 + $0x14d8] sm:$0xff]
        %v1170 = vld [vmem:[#allocation3 + $0x14e0] sm:$0xff]
        %v1171 = vld [vmem:[#allocation3 + $0x14e8] sm:$0xff]
        %v1172 = vld [vmem:[#allocation3 + $0x14f0] sm:$0xff]
        %v1173 = vld [vmem:[#allocation3 + $0x14f8] sm:$0xff]
        %v1174 = vld [vmem:[#allocation3 + $0x1500] sm:$0xff]
        %v1175 = vld [vmem:[#allocation3 + $0x1508] sm:$0xff]
        %v1176 = vld [vmem:[#allocation3 + $0x1510] sm:$0xff]
        %v1177 = vld [vmem:[#allocation3 + $0x1518] sm:$0xff]
        %v1178 = vld [vmem:[#allocation3 + $0x1520] sm:$0xff]
        %v1179 = vld [vmem:[#allocation3 + $0x1528] sm:$0xff]
        %v1180 = vld [vmem:[#allocation3 + $0x1530] sm:$0xff]
        %v1181 = vld [vmem:[#allocation3 + $0x1538] sm:$0xff]
        %v1182 = vld [vmem:[#allocation3 + $0x1540] sm:$0xff]
        %v1183 = vld [vmem:[#allocation3 + $0x1548] sm:$0xff]
        %v1184 = vld [vmem:[#allocation3 + $0x1550] sm:$0xff]
        %v1185 = vld [vmem:[#allocation3 + $0x1558] sm:$0xff]
        %v1186 = vld [vmem:[#allocation3 + $0x1560] sm:$0xff]
        %v1187 = vld [vmem:[#allocation3 + $0x1568] sm:$0xff]
        %v1188 = vld [vmem:[#allocation3 + $0x1570] sm:$0xff]
        %v1189 = vld [vmem:[#allocation3 + $0x1578] sm:$0xff]
        %v1190 = vld [vmem:[#allocation3 + $0x1580] sm:$0xff]
        %v1191 = vld [vmem:[#allocation3 + $0x1588] sm:$0xff]
        %v1192 = vld [vmem:[#allocation3 + $0x1590] sm:$0xff]
        %v1193 = vld [vmem:[#allocation3 + $0x1598] sm:$0xff]
        %v1194 = vld [vmem:[#allocation3 + $0x15a0] sm:$0xff]
        %v1195 = vld [vmem:[#allocation3 + $0x15a8] sm:$0xff]
        %v1196 = vld [vmem:[#allocation3 + $0x15b0] sm:$0xff]
        %v1197 = vld [vmem:[#allocation3 + $0x15b8] sm:$0xff]
        %v1198 = vld [vmem:[#allocation3 + $0x15c0] sm:$0xff]
        %v1199 = vld [vmem:[#allocation3 + $0x15c8] sm:$0xff]
        %v1200 = vld [vmem:[#allocation3 + $0x15d0] sm:$0xff]
        %v1201 = vld [vmem:[#allocation3 + $0x15d8] sm:$0xff]
        %v1202 = vld [vmem:[#allocation3 + $0x15e0] sm:$0xff]
        %v1203 = vld [vmem:[#allocation3 + $0x15e8] sm:$0xff]
        %v1204 = vld [vmem:[#allocation3 + $0x15f0] sm:$0xff]
        %v1205 = vld [vmem:[#allocation3 + $0x15f8] sm:$0xff]
        %v1206 = vld [vmem:[#allocation3 + $0x1600] sm:$0xff]
        %v1207 = vld [vmem:[#allocation3 + $0x1608] sm:$0xff]
        %v1208 = vld [vmem:[#allocation3 + $0x1610] sm:$0xff]
        %v1209 = vld [vmem:[#allocation3 + $0x1618] sm:$0xff]
        %v1210 = vld [vmem:[#allocation3 + $0x1620] sm:$0xff]
        %v1211 = vld [vmem:[#allocation3 + $0x1628] sm:$0xff]
        %v1212 = vld [vmem:[#allocation3 + $0x1630] sm:$0xff]
        %v1213 = vld [vmem:[#allocation3 + $0x1638] sm:$0xff]
        %v1214 = vld [vmem:[#allocation3 + $0x1640] sm:$0xff]
        %v1215 = vld [vmem:[#allocation3 + $0x1648] sm:$0xff]
        %v1216 = vld [vmem:[#allocation3 + $0x1650] sm:$0xff]
        %v1217 = vld [vmem:[#allocation3 + $0x1658] sm:$0xff]
        %v1218 = vld [vmem:[#allocation3 + $0x1660] sm:$0xff]
        %v1219 = vld [vmem:[#allocation3 + $0x1668] sm:$0xff]
        %v1220 = vld [vmem:[#allocation3 + $0x1670] sm:$0xff]
        %v1221 = vld [vmem:[#allocation3 + $0x1678] sm:$0xff]
        %v1222 = vld [vmem:[#allocation3 + $0x1680] sm:$0xff]
        %v1223 = vld [vmem:[#allocation3 + $0x1688] sm:$0xff]
        %v1224 = vld [vmem:[#allocation3 + $0x1690] sm:$0xff]
        %v1225 = vld [vmem:[#allocation3 + $0x1698] sm:$0xff]
        %v1226 = vld [vmem:[#allocation3 + $0x16a0] sm:$0xff]
        %v1227 = vld [vmem:[#allocation3 + $0x16a8] sm:$0xff]
        %v1228 = vld [vmem:[#allocation3 + $0x16b0] sm:$0xff]
        %v1229 = vld [vmem:[#allocation3 + $0x16b8] sm:$0xff]
        %v1230 = vld [vmem:[#allocation3 + $0x16c0] sm:$0xff]
        %v1231 = vld [vmem:[#allocation3 + $0x16c8] sm:$0xff]
        %v1232 = vld [vmem:[#allocation3 + $0x16d0] sm:$0xff]
        %v1233 = vld [vmem:[#allocation3 + $0x16d8] sm:$0xff]
        %v1234 = vld [vmem:[#allocation3 + $0x16e0] sm:$0xff]
        %v1235 = vld [vmem:[#allocation3 + $0x16e8] sm:$0xff]
        %v1236 = vld [vmem:[#allocation3 + $0x16f0] sm:$0xff]
        %v1237 = vld [vmem:[#allocation3 + $0x16f8] sm:$0xff]
        %v1238 = vld [vmem:[#allocation3 + $0x1700] sm:$0xff]
        %v1239 = vld [vmem:[#allocation3 + $0x1708] sm:$0xff]
        %v1240 = vld [vmem:[#allocation3 + $0x1710] sm:$0xff]
        %v1241 = vld [vmem:[#allocation3 + $0x1718] sm:$0xff]
        %v1242 = vld [vmem:[#allocation3 + $0x1720] sm:$0xff]
        %v1243 = vld [vmem:[#allocation3 + $0x1728] sm:$0xff]
        %v1244 = vld [vmem:[#allocation3 + $0x1730] sm:$0xff]
        %v1245 = vld [vmem:[#allocation3 + $0x1738] sm:$0xff]
        %v1246 = vld [vmem:[#allocation3 + $0x1740] sm:$0xff]
        %v1247 = vld [vmem:[#allocation3 + $0x1748] sm:$0xff]
        %v1248 = vld [vmem:[#allocation3 + $0x1750] sm:$0xff]
        %v1249 = vld [vmem:[#allocation3 + $0x1758] sm:$0xff]
        %v1250 = vld [vmem:[#allocation3 + $0x1760] sm:$0xff]
        %v1251 = vld [vmem:[#allocation3 + $0x1768] sm:$0xff]
        %v1252 = vld [vmem:[#allocation3 + $0x1770] sm:$0xff]
        %v1253 = vld [vmem:[#allocation3 + $0x1778] sm:$0xff]
        %v1254 = vld [vmem:[#allocation3 + $0x1780] sm:$0xff]
        %v1255 = vld [vmem:[#allocation3 + $0x1788] sm:$0xff]
        %v1256 = vld [vmem:[#allocation3 + $0x1790] sm:$0xff]
        %v1257 = vld [vmem:[#allocation3 + $0x1798] sm:$0xff]
        %v1258 = vld [vmem:[#allocation3 + $0x17a0] sm:$0xff]
        %v1259 = vld [vmem:[#allocation3 + $0x17a8] sm:$0xff]
        %v1260 = vld [vmem:[#allocation3 + $0x17b0] sm:$0xff]
        %v1261 = vld [vmem:[#allocation3 + $0x17b8] sm:$0xff]
        %v1262 = vld [vmem:[#allocation3 + $0x17c0] sm:$0xff]
        %v1263 = vld [vmem:[#allocation3 + $0x17c8] sm:$0xff]
        %v1264 = vld [vmem:[#allocation3 + $0x17d0] sm:$0xff]
        %v1265 = vld [vmem:[#allocation3 + $0x17d8] sm:$0xff]
        %v1266 = vld [vmem:[#allocation3 + $0x17e0] sm:$0xff]
        %v1267 = vld [vmem:[#allocation3 + $0x17e8] sm:$0xff]
        %v1268 = vld [vmem:[#allocation3 + $0x17f0] sm:$0xff]
        %v1269 = vld [vmem:[#allocation3 + $0x17f8] sm:$0xff]
        %v1270 = vld [vmem:[#allocation3 + $0x1800] sm:$0xff]
        %v1271 = vld [vmem:[#allocation3 + $0x1808] sm:$0xff]
        %v1272 = vld [vmem:[#allocation3 + $0x1810] sm:$0xff]
        %v1273 = vld [vmem:[#allocation3 + $0x1818] sm:$0xff]
        %v1274 = vld [vmem:[#allocation3 + $0x1820] sm:$0xff]
        %v1275 = vld [vmem:[#allocation3 + $0x1828] sm:$0xff]
        %v1276 = vld [vmem:[#allocation3 + $0x1830] sm:$0xff]
        %v1277 = vld [vmem:[#allocation3 + $0x1838] sm:$0xff]
        %v1278 = vld [vmem:[#allocation3 + $0x1840] sm:$0xff]
        %v1279 = vld [vmem:[#allocation3 + $0x1848] sm:$0xff]
        %v1280 = vld [vmem:[#allocation3 + $0x1850] sm:$0xff]
        %v1281 = vld [vmem:[#allocation3 + $0x1858] sm:$0xff]
        %v1282 = vld [vmem:[#allocation3 + $0x1860] sm:$0xff]
        %v1283 = vld [vmem:[#allocation3 + $0x1868] sm:$0xff]
        %v1284 = vld [vmem:[#allocation3 + $0x1870] sm:$0xff]
        %v1285 = vld [vmem:[#allocation3 + $0x1878] sm:$0xff]
        %v1286 = vld [vmem:[#allocation3 + $0x1880] sm:$0xff]
        %v1287 = vld [vmem:[#allocation3 + $0x1888] sm:$0xff]
        %v1288 = vld [vmem:[#allocation3 + $0x1890] sm:$0xff]
        %v1289 = vld [vmem:[#allocation3 + $0x1898] sm:$0xff]
        %v1290 = vld [vmem:[#allocation3 + $0x18a0] sm:$0xff]
        %v1291 = vld [vmem:[#allocation3 + $0x18a8] sm:$0xff]
        %v1292 = vld [vmem:[#allocation3 + $0x18b0] sm:$0xff]
        %v1293 = vld [vmem:[#allocation3 + $0x18b8] sm:$0xff]
        %v1294 = vld [vmem:[#allocation3 + $0x18c0] sm:$0xff]
        %v1295 = vld [vmem:[#allocation3 + $0x18c8] sm:$0xff]
        %v1296 = vld [vmem:[#allocation3 + $0x18d0] sm:$0xff]
        %v1297 = vld [vmem:[#allocation3 + $0x18d8] sm:$0xff]
        %v1298 = vld [vmem:[#allocation3 + $0x18e0] sm:$0xff]
        %v1299 = vld [vmem:[#allocation3 + $0x18e8] sm:$0xff]
        %v1300 = vld [vmem:[#allocation3 + $0x18f0] sm:$0xff]
        %v1301 = vld [vmem:[#allocation3 + $0x18f8] sm:$0xff]
        %v1302 = vld [vmem:[#allocation3 + $0x1900] sm:$0xff]
        %v1303 = vld [vmem:[#allocation3 + $0x1908] sm:$0xff]
        %v1304 = vld [vmem:[#allocation3 + $0x1910] sm:$0xff]
        %v1305 = vld [vmem:[#allocation3 + $0x1918] sm:$0xff]
        %v1306 = vld [vmem:[#allocation3 + $0x1920] sm:$0xff]
        %v1307 = vld [vmem:[#allocation3 + $0x1928] sm:$0xff]
        %v1308 = vld [vmem:[#allocation3 + $0x1930] sm:$0xff]
        %v1309 = vld [vmem:[#allocation3 + $0x1938] sm:$0xff]
        %v1310 = vld [vmem:[#allocation3 + $0x1940] sm:$0xff]
        %v1311 = vld [vmem:[#allocation3 + $0x1948] sm:$0xff]
        %v1312 = vld [vmem:[#allocation3 + $0x1950] sm:$0xff]
        %v1313 = vld [vmem:[#allocation3 + $0x1958] sm:$0xff]
        %v1314 = vld [vmem:[#allocation3 + $0x1960] sm:$0xff]
        %v1315 = vld [vmem:[#allocation3 + $0x1968] sm:$0xff]
        %v1316 = vld [vmem:[#allocation3 + $0x1970] sm:$0xff]
        %v1317 = vld [vmem:[#allocation3 + $0x1978] sm:$0xff]
        %v1318 = vld [vmem:[#allocation3 + $0x1980] sm:$0xff]
        %v1319 = vld [vmem:[#allocation3 + $0x1988] sm:$0xff]
        %v1320 = vld [vmem:[#allocation3 + $0x1990] sm:$0xff]
        %v1321 = vld [vmem:[#allocation3 + $0x1998] sm:$0xff]
        %v1322 = vld [vmem:[#allocation3 + $0x19a0] sm:$0xff]
        %v1323 = vld [vmem:[#allocation3 + $0x19a8] sm:$0xff]
        %v1324 = vld [vmem:[#allocation3 + $0x19b0] sm:$0xff]
        %v1325 = vld [vmem:[#allocation3 + $0x19b8] sm:$0xff]
        %v1326 = vld [vmem:[#allocation3 + $0x19c0] sm:$0xff]
        %v1327 = vld [vmem:[#allocation3 + $0x19c8] sm:$0xff]
        %v1328 = vld [vmem:[#allocation3 + $0x19d0] sm:$0xff]
        %v1329 = vld [vmem:[#allocation3 + $0x19d8] sm:$0xff]
        %v1330 = vld [vmem:[#allocation3 + $0x19e0] sm:$0xff]
        %v1331 = vld [vmem:[#allocation3 + $0x19e8] sm:$0xff]
        %v1332 = vld [vmem:[#allocation3 + $0x19f0] sm:$0xff]
        %v1333 = vld [vmem:[#allocation3 + $0x19f8] sm:$0xff]
        %v1334 = vld [vmem:[#allocation3 + $0x1a00] sm:$0xff]
        %v1335 = vld [vmem:[#allocation3 + $0x1a08] sm:$0xff]
        %v1336 = vld [vmem:[#allocation3 + $0x1a10] sm:$0xff]
        %v1337 = vld [vmem:[#allocation3 + $0x1a18] sm:$0xff]
        %v1338 = vld [vmem:[#allocation3 + $0x1a20] sm:$0xff]
        %v1339 = vld [vmem:[#allocation3 + $0x1a28] sm:$0xff]
        %v1340 = vld [vmem:[#allocation3 + $0x1a30] sm:$0xff]
        %v1341 = vld [vmem:[#allocation3 + $0x1a38] sm:$0xff]
        %v1342 = vld [vmem:[#allocation3 + $0x1a40] sm:$0xff]
        %v1343 = vld [vmem:[#allocation3 + $0x1a48] sm:$0xff]
        %v1344 = vld [vmem:[#allocation3 + $0x1a50] sm:$0xff]
        %v1345 = vld [vmem:[#allocation3 + $0x1a58] sm:$0xff]
        %v1346 = vld [vmem:[#allocation3 + $0x1a60] sm:$0xff]
        %v1347 = vld [vmem:[#allocation3 + $0x1a68] sm:$0xff]
        %v1348 = vld [vmem:[#allocation3 + $0x1a70] sm:$0xff]
        %v1349 = vld [vmem:[#allocation3 + $0x1a78] sm:$0xff]
        %v1350 = vld [vmem:[#allocation3 + $0x1a80] sm:$0xff]
        %v1351 = vld [vmem:[#allocation3 + $0x1a88] sm:$0xff]
        %v1352 = vld [vmem:[#allocation3 + $0x1a90] sm:$0xff]
        %v1353 = vld [vmem:[#allocation3 + $0x1a98] sm:$0xff]
        %v1354 = vld [vmem:[#allocation3 + $0x1aa0] sm:$0xff]
        %v1355 = vld [vmem:[#allocation3 + $0x1aa8] sm:$0xff]
        %v1356 = vld [vmem:[#allocation3 + $0x1ab0] sm:$0xff]
        %v1357 = vld [vmem:[#allocation3 + $0x1ab8] sm:$0xff]
        %v1358 = vld [vmem:[#allocation3 + $0x1ac0] sm:$0xff]
        %v1359 = vld [vmem:[#allocation3 + $0x1ac8] sm:$0xff]
        %v1360 = vld [vmem:[#allocation3 + $0x1ad0] sm:$0xff]
        %v1361 = vld [vmem:[#allocation3 + $0x1ad8] sm:$0xff]
        %v1362 = vld [vmem:[#allocation3 + $0x1ae0] sm:$0xff]
        %v1363 = vld [vmem:[#allocation3 + $0x1ae8] sm:$0xff]
        %v1364 = vld [vmem:[#allocation3 + $0x1af0] sm:$0xff]
        %v1365 = vld [vmem:[#allocation3 + $0x1af8] sm:$0xff]
        %v1366 = vld [vmem:[#allocation3 + $0x1b00] sm:$0xff]
        %v1367 = vld [vmem:[#allocation3 + $0x1b08] sm:$0xff]
        %v1368 = vld [vmem:[#allocation3 + $0x1b10] sm:$0xff]
        %v1369 = vld [vmem:[#allocation3 + $0x1b18] sm:$0xff]
        %v1370 = vld [vmem:[#allocation3 + $0x1b20] sm:$0xff]
        %v1371 = vld [vmem:[#allocation3 + $0x1b28] sm:$0xff]
        %v1372 = vld [vmem:[#allocation3 + $0x1b30] sm:$0xff]
        %v1373 = vld [vmem:[#allocation3 + $0x1b38] sm:$0xff]
        %v1374 = vld [vmem:[#allocation3 + $0x1b40] sm:$0xff]
        %v1375 = vld [vmem:[#allocation3 + $0x1b48] sm:$0xff]
        %v1376 = vld [vmem:[#allocation3 + $0x1b50] sm:$0xff]
        %v1377 = vld [vmem:[#allocation3 + $0x1b58] sm:$0xff]
        %v1378 = vld [vmem:[#allocation3 + $0x1b60] sm:$0xff]
        %v1379 = vld [vmem:[#allocation3 + $0x1b68] sm:$0xff]
        %v1380 = vld [vmem:[#allocation3 + $0x1b70] sm:$0xff]
        %v1381 = vld [vmem:[#allocation3 + $0x1b78] sm:$0xff]
        %v1382 = vld [vmem:[#allocation3 + $0x1b80] sm:$0xff]
        %v1383 = vld [vmem:[#allocation3 + $0x1b88] sm:$0xff]
        %v1384 = vld [vmem:[#allocation3 + $0x1b90] sm:$0xff]
        %v1385 = vld [vmem:[#allocation3 + $0x1b98] sm:$0xff]
        %v1386 = vld [vmem:[#allocation3 + $0x1ba0] sm:$0xff]
        %v1387 = vld [vmem:[#allocation3 + $0x1ba8] sm:$0xff]
        %v1388 = vld [vmem:[#allocation3 + $0x1bb0] sm:$0xff]
        %v1389 = vld [vmem:[#allocation3 + $0x1bb8] sm:$0xff]
        %v1390 = vld [vmem:[#allocation3 + $0x1bc0] sm:$0xff]
        %v1391 = vld [vmem:[#allocation3 + $0x1bc8] sm:$0xff]
        %v1392 = vld [vmem:[#allocation3 + $0x1bd0] sm:$0xff]
        %v1393 = vld [vmem:[#allocation3 + $0x1bd8] sm:$0xff]
        %v1394 = vld [vmem:[#allocation3 + $0x1be0] sm:$0xff]
        %v1395 = vld [vmem:[#allocation3 + $0x1be8] sm:$0xff]
        %v1396 = vld [vmem:[#allocation3 + $0x1bf0] sm:$0xff]
        %v1397 = vld [vmem:[#allocation3 + $0x1bf8] sm:$0xff]
        %1398 = vmatprep.subr.mxu0 %v503
        %1399 = vmatpush1.msra.mxu0 %v502
        %1400 = vmatprep.subr.mxu0 %v505
        %1401 = vmatpush1.msra.mxu0 %v504
        %1402 = vmatprep.subr.mxu0 %v507
        %1403 = vmatpush1.msra.mxu0 %v506
        %1404 = vmatprep.subr.mxu0 %v509
        %1405 = vmatpush1.msra.mxu0 %v508
        %1406 = vmatprep.subr.mxu0 %v511
        %1407 = vmatpush1.msra.mxu0 %v510
        %1408 = vmatprep.subr.mxu0 %v513
        %1409 = vmatpush1.msra.mxu0 %v512
        %1410 = vmatprep.subr.mxu0 %v515
        %1411 = vmatpush1.msra.mxu0 %v514
        %1412 = vmatprep.subr.mxu0 %v517
        %1413 = vmatpush1.msra.mxu0 %v516
        %1414 = vmatprep.subr.mxu0 %v519
        %1415 = vmatpush1.msra.mxu0 %v518
        %1416 = vmatprep.subr.mxu0 %v521
        %1417 = vmatpush1.msra.mxu0 %v520
        %1418 = vmatprep.subr.mxu0 %v523
        %1419 = vmatpush1.msra.mxu0 %v522
        %1420 = vmatprep.subr.mxu0 %v525
        %1421 = vmatpush1.msra.mxu0 %v524
        %1422 = vmatprep.subr.mxu0 %v527
        %1423 = vmatpush1.msra.mxu0 %v526
        %1424 = vmatprep.subr.mxu0 %v529
        %1425 = vmatpush1.msra.mxu0 %v528
        %1426 = vmatprep.subr.mxu0 %v531
        %1427 = vmatpush1.msra.mxu0 %v530
        %1428 = vmatprep.subr.mxu0 %v533
        %1429 = vmatpush1.msra.mxu0 %v532
        %1430 = vmatprep.subr.mxu0 %v535
        %1431 = vmatpush1.msra.mxu0 %v534
        %1432 = vmatprep.subr.mxu0 %v537
        %1433 = vmatpush1.msra.mxu0 %v536
        %1434 = vmatprep.subr.mxu0 %v539
        %1435 = vmatpush1.msra.mxu0 %v538
        %1436 = vmatprep.subr.mxu0 %v541
        %1437 = vmatpush1.msra.mxu0 %v540
        %1438 = vmatprep.subr.mxu0 %v543
        %1439 = vmatpush1.msra.mxu0 %v542
        %1440 = vmatprep.subr.mxu0 %v545
        %1441 = vmatpush1.msra.mxu0 %v544
        %1442 = vmatprep.subr.mxu0 %v547
        %1443 = vmatpush1.msra.mxu0 %v546
        %1444 = vmatprep.subr.mxu0 %v549
        %1445 = vmatpush1.msra.mxu0 %v548
        %1446 = vmatprep.subr.mxu0 %v551
        %1447 = vmatpush1.msra.mxu0 %v550
        %1448 = vmatprep.subr.mxu0 %v553
        %1449 = vmatpush1.msra.mxu0 %v552
        %1450 = vmatprep.subr.mxu0 %v555
        %1451 = vmatpush1.msra.mxu0 %v554
        %1452 = vmatprep.subr.mxu0 %v557
        %1453 = vmatpush1.msra.mxu0 %v556
        %1454 = vmatprep.subr.mxu0 %v559
        %1455 = vmatpush1.msra.mxu0 %v558
        %1456 = vmatprep.subr.mxu0 %v561
        %1457 = vmatpush1.msra.mxu0 %v560
        %1458 = vmatprep.subr.mxu0 %v563
        %1459 = vmatpush1.msra.mxu0 %v562
        %1460 = vmatprep.subr.mxu0 %v565
        %1461 = vmatpush1.msra.mxu0 %v564
        %1462 = vmatprep.mubr.f32.mxu0 %v447
        %1463 = vmatmul.mubr.f32.gmra.mrb[0].mxu0 %v446
        %v1464 = vpop.f32.mrb[0].mxu0
        %v1465 = vadd.f32 0.0, %v1464
        %v1466 = vpop.f32.mrb[0].mxu0
        %v1467 = vadd.f32 0.0, %v1466
        %1468 = vmatprep.mubr.f32.mxu0 %v475
        %1469 = vmatmul.mubr.f32.gmra.mrb[0].mxu0 %v474
        %v1470 = vpop.f32.mrb[0].mxu0
        %v1471 = vadd.f32 0.0, %v1470
        %v1472 = vpop.f32.mrb[0].mxu0
        %v1473 = vadd.f32 0.0, %v1472
        %1474 = vdwg.mxu0
        %1475 = vmatprep.subr.mxu0 %v567
        %1476 = vmatpush1.msra.mxu0 %v566
        %1477 = vmatprep.subr.mxu0 %v569
        %1478 = vmatpush1.msra.mxu0 %v568
        %1479 = vmatprep.subr.mxu0 %v571
        %1480 = vmatpush1.msra.mxu0 %v570
        %1481 = vmatprep.subr.mxu0 %v573
        %1482 = vmatpush1.msra.mxu0 %v572
        %1483 = vmatprep.subr.mxu0 %v575
        %1484 = vmatpush1.msra.mxu0 %v574
        %1485 = vmatprep.subr.mxu0 %v577
        %1486 = vmatpush1.msra.mxu0 %v576
        %1487 = vmatprep.subr.mxu0 %v579
        %1488 = vmatpush1.msra.mxu0 %v578
        %1489 = vmatprep.subr.mxu0 %v581
        %1490 = vmatpush1.msra.mxu0 %v580
        %1491 = vmatprep.subr.mxu0 %v583
        %1492 = vmatpush1.msra.mxu0 %v582
        %1493 = vmatprep.subr.mxu0 %v585
        %1494 = vmatpush1.msra.mxu0 %v584
        %1495 = vmatprep.subr.mxu0 %v587
        %1496 = vmatpush1.msra.mxu0 %v586
        %1497 = vmatprep.subr.mxu0 %v589
        %1498 = vmatpush1.msra.mxu0 %v588
        %1499 = vmatprep.subr.mxu0 %v591
        %1500 = vmatpush1.msra.mxu0 %v590
        %1501 = vmatprep.subr.mxu0 %v593
        %1502 = vmatpush1.msra.mxu0 %v592
        %1503 = vmatprep.subr.mxu0 %v595
        %1504 = vmatpush1.msra.mxu0 %v594
        %1505 = vmatprep.subr.mxu0 %v597
        %1506 = vmatpush1.msra.mxu0 %v596
        %1507 = vmatprep.subr.mxu0 %v599
        %1508 = vmatpush1.msra.mxu0 %v598
        %1509 = vmatprep.subr.mxu0 %v601
        %1510 = vmatpush1.msra.mxu0 %v600
        %1511 = vmatprep.subr.mxu0 %v603
        %1512 = vmatpush1.msra.mxu0 %v602
        %1513 = vmatprep.subr.mxu0 %v605
        %1514 = vmatpush1.msra.mxu0 %v604
        %1515 = vmatprep.subr.mxu0 %v607
        %1516 = vmatpush1.msra.mxu0 %v606
        %1517 = vmatprep.subr.mxu0 %v609
        %1518 = vmatpush1.msra.mxu0 %v608
        %1519 = vmatprep.subr.mxu0 %v611
        %1520 = vmatpush1.msra.mxu0 %v610
        %1521 = vmatprep.subr.mxu0 %v613
        %1522 = vmatpush1.msra.mxu0 %v612
        %1523 = vmatprep.subr.mxu0 %v615
        %1524 = vmatpush1.msra.mxu0 %v614
        %1525 = vmatprep.subr.mxu0 %v617
        %1526 = vmatpush1.msra.mxu0 %v616
        %1527 = vmatprep.subr.mxu0 %v619
        %1528 = vmatpush1.msra.mxu0 %v618
        %1529 = vmatprep.subr.mxu0 %v621
        %1530 = vmatpush1.msra.mxu0 %v620
        %1531 = vmatprep.subr.mxu0 %v623
        %1532 = vmatpush1.msra.mxu0 %v622
        %1533 = vmatprep.subr.mxu0 %v625
        %1534 = vmatpush1.msra.mxu0 %v624
        %1535 = vmatprep.subr.mxu0 %v627
        %1536 = vmatpush1.msra.mxu0 %v626
        %1537 = vmatprep.subr.mxu0 %v629
        %1538 = vmatpush1.msra.mxu0 %v628
        %1539 = vmatprep.mubr.f32.mxu0 %v449
        %1540 = vmatmul.mubr.f32.gmra.mrb[0].mxu0 %v448
        %v1541 = vpop.f32.mrb[0].mxu0
        %v1542 = vadd.f32 %v1465, %v1541
        %v1543 = vpop.f32.mrb[0].mxu0
        %v1544 = vadd.f32 %v1467, %v1543
        %1545 = vmatprep.mubr.f32.mxu0 %v477
        %1546 = vmatmul.mubr.f32.gmra.mrb[0].mxu0 %v476
        %v1547 = vpop.f32.mrb[0].mxu0
        %v1548 = vadd.f32 %v1471, %v1547
        %v1549 = vpop.f32.mrb[0].mxu0
        %v1550 = vadd.f32 %v1473, %v1549
        %1551 = vdwg.mxu0
        %1552 = vmatprep.subr.mxu0 %v631
        %1553 = vmatpush1.msra.mxu0 %v630
        %1554 = vmatprep.subr.mxu0 %v633
        %1555 = vmatpush1.msra.mxu0 %v632
        %1556 = vmatprep.subr.mxu0 %v635
        %1557 = vmatpush1.msra.mxu0 %v634
        %1558 = vmatprep.subr.mxu0 %v637
        %1559 = vmatpush1.msra.mxu0 %v636
        %1560 = vmatprep.subr.mxu0 %v639
        %1561 = vmatpush1.msra.mxu0 %v638
        %1562 = vmatprep.subr.mxu0 %v641
        %1563 = vmatpush1.msra.mxu0 %v640
        %1564 = vmatprep.subr.mxu0 %v643
        %1565 = vmatpush1.msra.mxu0 %v642
        %1566 = vmatprep.subr.mxu0 %v645
        %1567 = vmatpush1.msra.mxu0 %v644
        %1568 = vmatprep.subr.mxu0 %v647
        %1569 = vmatpush1.msra.mxu0 %v646
        %1570 = vmatprep.subr.mxu0 %v649
        %1571 = vmatpush1.msra.mxu0 %v648
        %1572 = vmatprep.subr.mxu0 %v651
        %1573 = vmatpush1.msra.mxu0 %v650
        %1574 = vmatprep.subr.mxu0 %v653
        %1575 = vmatpush1.msra.mxu0 %v652
        %1576 = vmatprep.subr.mxu0 %v655
        %1577 = vmatpush1.msra.mxu0 %v654
        %1578 = vmatprep.subr.mxu0 %v657
        %1579 = vmatpush1.msra.mxu0 %v656
        %1580 = vmatprep.subr.mxu0 %v659
        %1581 = vmatpush1.msra.mxu0 %v658
        %1582 = vmatprep.subr.mxu0 %v661
        %1583 = vmatpush1.msra.mxu0 %v660
        %1584 = vmatprep.subr.mxu0 %v663
        %1585 = vmatpush1.msra.mxu0 %v662
        %1586 = vmatprep.subr.mxu0 %v665
        %1587 = vmatpush1.msra.mxu0 %v664
        %1588 = vmatprep.subr.mxu0 %v667
        %1589 = vmatpush1.msra.mxu0 %v666
        %1590 = vmatprep.subr.mxu0 %v669
        %1591 = vmatpush1.msra.mxu0 %v668
        %1592 = vmatprep.subr.mxu0 %v671
        %1593 = vmatpush1.msra.mxu0 %v670
        %1594 = vmatprep.subr.mxu0 %v673
        %1595 = vmatpush1.msra.mxu0 %v672
        %1596 = vmatprep.subr.mxu0 %v675
        %1597 = vmatpush1.msra.mxu0 %v674
        %1598 = vmatprep.subr.mxu0 %v677
        %1599 = vmatpush1.msra.mxu0 %v676
        %1600 = vmatprep.subr.mxu0 %v679
        %1601 = vmatpush1.msra.mxu0 %v678
        %1602 = vmatprep.subr.mxu0 %v681
        %1603 = vmatpush1.msra.mxu0 %v680
        %1604 = vmatprep.subr.mxu0 %v683
        %1605 = vmatpush1.msra.mxu0 %v682
        %1606 = vmatprep.subr.mxu0 %v685
        %1607 = vmatpush1.msra.mxu0 %v684
        %1608 = vmatprep.subr.mxu0 %v687
        %1609 = vmatpush1.msra.mxu0 %v686
        %1610 = vmatprep.subr.mxu0 %v689
        %1611 = vmatpush1.msra.mxu0 %v688
        %1612 = vmatprep.subr.mxu0 %v691
        %1613 = vmatpush1.msra.mxu0 %v690
        %1614 = vmatprep.subr.mxu0 %v693
        %1615 = vmatpush1.msra.mxu0 %v692
        %1616 = vmatprep.mubr.f32.mxu0 %v451
        %1617 = vmatmul.mubr.f32.gmra.mrb[0].mxu0 %v450
        %v1618 = vpop.f32.mrb[0].mxu0
        %v1619 = vadd.f32 %v1542, %v1618
        %v1620 = vpop.f32.mrb[0].mxu0
        %v1621 = vadd.f32 %v1544, %v1620
        %1622 = vmatprep.mubr.f32.mxu0 %v479
        %1623 = vmatmul.mubr.f32.gmra.mrb[0].mxu0 %v478
        %v1624 = vpop.f32.mrb[0].mxu0
        %v1625 = vadd.f32 %v1548, %v1624
        %v1626 = vpop.f32.mrb[0].mxu0
        %v1627 = vadd.f32 %v1550, %v1626
        %1628 = vdwg.mxu0
        %1629 = vmatprep.subr.mxu0 %v695
        %1630 = vmatpush1.msra.mxu0 %v694
        %1631 = vmatprep.subr.mxu0 %v697
        %1632 = vmatpush1.msra.mxu0 %v696
        %1633 = vmatprep.subr.mxu0 %v699
        %1634 = vmatpush1.msra.mxu0 %v698
        %1635 = vmatprep.subr.mxu0 %v701
        %1636 = vmatpush1.msra.mxu0 %v700
        %1637 = vmatprep.subr.mxu0 %v703
        %1638 = vmatpush1.msra.mxu0 %v702
        %1639 = vmatprep.subr.mxu0 %v705
        %1640 = vmatpush1.msra.mxu0 %v704
        %1641 = vmatprep.subr.mxu0 %v707
        %1642 = vmatpush1.msra.mxu0 %v706
        %1643 = vmatprep.subr.mxu0 %v709
        %1644 = vmatpush1.msra.mxu0 %v708
        %1645 = vmatprep.subr.mxu0 %v711
        %1646 = vmatpush1.msra.mxu0 %v710
        %1647 = vmatprep.subr.mxu0 %v713
        %1648 = vmatpush1.msra.mxu0 %v712
        %1649 = vmatprep.subr.mxu0 %v715
        %1650 = vmatpush1.msra.mxu0 %v714
        %1651 = vmatprep.subr.mxu0 %v717
        %1652 = vmatpush1.msra.mxu0 %v716
        %1653 = vmatprep.subr.mxu0 %v719
        %1654 = vmatpush1.msra.mxu0 %v718
        %1655 = vmatprep.subr.mxu0 %v721
        %1656 = vmatpush1.msra.mxu0 %v720
        %1657 = vmatprep.subr.mxu0 %v723
        %1658 = vmatpush1.msra.mxu0 %v722
        %1659 = vmatprep.subr.mxu0 %v725
        %1660 = vmatpush1.msra.mxu0 %v724
        %1661 = vmatprep.subr.mxu0 %v727
        %1662 = vmatpush1.msra.mxu0 %v726
        %1663 = vmatprep.subr.mxu0 %v729
        %1664 = vmatpush1.msra.mxu0 %v728
        %1665 = vmatprep.subr.mxu0 %v731
        %1666 = vmatpush1.msra.mxu0 %v730
        %1667 = vmatprep.subr.mxu0 %v733
        %1668 = vmatpush1.msra.mxu0 %v732
        %1669 = vmatprep.subr.mxu0 %v735
        %1670 = vmatpush1.msra.mxu0 %v734
        %1671 = vmatprep.subr.mxu0 %v737
        %1672 = vmatpush1.msra.mxu0 %v736
        %1673 = vmatprep.subr.mxu0 %v739
        %1674 = vmatpush1.msra.mxu0 %v738
        %1675 = vmatprep.subr.mxu0 %v741
        %1676 = vmatpush1.msra.mxu0 %v740
        %1677 = vmatprep.subr.mxu0 %v743
        %1678 = vmatpush1.msra.mxu0 %v742
        %1679 = vmatprep.subr.mxu0 %v745
        %1680 = vmatpush1.msra.mxu0 %v744
        %1681 = vmatprep.subr.mxu0 %v747
        %1682 = vmatpush1.msra.mxu0 %v746
        %1683 = vmatprep.subr.mxu0 %v749
        %1684 = vmatpush1.msra.mxu0 %v748
        %1685 = vmatprep.subr.mxu0 %v751
        %1686 = vmatpush1.msra.mxu0 %v750
        %1687 = vmatprep.subr.mxu0 %v753
        %1688 = vmatpush1.msra.mxu0 %v752
        %1689 = vmatprep.subr.mxu0 %v755
        %1690 = vmatpush1.msra.mxu0 %v754
        %1691 = vmatprep.subr.mxu0 %v757
        %1692 = vmatpush1.msra.mxu0 %v756
        %1693 = vmatprep.mubr.f32.mxu0 %v453
        %1694 = vmatmul.mubr.f32.gmra.mrb[0].mxu0 %v452
        %v1695 = vpop.f32.mrb[0].mxu0
        %v1696 = vadd.f32 %v1619, %v1695
        %v1697 = vpop.f32.mrb[0].mxu0
        %v1698 = vadd.f32 %v1621, %v1697
        %1699 = vmatprep.mubr.f32.mxu0 %v481
        %1700 = vmatmul.mubr.f32.gmra.mrb[0].mxu0 %v480
        %v1701 = vpop.f32.mrb[0].mxu0
        %v1702 = vadd.f32 %v1625, %v1701
        %v1703 = vpop.f32.mrb[0].mxu0
        %v1704 = vadd.f32 %v1627, %v1703
        %1705 = vdwg.mxu0
        %1706 = vmatprep.subr.mxu0 %v759
        %1707 = vmatpush1.msra.mxu0 %v758
        %1708 = vmatprep.subr.mxu0 %v761
        %1709 = vmatpush1.msra.mxu0 %v760
        %1710 = vmatprep.subr.mxu0 %v763
        %1711 = vmatpush1.msra.mxu0 %v762
        %1712 = vmatprep.subr.mxu0 %v765
        %1713 = vmatpush1.msra.mxu0 %v764
        %1714 = vmatprep.subr.mxu0 %v767
        %1715 = vmatpush1.msra.mxu0 %v766
        %1716 = vmatprep.subr.mxu0 %v769
        %1717 = vmatpush1.msra.mxu0 %v768
        %1718 = vmatprep.subr.mxu0 %v771
        %1719 = vmatpush1.msra.mxu0 %v770
        %1720 = vmatprep.subr.mxu0 %v773
        %1721 = vmatpush1.msra.mxu0 %v772
        %1722 = vmatprep.subr.mxu0 %v775
        %1723 = vmatpush1.msra.mxu0 %v774
        %1724 = vmatprep.subr.mxu0 %v777
        %1725 = vmatpush1.msra.mxu0 %v776
        %1726 = vmatprep.subr.mxu0 %v779
        %1727 = vmatpush1.msra.mxu0 %v778
        %1728 = vmatprep.subr.mxu0 %v781
        %1729 = vmatpush1.msra.mxu0 %v780
        %1730 = vmatprep.subr.mxu0 %v783
        %1731 = vmatpush1.msra.mxu0 %v782
        %1732 = vmatprep.subr.mxu0 %v785
        %1733 = vmatpush1.msra.mxu0 %v784
        %1734 = vmatprep.subr.mxu0 %v787
        %1735 = vmatpush1.msra.mxu0 %v786
        %1736 = vmatprep.subr.mxu0 %v789
        %1737 = vmatpush1.msra.mxu0 %v788
        %1738 = vmatprep.subr.mxu0 %v791
        %1739 = vmatpush1.msra.mxu0 %v790
        %1740 = vmatprep.subr.mxu0 %v793
        %1741 = vmatpush1.msra.mxu0 %v792
        %1742 = vmatprep.subr.mxu0 %v795
        %1743 = vmatpush1.msra.mxu0 %v794
        %1744 = vmatprep.subr.mxu0 %v797
        %1745 = vmatpush1.msra.mxu0 %v796
        %1746 = vmatprep.subr.mxu0 %v799
        %1747 = vmatpush1.msra.mxu0 %v798
        %1748 = vmatprep.subr.mxu0 %v801
        %1749 = vmatpush1.msra.mxu0 %v800
        %1750 = vmatprep.subr.mxu0 %v803
        %1751 = vmatpush1.msra.mxu0 %v802
        %1752 = vmatprep.subr.mxu0 %v805
        %1753 = vmatpush1.msra.mxu0 %v804
        %1754 = vmatprep.subr.mxu0 %v807
        %1755 = vmatpush1.msra.mxu0 %v806
        %1756 = vmatprep.subr.mxu0 %v809
        %1757 = vmatpush1.msra.mxu0 %v808
        %1758 = vmatprep.subr.mxu0 %v811
        %1759 = vmatpush1.msra.mxu0 %v810
        %1760 = vmatprep.subr.mxu0 %v813
        %1761 = vmatpush1.msra.mxu0 %v812
        %1762 = vmatprep.subr.mxu0 %v815
        %1763 = vmatpush1.msra.mxu0 %v814
        %1764 = vmatprep.subr.mxu0 %v817
        %1765 = vmatpush1.msra.mxu0 %v816
        %1766 = vmatprep.subr.mxu0 %v819
        %1767 = vmatpush1.msra.mxu0 %v818
        %1768 = vmatprep.subr.mxu0 %v821
        %1769 = vmatpush1.msra.mxu0 %v820
        %1770 = vmatprep.mubr.f32.mxu0 %v455
        %1771 = vmatmul.mubr.f32.gmra.mrb[0].mxu0 %v454
        %v1772 = vpop.f32.mrb[0].mxu0
        %v1773 = vadd.f32 %v1696, %v1772
        %v1774 = vpop.f32.mrb[0].mxu0
        %v1775 = vadd.f32 %v1698, %v1774
        %1776 = vmatprep.mubr.f32.mxu0 %v483
        %1777 = vmatmul.mubr.f32.gmra.mrb[0].mxu0 %v482
        %v1778 = vpop.f32.mrb[0].mxu0
        %v1779 = vadd.f32 %v1702, %v1778
        %v1780 = vpop.f32.mrb[0].mxu0
        %v1781 = vadd.f32 %v1704, %v1780
        %1782 = vdwg.mxu0
        %1783 = vmatprep.subr.mxu0 %v823
        %1784 = vmatpush1.msra.mxu0 %v822
        %1785 = vmatprep.subr.mxu0 %v825
        %1786 = vmatpush1.msra.mxu0 %v824
        %1787 = vmatprep.subr.mxu0 %v827
        %1788 = vmatpush1.msra.mxu0 %v826
        %1789 = vmatprep.subr.mxu0 %v829
        %1790 = vmatpush1.msra.mxu0 %v828
        %1791 = vmatprep.subr.mxu0 %v831
        %1792 = vmatpush1.msra.mxu0 %v830
        %1793 = vmatprep.subr.mxu0 %v833
        %1794 = vmatpush1.msra.mxu0 %v832
        %1795 = vmatprep.subr.mxu0 %v835
        %1796 = vmatpush1.msra.mxu0 %v834
        %1797 = vmatprep.subr.mxu0 %v837
        %1798 = vmatpush1.msra.mxu0 %v836
        %1799 = vmatprep.subr.mxu0 %v839
        %1800 = vmatpush1.msra.mxu0 %v838
        %1801 = vmatprep.subr.mxu0 %v841
        %1802 = vmatpush1.msra.mxu0 %v840
        %1803 = vmatprep.subr.mxu0 %v843
        %1804 = vmatpush1.msra.mxu0 %v842
        %1805 = vmatprep.subr.mxu0 %v845
        %1806 = vmatpush1.msra.mxu0 %v844
        %1807 = vmatprep.subr.mxu0 %v847
        %1808 = vmatpush1.msra.mxu0 %v846
        %1809 = vmatprep.subr.mxu0 %v849
        %1810 = vmatpush1.msra.mxu0 %v848
        %1811 = vmatprep.subr.mxu0 %v851
        %1812 = vmatpush1.msra.mxu0 %v850
        %1813 = vmatprep.subr.mxu0 %v853
        %1814 = vmatpush1.msra.mxu0 %v852
        %1815 = vmatprep.subr.mxu0 %v855
        %1816 = vmatpush1.msra.mxu0 %v854
        %1817 = vmatprep.subr.mxu0 %v857
        %1818 = vmatpush1.msra.mxu0 %v856
        %1819 = vmatprep.subr.mxu0 %v859
        %1820 = vmatpush1.msra.mxu0 %v858
        %1821 = vmatprep.subr.mxu0 %v861
        %1822 = vmatpush1.msra.mxu0 %v860
        %1823 = vmatprep.subr.mxu0 %v863
        %1824 = vmatpush1.msra.mxu0 %v862
        %1825 = vmatprep.subr.mxu0 %v865
        %1826 = vmatpush1.msra.mxu0 %v864
        %1827 = vmatprep.subr.mxu0 %v867
        %1828 = vmatpush1.msra.mxu0 %v866
        %1829 = vmatprep.subr.mxu0 %v869
        %1830 = vmatpush1.msra.mxu0 %v868
        %1831 = vmatprep.subr.mxu0 %v871
        %1832 = vmatpush1.msra.mxu0 %v870
        %1833 = vmatprep.subr.mxu0 %v873
        %1834 = vmatpush1.msra.mxu0 %v872
        %1835 = vmatprep.subr.mxu0 %v875
        %1836 = vmatpush1.msra.mxu0 %v874
        %1837 = vmatprep.subr.mxu0 %v877
        %1838 = vmatpush1.msra.mxu0 %v876
        %1839 = vmatprep.subr.mxu0 %v879
        %1840 = vmatpush1.msra.mxu0 %v878
        %1841 = vmatprep.subr.mxu0 %v881
        %1842 = vmatpush1.msra.mxu0 %v880
        %1843 = vmatprep.subr.mxu0 %v883
        %1844 = vmatpush1.msra.mxu0 %v882
        %1845 = vmatprep.subr.mxu0 %v885
        %1846 = vmatpush1.msra.mxu0 %v884
        %1847 = vmatprep.mubr.f32.mxu0 %v457
        %1848 = vmatmul.mubr.f32.gmra.mrb[0].mxu0 %v456
        %v1849 = vpop.f32.mrb[0].mxu0
        %v1850 = vadd.f32 %v1773, %v1849
        %v1851 = vpop.f32.mrb[0].mxu0
        %v1852 = vadd.f32 %v1775, %v1851
        %1853 = vmatprep.mubr.f32.mxu0 %v485
        %1854 = vmatmul.mubr.f32.gmra.mrb[0].mxu0 %v484
        %v1855 = vpop.f32.mrb[0].mxu0
        %v1856 = vadd.f32 %v1779, %v1855
        %v1857 = vpop.f32.mrb[0].mxu0
        %v1858 = vadd.f32 %v1781, %v1857
        %1859 = vdwg.mxu0
        %1860 = vmatprep.subr.mxu0 %v887
        %1861 = vmatpush1.msra.mxu0 %v886
        %1862 = vmatprep.subr.mxu0 %v889
        %1863 = vmatpush1.msra.mxu0 %v888
        %1864 = vmatprep.subr.mxu0 %v891
        %1865 = vmatpush1.msra.mxu0 %v890
        %1866 = vmatprep.subr.mxu0 %v893
        %1867 = vmatpush1.msra.mxu0 %v892
        %1868 = vmatprep.subr.mxu0 %v895
        %1869 = vmatpush1.msra.mxu0 %v894
        %1870 = vmatprep.subr.mxu0 %v897
        %1871 = vmatpush1.msra.mxu0 %v896
        %1872 = vmatprep.subr.mxu0 %v899
        %1873 = vmatpush1.msra.mxu0 %v898
        %1874 = vmatprep.subr.mxu0 %v901
        %1875 = vmatpush1.msra.mxu0 %v900
        %1876 = vmatprep.subr.mxu0 %v903
        %1877 = vmatpush1.msra.mxu0 %v902
        %1878 = vmatprep.subr.mxu0 %v905
        %1879 = vmatpush1.msra.mxu0 %v904
        %1880 = vmatprep.subr.mxu0 %v907
        %1881 = vmatpush1.msra.mxu0 %v906
        %1882 = vmatprep.subr.mxu0 %v909
        %1883 = vmatpush1.msra.mxu0 %v908
        %1884 = vmatprep.subr.mxu0 %v911
        %1885 = vmatpush1.msra.mxu0 %v910
        %1886 = vmatprep.subr.mxu0 %v913
        %1887 = vmatpush1.msra.mxu0 %v912
        %1888 = vmatprep.subr.mxu0 %v915
        %1889 = vmatpush1.msra.mxu0 %v914
        %1890 = vmatprep.subr.mxu0 %v917
        %1891 = vmatpush1.msra.mxu0 %v916
        %1892 = vmatprep.subr.mxu0 %v919
        %1893 = vmatpush1.msra.mxu0 %v918
        %1894 = vmatprep.subr.mxu0 %v921
        %1895 = vmatpush1.msra.mxu0 %v920
        %1896 = vmatprep.subr.mxu0 %v923
        %1897 = vmatpush1.msra.mxu0 %v922
        %1898 = vmatprep.subr.mxu0 %v925
        %1899 = vmatpush1.msra.mxu0 %v924
        %1900 = vmatprep.subr.mxu0 %v927
        %1901 = vmatpush1.msra.mxu0 %v926
        %1902 = vmatprep.subr.mxu0 %v929
        %1903 = vmatpush1.msra.mxu0 %v928
        %1904 = vmatprep.subr.mxu0 %v931
        %1905 = vmatpush1.msra.mxu0 %v930
        %1906 = vmatprep.subr.mxu0 %v933
        %1907 = vmatpush1.msra.mxu0 %v932
        %1908 = vmatprep.subr.mxu0 %v935
        %1909 = vmatpush1.msra.mxu0 %v934
        %1910 = vmatprep.subr.mxu0 %v937
        %1911 = vmatpush1.msra.mxu0 %v936
        %1912 = vmatprep.subr.mxu0 %v939
        %1913 = vmatpush1.msra.mxu0 %v938
        %1914 = vmatprep.subr.mxu0 %v941
        %1915 = vmatpush1.msra.mxu0 %v940
        %1916 = vmatprep.subr.mxu0 %v943
        %1917 = vmatpush1.msra.mxu0 %v942
        %1918 = vmatprep.subr.mxu0 %v945
        %1919 = vmatpush1.msra.mxu0 %v944
        %1920 = vmatprep.subr.mxu0 %v947
        %1921 = vmatpush1.msra.mxu0 %v946
        %1922 = vmatprep.subr.mxu0 %v949
        %1923 = vmatpush1.msra.mxu0 %v948
        %1924 = vmatprep.mubr.f32.mxu0 %v459
        %1925 = vmatmul.mubr.f32.gmra.mrb[0].mxu0 %v458
        %v1926 = vpop.f32.mrb[0].mxu0
        %v1927 = vadd.f32 %v1850, %v1926
        %v1928 = vpop.f32.mrb[0].mxu0
        %v1929 = vadd.f32 %v1852, %v1928
        %1930 = vmatprep.mubr.f32.mxu0 %v487
        %1931 = vmatmul.mubr.f32.gmra.mrb[0].mxu0 %v486
        %v1932 = vpop.f32.mrb[0].mxu0
        %v1933 = vadd.f32 %v1856, %v1932
        %v1934 = vpop.f32.mrb[0].mxu0
        %v1935 = vadd.f32 %v1858, %v1934
        %1936 = vdwg.mxu0
        %1937 = vmatprep.subr.mxu0 %v951
        %1938 = vmatpush1.msra.mxu0 %v950
        %1939 = vmatprep.subr.mxu0 %v953
        %1940 = vmatpush1.msra.mxu0 %v952
        %1941 = vmatprep.subr.mxu0 %v955
        %1942 = vmatpush1.msra.mxu0 %v954
        %1943 = vmatprep.subr.mxu0 %v957
        %1944 = vmatpush1.msra.mxu0 %v956
        %1945 = vmatprep.subr.mxu0 %v959
        %1946 = vmatpush1.msra.mxu0 %v958
        %1947 = vmatprep.subr.mxu0 %v961
        %1948 = vmatpush1.msra.mxu0 %v960
        %1949 = vmatprep.subr.mxu0 %v963
        %1950 = vmatpush1.msra.mxu0 %v962
        %1951 = vmatprep.subr.mxu0 %v965
        %1952 = vmatpush1.msra.mxu0 %v964
        %1953 = vmatprep.subr.mxu0 %v967
        %1954 = vmatpush1.msra.mxu0 %v966
        %1955 = vmatprep.subr.mxu0 %v969
        %1956 = vmatpush1.msra.mxu0 %v968
        %1957 = vmatprep.subr.mxu0 %v971
        %1958 = vmatpush1.msra.mxu0 %v970
        %1959 = vmatprep.subr.mxu0 %v973
        %1960 = vmatpush1.msra.mxu0 %v972
        %1961 = vmatprep.subr.mxu0 %v975
        %1962 = vmatpush1.msra.mxu0 %v974
        %1963 = vmatprep.subr.mxu0 %v977
        %1964 = vmatpush1.msra.mxu0 %v976
        %1965 = vmatprep.subr.mxu0 %v979
        %1966 = vmatpush1.msra.mxu0 %v978
        %1967 = vmatprep.subr.mxu0 %v981
        %1968 = vmatpush1.msra.mxu0 %v980
        %1969 = vmatprep.subr.mxu0 %v983
        %1970 = vmatpush1.msra.mxu0 %v982
        %1971 = vmatprep.subr.mxu0 %v985
        %1972 = vmatpush1.msra.mxu0 %v984
        %1973 = vmatprep.subr.mxu0 %v987
        %1974 = vmatpush1.msra.mxu0 %v986
        %1975 = vmatprep.subr.mxu0 %v989
        %1976 = vmatpush1.msra.mxu0 %v988
        %1977 = vmatprep.subr.mxu0 %v991
        %1978 = vmatpush1.msra.mxu0 %v990
        %1979 = vmatprep.subr.mxu0 %v993
        %1980 = vmatpush1.msra.mxu0 %v992
        %1981 = vmatprep.subr.mxu0 %v995
        %1982 = vmatpush1.msra.mxu0 %v994
        %1983 = vmatprep.subr.mxu0 %v997
        %1984 = vmatpush1.msra.mxu0 %v996
        %1985 = vmatprep.subr.mxu0 %v999
        %1986 = vmatpush1.msra.mxu0 %v998
        %1987 = vmatprep.subr.mxu0 %v1001
        %1988 = vmatpush1.msra.mxu0 %v1000
        %1989 = vmatprep.subr.mxu0 %v1003
        %1990 = vmatpush1.msra.mxu0 %v1002
        %1991 = vmatprep.subr.mxu0 %v1005
        %1992 = vmatpush1.msra.mxu0 %v1004
        %1993 = vmatprep.subr.mxu0 %v1007
        %1994 = vmatpush1.msra.mxu0 %v1006
        %1995 = vmatprep.subr.mxu0 %v1009
        %1996 = vmatpush1.msra.mxu0 %v1008
        %1997 = vmatprep.subr.mxu0 %v1011
        %1998 = vmatpush1.msra.mxu0 %v1010
        %1999 = vmatprep.subr.mxu0 %v1013
        %2000 = vmatpush1.msra.mxu0 %v1012
        %2001 = vmatprep.mubr.f32.mxu0 %v461
        %2002 = vmatmul.mubr.f32.gmra.mrb[0].mxu0 %v460
        %v2003 = vpop.f32.mrb[0].mxu0
        %v2004 = vadd.f32 %v1927, %v2003
        %v2005 = vpop.f32.mrb[0].mxu0
        %v2006 = vadd.f32 %v1929, %v2005
        %2007 = vmatprep.mubr.f32.mxu0 %v489
        %2008 = vmatmul.mubr.f32.gmra.mrb[0].mxu0 %v488
        %v2009 = vpop.f32.mrb[0].mxu0
        %v2010 = vadd.f32 %v1933, %v2009
        %v2011 = vpop.f32.mrb[0].mxu0
        %v2012 = vadd.f32 %v1935, %v2011
        %2013 = vdwg.mxu0
        %2014 = vmatprep.subr.mxu0 %v1015
        %2015 = vmatpush1.msra.mxu0 %v1014
        %2016 = vmatprep.subr.mxu0 %v1017
        %2017 = vmatpush1.msra.mxu0 %v1016
        %2018 = vmatprep.subr.mxu0 %v1019
        %2019 = vmatpush1.msra.mxu0 %v1018
        %2020 = vmatprep.subr.mxu0 %v1021
        %2021 = vmatpush1.msra.mxu0 %v1020
        %2022 = vmatprep.subr.mxu0 %v1023
        %2023 = vmatpush1.msra.mxu0 %v1022
        %2024 = vmatprep.subr.mxu0 %v1025
        %2025 = vmatpush1.msra.mxu0 %v1024
        %2026 = vmatprep.subr.mxu0 %v1027
        %2027 = vmatpush1.msra.mxu0 %v1026
        %2028 = vmatprep.subr.mxu0 %v1029
        %2029 = vmatpush1.msra.mxu0 %v1028
        %2030 = vmatprep.subr.mxu0 %v1031
        %2031 = vmatpush1.msra.mxu0 %v1030
        %2032 = vmatprep.subr.mxu0 %v1033
        %2033 = vmatpush1.msra.mxu0 %v1032
        %2034 = vmatprep.subr.mxu0 %v1035
        %2035 = vmatpush1.msra.mxu0 %v1034
        %2036 = vmatprep.subr.mxu0 %v1037
        %2037 = vmatpush1.msra.mxu0 %v1036
        %2038 = vmatprep.subr.mxu0 %v1039
        %2039 = vmatpush1.msra.mxu0 %v1038
        %2040 = vmatprep.subr.mxu0 %v1041
        %2041 = vmatpush1.msra.mxu0 %v1040
        %2042 = vmatprep.subr.mxu0 %v1043
        %2043 = vmatpush1.msra.mxu0 %v1042
        %2044 = vmatprep.subr.mxu0 %v1045
        %2045 = vmatpush1.msra.mxu0 %v1044
        %2046 = vmatprep.subr.mxu0 %v1047
        %2047 = vmatpush1.msra.mxu0 %v1046
        %2048 = vmatprep.subr.mxu0 %v1049
        %2049 = vmatpush1.msra.mxu0 %v1048
        %2050 = vmatprep.subr.mxu0 %v1051
        %2051 = vmatpush1.msra.mxu0 %v1050
        %2052 = vmatprep.subr.mxu0 %v1053
        %2053 = vmatpush1.msra.mxu0 %v1052
        %2054 = vmatprep.subr.mxu0 %v1055
        %2055 = vmatpush1.msra.mxu0 %v1054
        %2056 = vmatprep.subr.mxu0 %v1057
        %2057 = vmatpush1.msra.mxu0 %v1056
        %2058 = vmatprep.subr.mxu0 %v1059
        %2059 = vmatpush1.msra.mxu0 %v1058
        %2060 = vmatprep.subr.mxu0 %v1061
        %2061 = vmatpush1.msra.mxu0 %v1060
        %2062 = vmatprep.subr.mxu0 %v1063
        %2063 = vmatpush1.msra.mxu0 %v1062
        %2064 = vmatprep.subr.mxu0 %v1065
        %2065 = vmatpush1.msra.mxu0 %v1064
        %2066 = vmatprep.subr.mxu0 %v1067
        %2067 = vmatpush1.msra.mxu0 %v1066
        %2068 = vmatprep.subr.mxu0 %v1069
        %2069 = vmatpush1.msra.mxu0 %v1068
        %2070 = vmatprep.subr.mxu0 %v1071
        %2071 = vmatpush1.msra.mxu0 %v1070
        %2072 = vmatprep.subr.mxu0 %v1073
        %2073 = vmatpush1.msra.mxu0 %v1072
        %2074 = vmatprep.subr.mxu0 %v1075
        %2075 = vmatpush1.msra.mxu0 %v1074
        %2076 = vmatprep.subr.mxu0 %v1077
        %2077 = vmatpush1.msra.mxu0 %v1076
        %2078 = vmatprep.mubr.f32.mxu0 %v463
        %2079 = vmatmul.mubr.f32.gmra.mrb[0].mxu0 %v462
        %v2080 = vpop.f32.mrb[0].mxu0
        %v2081 = vadd.f32 %v2004, %v2080
        %v2082 = vpop.f32.mrb[0].mxu0
        %v2083 = vadd.f32 %v2006, %v2082
        %2084 = vmatprep.mubr.f32.mxu0 %v491
        %2085 = vmatmul.mubr.f32.gmra.mrb[0].mxu0 %v490
        %v2086 = vpop.f32.mrb[0].mxu0
        %v2087 = vadd.f32 %v2010, %v2086
        %v2088 = vpop.f32.mrb[0].mxu0
        %v2089 = vadd.f32 %v2012, %v2088
        %2090 = vdwg.mxu0
        %2091 = vmatprep.subr.mxu0 %v1079
        %2092 = vmatpush1.msra.mxu0 %v1078
        %2093 = vmatprep.subr.mxu0 %v1081
        %2094 = vmatpush1.msra.mxu0 %v1080
        %2095 = vmatprep.subr.mxu0 %v1083
        %2096 = vmatpush1.msra.mxu0 %v1082
        %2097 = vmatprep.subr.mxu0 %v1085
        %2098 = vmatpush1.msra.mxu0 %v1084
        %2099 = vmatprep.subr.mxu0 %v1087
        %2100 = vmatpush1.msra.mxu0 %v1086
        %2101 = vmatprep.subr.mxu0 %v1089
        %2102 = vmatpush1.msra.mxu0 %v1088
        %2103 = vmatprep.subr.mxu0 %v1091
        %2104 = vmatpush1.msra.mxu0 %v1090
        %2105 = vmatprep.subr.mxu0 %v1093
        %2106 = vmatpush1.msra.mxu0 %v1092
        %2107 = vmatprep.subr.mxu0 %v1095
        %2108 = vmatpush1.msra.mxu0 %v1094
        %2109 = vmatprep.subr.mxu0 %v1097
        %2110 = vmatpush1.msra.mxu0 %v1096
        %2111 = vmatprep.subr.mxu0 %v1099
        %2112 = vmatpush1.msra.mxu0 %v1098
        %2113 = vmatprep.subr.mxu0 %v1101
        %2114 = vmatpush1.msra.mxu0 %v1100
        %2115 = vmatprep.subr.mxu0 %v1103
        %2116 = vmatpush1.msra.mxu0 %v1102
        %2117 = vmatprep.subr.mxu0 %v1105
        %2118 = vmatpush1.msra.mxu0 %v1104
        %2119 = vmatprep.subr.mxu0 %v1107
        %2120 = vmatpush1.msra.mxu0 %v1106
        %2121 = vmatprep.subr.mxu0 %v1109
        %2122 = vmatpush1.msra.mxu0 %v1108
        %2123 = vmatprep.subr.mxu0 %v1111
        %2124 = vmatpush1.msra.mxu0 %v1110
        %2125 = vmatprep.subr.mxu0 %v1113
        %2126 = vmatpush1.msra.mxu0 %v1112
        %2127 = vmatprep.subr.mxu0 %v1115
        %2128 = vmatpush1.msra.mxu0 %v1114
        %2129 = vmatprep.subr.mxu0 %v1117
        %2130 = vmatpush1.msra.mxu0 %v1116
        %2131 = vmatprep.subr.mxu0 %v1119
        %2132 = vmatpush1.msra.mxu0 %v1118
        %2133 = vmatprep.subr.mxu0 %v1121
        %2134 = vmatpush1.msra.mxu0 %v1120
        %2135 = vmatprep.subr.mxu0 %v1123
        %2136 = vmatpush1.msra.mxu0 %v1122
        %2137 = vmatprep.subr.mxu0 %v1125
        %2138 = vmatpush1.msra.mxu0 %v1124
        %2139 = vmatprep.subr.mxu0 %v1127
        %2140 = vmatpush1.msra.mxu0 %v1126
        %2141 = vmatprep.subr.mxu0 %v1129
        %2142 = vmatpush1.msra.mxu0 %v1128
        %2143 = vmatprep.subr.mxu0 %v1131
        %2144 = vmatpush1.msra.mxu0 %v1130
        %2145 = vmatprep.subr.mxu0 %v1133
        %2146 = vmatpush1.msra.mxu0 %v1132
        %2147 = vmatprep.subr.mxu0 %v1135
        %2148 = vmatpush1.msra.mxu0 %v1134
        %2149 = vmatprep.subr.mxu0 %v1137
        %2150 = vmatpush1.msra.mxu0 %v1136
        %2151 = vmatprep.subr.mxu0 %v1139
        %2152 = vmatpush1.msra.mxu0 %v1138
        %2153 = vmatprep.subr.mxu0 %v1141
        %2154 = vmatpush1.msra.mxu0 %v1140
        %2155 = vmatprep.mubr.f32.mxu0 %v465
        %2156 = vmatmul.mubr.f32.gmra.mrb[0].mxu0 %v464
        %v2157 = vpop.f32.mrb[0].mxu0
        %v2158 = vadd.f32 %v2081, %v2157
        %v2159 = vpop.f32.mrb[0].mxu0
        %v2160 = vadd.f32 %v2083, %v2159
        %2161 = vmatprep.mubr.f32.mxu0 %v493
        %2162 = vmatmul.mubr.f32.gmra.mrb[0].mxu0 %v492
        %v2163 = vpop.f32.mrb[0].mxu0
        %v2164 = vadd.f32 %v2087, %v2163
        %v2165 = vpop.f32.mrb[0].mxu0
        %v2166 = vadd.f32 %v2089, %v2165
        %2167 = vdwg.mxu0
        %2168 = vmatprep.subr.mxu0 %v1143
        %2169 = vmatpush1.msra.mxu0 %v1142
        %2170 = vmatprep.subr.mxu0 %v1145
        %2171 = vmatpush1.msra.mxu0 %v1144
        %2172 = vmatprep.subr.mxu0 %v1147
        %2173 = vmatpush1.msra.mxu0 %v1146
        %2174 = vmatprep.subr.mxu0 %v1149
        %2175 = vmatpush1.msra.mxu0 %v1148
        %2176 = vmatprep.subr.mxu0 %v1151
        %2177 = vmatpush1.msra.mxu0 %v1150
        %2178 = vmatprep.subr.mxu0 %v1153
        %2179 = vmatpush1.msra.mxu0 %v1152
        %2180 = vmatprep.subr.mxu0 %v1155
        %2181 = vmatpush1.msra.mxu0 %v1154
        %2182 = vmatprep.subr.mxu0 %v1157
        %2183 = vmatpush1.msra.mxu0 %v1156
        %2184 = vmatprep.subr.mxu0 %v1159
        %2185 = vmatpush1.msra.mxu0 %v1158
        %2186 = vmatprep.subr.mxu0 %v1161
        %2187 = vmatpush1.msra.mxu0 %v1160
        %2188 = vmatprep.subr.mxu0 %v1163
        %2189 = vmatpush1.msra.mxu0 %v1162
        %2190 = vmatprep.subr.mxu0 %v1165
        %2191 = vmatpush1.msra.mxu0 %v1164
        %2192 = vmatprep.subr.mxu0 %v1167
        %2193 = vmatpush1.msra.mxu0 %v1166
        %2194 = vmatprep.subr.mxu0 %v1169
        %2195 = vmatpush1.msra.mxu0 %v1168
        %2196 = vmatprep.subr.mxu0 %v1171
        %2197 = vmatpush1.msra.mxu0 %v1170
        %2198 = vmatprep.subr.mxu0 %v1173
        %2199 = vmatpush1.msra.mxu0 %v1172
        %2200 = vmatprep.subr.mxu0 %v1175
        %2201 = vmatpush1.msra.mxu0 %v1174
        %2202 = vmatprep.subr.mxu0 %v1177
        %2203 = vmatpush1.msra.mxu0 %v1176
        %2204 = vmatprep.subr.mxu0 %v1179
        %2205 = vmatpush1.msra.mxu0 %v1178
        %2206 = vmatprep.subr.mxu0 %v1181
        %2207 = vmatpush1.msra.mxu0 %v1180
        %2208 = vmatprep.subr.mxu0 %v1183
        %2209 = vmatpush1.msra.mxu0 %v1182
        %2210 = vmatprep.subr.mxu0 %v1185
        %2211 = vmatpush1.msra.mxu0 %v1184
        %2212 = vmatprep.subr.mxu0 %v1187
        %2213 = vmatpush1.msra.mxu0 %v1186
        %2214 = vmatprep.subr.mxu0 %v1189
        %2215 = vmatpush1.msra.mxu0 %v1188
        %2216 = vmatprep.subr.mxu0 %v1191
        %2217 = vmatpush1.msra.mxu0 %v1190
        %2218 = vmatprep.subr.mxu0 %v1193
        %2219 = vmatpush1.msra.mxu0 %v1192
        %2220 = vmatprep.subr.mxu0 %v1195
        %2221 = vmatpush1.msra.mxu0 %v1194
        %2222 = vmatprep.subr.mxu0 %v1197
        %2223 = vmatpush1.msra.mxu0 %v1196
        %2224 = vmatprep.subr.mxu0 %v1199
        %2225 = vmatpush1.msra.mxu0 %v1198
        %2226 = vmatprep.subr.mxu0 %v1201
        %2227 = vmatpush1.msra.mxu0 %v1200
        %2228 = vmatprep.subr.mxu0 %v1203
        %2229 = vmatpush1.msra.mxu0 %v1202
        %2230 = vmatprep.subr.mxu0 %v1205
        %2231 = vmatpush1.msra.mxu0 %v1204
        %2232 = vmatprep.mubr.f32.mxu0 %v467
        %2233 = vmatmul.mubr.f32.gmra.mrb[0].mxu0 %v466
        %v2234 = vpop.f32.mrb[0].mxu0
        %v2235 = vadd.f32 %v2158, %v2234
        %v2236 = vpop.f32.mrb[0].mxu0
        %v2237 = vadd.f32 %v2160, %v2236
        %2238 = vmatprep.mubr.f32.mxu0 %v495
        %2239 = vmatmul.mubr.f32.gmra.mrb[0].mxu0 %v494
        %v2240 = vpop.f32.mrb[0].mxu0
        %v2241 = vadd.f32 %v2164, %v2240
        %v2242 = vpop.f32.mrb[0].mxu0
        %v2243 = vadd.f32 %v2166, %v2242
        %2244 = vdwg.mxu0
        %2245 = vmatprep.subr.mxu0 %v1207
        %2246 = vmatpush1.msra.mxu0 %v1206
        %2247 = vmatprep.subr.mxu0 %v1209
        %2248 = vmatpush1.msra.mxu0 %v1208
        %2249 = vmatprep.subr.mxu0 %v1211
        %2250 = vmatpush1.msra.mxu0 %v1210
        %2251 = vmatprep.subr.mxu0 %v1213
        %2252 = vmatpush1.msra.mxu0 %v1212
        %2253 = vmatprep.subr.mxu0 %v1215
        %2254 = vmatpush1.msra.mxu0 %v1214
        %2255 = vmatprep.subr.mxu0 %v1217
        %2256 = vmatpush1.msra.mxu0 %v1216
        %2257 = vmatprep.subr.mxu0 %v1219
        %2258 = vmatpush1.msra.mxu0 %v1218
        %2259 = vmatprep.subr.mxu0 %v1221
        %2260 = vmatpush1.msra.mxu0 %v1220
        %2261 = vmatprep.subr.mxu0 %v1223
        %2262 = vmatpush1.msra.mxu0 %v1222
        %2263 = vmatprep.subr.mxu0 %v1225
        %2264 = vmatpush1.msra.mxu0 %v1224
        %2265 = vmatprep.subr.mxu0 %v1227
        %2266 = vmatpush1.msra.mxu0 %v1226
        %2267 = vmatprep.subr.mxu0 %v1229
        %2268 = vmatpush1.msra.mxu0 %v1228
        %2269 = vmatprep.subr.mxu0 %v1231
        %2270 = vmatpush1.msra.mxu0 %v1230
        %2271 = vmatprep.subr.mxu0 %v1233
        %2272 = vmatpush1.msra.mxu0 %v1232
        %2273 = vmatprep.subr.mxu0 %v1235
        %2274 = vmatpush1.msra.mxu0 %v1234
        %2275 = vmatprep.subr.mxu0 %v1237
        %2276 = vmatpush1.msra.mxu0 %v1236
        %2277 = vmatprep.subr.mxu0 %v1239
        %2278 = vmatpush1.msra.mxu0 %v1238
        %2279 = vmatprep.subr.mxu0 %v1241
        %2280 = vmatpush1.msra.mxu0 %v1240
        %2281 = vmatprep.subr.mxu0 %v1243
        %2282 = vmatpush1.msra.mxu0 %v1242
        %2283 = vmatprep.subr.mxu0 %v1245
        %2284 = vmatpush1.msra.mxu0 %v1244
        %2285 = vmatprep.subr.mxu0 %v1247
        %2286 = vmatpush1.msra.mxu0 %v1246
        %2287 = vmatprep.subr.mxu0 %v1249
        %2288 = vmatpush1.msra.mxu0 %v1248
        %2289 = vmatprep.subr.mxu0 %v1251
        %2290 = vmatpush1.msra.mxu0 %v1250
        %2291 = vmatprep.subr.mxu0 %v1253
        %2292 = vmatpush1.msra.mxu0 %v1252
        %2293 = vmatprep.subr.mxu0 %v1255
        %2294 = vmatpush1.msra.mxu0 %v1254
        %2295 = vmatprep.subr.mxu0 %v1257
        %2296 = vmatpush1.msra.mxu0 %v1256
        %2297 = vmatprep.subr.mxu0 %v1259
        %2298 = vmatpush1.msra.mxu0 %v1258
        %2299 = vmatprep.subr.mxu0 %v1261
        %2300 = vmatpush1.msra.mxu0 %v1260
        %2301 = vmatprep.subr.mxu0 %v1263
        %2302 = vmatpush1.msra.mxu0 %v1262
        %2303 = vmatprep.subr.mxu0 %v1265
        %2304 = vmatpush1.msra.mxu0 %v1264
        %2305 = vmatprep.subr.mxu0 %v1267
        %2306 = vmatpush1.msra.mxu0 %v1266
        %2307 = vmatprep.subr.mxu0 %v1269
        %2308 = vmatpush1.msra.mxu0 %v1268
        %2309 = vmatprep.mubr.f32.mxu0 %v469
        %2310 = vmatmul.mubr.f32.gmra.mrb[0].mxu0 %v468
        %v2311 = vpop.f32.mrb[0].mxu0
        %v2312 = vadd.f32 %v2235, %v2311
        %v2313 = vpop.f32.mrb[0].mxu0
        %v2314 = vadd.f32 %v2237, %v2313
        %2315 = vmatprep.mubr.f32.mxu0 %v497
        %2316 = vmatmul.mubr.f32.gmra.mrb[0].mxu0 %v496
        %v2317 = vpop.f32.mrb[0].mxu0
        %v2318 = vadd.f32 %v2241, %v2317
        %v2319 = vpop.f32.mrb[0].mxu0
        %v2320 = vadd.f32 %v2243, %v2319
        %2321 = vdwg.mxu0
        %2322 = vmatprep.subr.mxu0 %v1271
        %2323 = vmatpush1.msra.mxu0 %v1270
        %2324 = vmatprep.subr.mxu0 %v1273
        %2325 = vmatpush1.msra.mxu0 %v1272
        %2326 = vmatprep.subr.mxu0 %v1275
        %2327 = vmatpush1.msra.mxu0 %v1274
        %2328 = vmatprep.subr.mxu0 %v1277
        %2329 = vmatpush1.msra.mxu0 %v1276
        %2330 = vmatprep.subr.mxu0 %v1279
        %2331 = vmatpush1.msra.mxu0 %v1278
        %2332 = vmatprep.subr.mxu0 %v1281
        %2333 = vmatpush1.msra.mxu0 %v1280
        %2334 = vmatprep.subr.mxu0 %v1283
        %2335 = vmatpush1.msra.mxu0 %v1282
        %2336 = vmatprep.subr.mxu0 %v1285
        %2337 = vmatpush1.msra.mxu0 %v1284
        %2338 = vmatprep.subr.mxu0 %v1287
        %2339 = vmatpush1.msra.mxu0 %v1286
        %2340 = vmatprep.subr.mxu0 %v1289
        %2341 = vmatpush1.msra.mxu0 %v1288
        %2342 = vmatprep.subr.mxu0 %v1291
        %2343 = vmatpush1.msra.mxu0 %v1290
        %2344 = vmatprep.subr.mxu0 %v1293
        %2345 = vmatpush1.msra.mxu0 %v1292
        %2346 = vmatprep.subr.mxu0 %v1295
        %2347 = vmatpush1.msra.mxu0 %v1294
        %2348 = vmatprep.subr.mxu0 %v1297
        %2349 = vmatpush1.msra.mxu0 %v1296
        %2350 = vmatprep.subr.mxu0 %v1299
        %2351 = vmatpush1.msra.mxu0 %v1298
        %2352 = vmatprep.subr.mxu0 %v1301
        %2353 = vmatpush1.msra.mxu0 %v1300
        %2354 = vmatprep.subr.mxu0 %v1303
        %2355 = vmatpush1.msra.mxu0 %v1302
        %2356 = vmatprep.subr.mxu0 %v1305
        %2357 = vmatpush1.msra.mxu0 %v1304
        %2358 = vmatprep.subr.mxu0 %v1307
        %2359 = vmatpush1.msra.mxu0 %v1306
        %2360 = vmatprep.subr.mxu0 %v1309
        %2361 = vmatpush1.msra.mxu0 %v1308
        %2362 = vmatprep.subr.mxu0 %v1311
        %2363 = vmatpush1.msra.mxu0 %v1310
        %2364 = vmatprep.subr.mxu0 %v1313
        %2365 = vmatpush1.msra.mxu0 %v1312
        %2366 = vmatprep.subr.mxu0 %v1315
        %2367 = vmatpush1.msra.mxu0 %v1314
        %2368 = vmatprep.subr.mxu0 %v1317
        %2369 = vmatpush1.msra.mxu0 %v1316
        %2370 = vmatprep.subr.mxu0 %v1319
        %2371 = vmatpush1.msra.mxu0 %v1318
        %2372 = vmatprep.subr.mxu0 %v1321
        %2373 = vmatpush1.msra.mxu0 %v1320
        %2374 = vmatprep.subr.mxu0 %v1323
        %2375 = vmatpush1.msra.mxu0 %v1322
        %2376 = vmatprep.subr.mxu0 %v1325
        %2377 = vmatpush1.msra.mxu0 %v1324
        %2378 = vmatprep.subr.mxu0 %v1327
        %2379 = vmatpush1.msra.mxu0 %v1326
        %2380 = vmatprep.subr.mxu0 %v1329
        %2381 = vmatpush1.msra.mxu0 %v1328
        %2382 = vmatprep.subr.mxu0 %v1331
        %2383 = vmatpush1.msra.mxu0 %v1330
        %2384 = vmatprep.subr.mxu0 %v1333
        %2385 = vmatpush1.msra.mxu0 %v1332
        %2386 = vmatprep.mubr.f32.mxu0 %v471
        %2387 = vmatmul.mubr.f32.gmra.mrb[0].mxu0 %v470
        %v2388 = vpop.f32.mrb[0].mxu0
        %v2389 = vadd.f32 %v2312, %v2388
        %v2390 = vpop.f32.mrb[0].mxu0
        %v2391 = vadd.f32 %v2314, %v2390
        %2392 = vmatprep.mubr.f32.mxu0 %v499
        %2393 = vmatmul.mubr.f32.gmra.mrb[0].mxu0 %v498
        %v2394 = vpop.f32.mrb[0].mxu0
        %v2395 = vadd.f32 %v2318, %v2394
        %v2396 = vpop.f32.mrb[0].mxu0
        %v2397 = vadd.f32 %v2320, %v2396
        %2398 = vdwg.mxu0
        %2399 = vmatprep.subr.mxu0 %v1335
        %2400 = vmatpush1.msra.mxu0 %v1334
        %2401 = vmatprep.subr.mxu0 %v1337
        %2402 = vmatpush1.msra.mxu0 %v1336
        %2403 = vmatprep.subr.mxu0 %v1339
        %2404 = vmatpush1.msra.mxu0 %v1338
        %2405 = vmatprep.subr.mxu0 %v1341
        %2406 = vmatpush1.msra.mxu0 %v1340
        %2407 = vmatprep.subr.mxu0 %v1343
        %2408 = vmatpush1.msra.mxu0 %v1342
        %2409 = vmatprep.subr.mxu0 %v1345
        %2410 = vmatpush1.msra.mxu0 %v1344
        %2411 = vmatprep.subr.mxu0 %v1347
        %2412 = vmatpush1.msra.mxu0 %v1346
        %2413 = vmatprep.subr.mxu0 %v1349
        %2414 = vmatpush1.msra.mxu0 %v1348
        %2415 = vmatprep.subr.mxu0 %v1351
        %2416 = vmatpush1.msra.mxu0 %v1350
        %2417 = vmatprep.subr.mxu0 %v1353
        %2418 = vmatpush1.msra.mxu0 %v1352
        %2419 = vmatprep.subr.mxu0 %v1355
        %2420 = vmatpush1.msra.mxu0 %v1354
        %2421 = vmatprep.subr.mxu0 %v1357
        %2422 = vmatpush1.msra.mxu0 %v1356
        %2423 = vmatprep.subr.mxu0 %v1359
        %2424 = vmatpush1.msra.mxu0 %v1358
        %2425 = vmatprep.subr.mxu0 %v1361
        %2426 = vmatpush1.msra.mxu0 %v1360
        %2427 = vmatprep.subr.mxu0 %v1363
        %2428 = vmatpush1.msra.mxu0 %v1362
        %2429 = vmatprep.subr.mxu0 %v1365
        %2430 = vmatpush1.msra.mxu0 %v1364
        %2431 = vmatprep.subr.mxu0 %v1367
        %2432 = vmatpush1.msra.mxu0 %v1366
        %2433 = vmatprep.subr.mxu0 %v1369
        %2434 = vmatpush1.msra.mxu0 %v1368
        %2435 = vmatprep.subr.mxu0 %v1371
        %2436 = vmatpush1.msra.mxu0 %v1370
        %2437 = vmatprep.subr.mxu0 %v1373
        %2438 = vmatpush1.msra.mxu0 %v1372
        %2439 = vmatprep.subr.mxu0 %v1375
        %2440 = vmatpush1.msra.mxu0 %v1374
        %2441 = vmatprep.subr.mxu0 %v1377
        %2442 = vmatpush1.msra.mxu0 %v1376
        %2443 = vmatprep.subr.mxu0 %v1379
        %2444 = vmatpush1.msra.mxu0 %v1378
        %2445 = vmatprep.subr.mxu0 %v1381
        %2446 = vmatpush1.msra.mxu0 %v1380
        %2447 = vmatprep.subr.mxu0 %v1383
        %2448 = vmatpush1.msra.mxu0 %v1382
        %2449 = vmatprep.subr.mxu0 %v1385
        %2450 = vmatpush1.msra.mxu0 %v1384
        %2451 = vmatprep.subr.mxu0 %v1387
        %2452 = vmatpush1.msra.mxu0 %v1386
        %2453 = vmatprep.subr.mxu0 %v1389
        %2454 = vmatpush1.msra.mxu0 %v1388
        %2455 = vmatprep.subr.mxu0 %v1391
        %2456 = vmatpush1.msra.mxu0 %v1390
        %2457 = vmatprep.subr.mxu0 %v1393
        %2458 = vmatpush1.msra.mxu0 %v1392
        %2459 = vmatprep.subr.mxu0 %v1395
        %2460 = vmatpush1.msra.mxu0 %v1394
        %2461 = vmatprep.subr.mxu0 %v1397
        %2462 = vmatpush1.msra.mxu0 %v1396
        %2463 = vmatprep.mubr.f32.mxu0 %v473
        %2464 = vmatmul.mubr.f32.gmra.mrb[0].mxu0 %v472
        %v2465 = vpop.f32.mrb[0].mxu0
        %v2466 = vadd.f32 %v2389, %v2465
        %v2467 = vpop.f32.mrb[0].mxu0
        %v2468 = vadd.f32 %v2391, %v2467
        %2469 = vmatprep.mubr.f32.mxu0 %v501
        %2470 = vmatmul.mubr.f32.gmra.mrb[0].mxu0 %v500
        %v2471 = vpop.f32.mrb[0].mxu0
        %v2472 = vadd.f32 %v2395, %v2471
        %v2473 = vpop.f32.mrb[0].mxu0
        %v2474 = vadd.f32 %v2397, %v2473
        %2475 = vdwg.mxu0
        %v2476 = vxor.u32 %v2466, 2147483648
        %v2477 = vxor.u32 %v2468, 2147483648
        %v2478 = vxor.u32 %v2472, 2147483648
        %v2479 = vxor.u32 %v2474, 2147483648
        %v2480 = vmul.f32 %v2476, 1.442695
        %v2481 = vpow.pop %v2480
        %v2482 = vmul.f32 %v2477, 1.442695
        %v2483 = vpow.pop %v2482
        %v2484 = vmul.f32 %v2478, 1.442695
        %v2485 = vpow.pop %v2484
        %v2486 = vmul.f32 %v2479, 1.442695
        %v2487 = vpow.pop %v2486
        %v2488 = vadd.f32 %v2481, 1.0
        %v2489 = vadd.f32 %v2483, 1.0
        %v2490 = vadd.f32 %v2485, 1.0
        %v2491 = vadd.f32 %v2487, 1.0
        %v2492 = vrcp.pop %v2488
        %v2493 = vmul.f32 1.0, %v2492
        %v2494 = vrcp.pop %v2489
        %v2495 = vmul.f32 1.0, %v2494
        %v2496 = vrcp.pop %v2490
        %v2497 = vmul.f32 1.0, %v2496
        %v2498 = vrcp.pop %v2491
        %v2499 = vmul.f32 1.0, %v2498
        %2500 = vst [vmem:[%s176] sm:$0xff] %v2493
        %2501 = vst [vmem:[%s176 + $0x8] sm:$0xff] %v2495
        %2502 = vst [vmem:[%s176 + $0x10] sm:$0xff] %v2497
        %2503 = vst [vmem:[%s176 + $0x18] sm:$0xff] %v2499
        %s2504 = sand.u32 %s75, 1
        %s2505 = scalar_lea.sflag [#allocation5], %s2504
        %s2506 = sand.u32 %s75, 1
        %s2507 = smul.addr %s2506, 32
        %s2508 = scalar_lea.vmem [#allocation8], %s2507
        // Predicated region
        $region37: #{tpu_custom_call.1} parent=27 // pred_check
          %p2509 = pneg %p85
        $region38: #{tpu_custom_call.1} parent=27 // pred_check_branch
          %2511 = sbr.rel (%p2509) target = $region40
        $region39: #{tpu_custom_call.1} parent=27 // pred_region
          %s2513 = ssub.s32 512, 512
          %2514 = vsyncadd %s2505, %s2513
          %s2515 = smul.addr %s20, 4
          %s2516 = smul.addr %s2515, 128
          %s2517 = scalar_lea.hbm %s2, %s2516
          %s2518 = sshll.u32 %s2508, 4
          %s2519 = int_to_ptr.vmem [resolvable:$true] %s2518
          %2524 = dma.vmem_to_hbm [thread:$0]  %s2519, 512, %s2517, %s2505, 256, 256, 16
        $region40: #{tpu_custom_call.1} parent=27 // pred_fallthru
          _
      $region28: #{tpu_custom_call.1} parent=5 // pred_fallthru
        _
      %p2525 = scmp.le.s32.totalorder 2, %s15
      // Predicated region
      $region41: #{tpu_custom_call.1} parent=5 // pred_check
        %p2526 = pneg %p2525
      $region42: #{tpu_custom_call.1} parent=5 // pred_check_branch
        %2528 = sbr.rel (%p2526) target = $region44
      $region43: #{tpu_custom_call.1} parent=5 // pred_region
        %s2529 = ssub.s32 %s15, 2
        // Predicated region
        $region45: #{tpu_custom_call.1} parent=43 // pred_check
          %p2530 = pneg %p91
        $region46: #{tpu_custom_call.1} parent=43 // pred_check_branch
          %2532 = sbr.rel (%p2530) target = $region48
        $region47: #{tpu_custom_call.1} parent=43 // pred_region
          %s2533 = sand.u32 %s76, 1
          %s2534 = scalar_lea.sflag [#allocation5], %s2533
          %s2535 = sand.u32 %s76, 1
          %s2536 = smul.addr %s2535, 32
          %s2537 = scalar_lea.vmem [#allocation8], %s2536
          %2538 = dma.done %s2534, 512
        $region48: #{tpu_custom_call.1} parent=43 // pred_fallthru
          _
      $region44: #{tpu_custom_call.1} parent=5 // pred_fallthru
        _
    $region6: #{tpu_custom_call.1} parent=1 // loop_footer
      %s19 = sadd.s32 1, %s15
    $region7: #{tpu_custom_call.1} parent=1 // loop_footer_branch
      %14 = sbr.rel target = $region3
    $region8: #{tpu_custom_call.1} parent=1 // loop_exit
      _
    %2539 = vsyncpa [#allocation4], 1
    %s2540 = scalar_lea.sflag [#allocation4], 1
    %2541 = vsyncpa %s2540, 1
    %2542 = vsyncpa [#allocation7], 1
    %s2543 = scalar_lea.sflag [#allocation7], 1
    %2544 = vsyncpa %s2543, 1
    %2545 = vsyncpa [#allocation5], 1
    %s2546 = scalar_lea.sflag [#allocation5], 1
    %2547 = vsyncpa %s2546, 1

</llo_original>
